<compile_context>
chip_gen: v7x
topology: tpu7x:2x2x1
jax: 0.10.0
libtpu: 0.0.40
codegen_flags: <defaults>
</compile_context>

<pallas_src>
import functools

import jax
import jax.numpy as jnp
from jax.experimental import pallas as pl
from jax.experimental.pallas import tpu as pltpu

# ----------------------------- model config ---------------------------------
VOCAB_SIZE = 28
EMBEDDING_DIM = 100
HIDDEN_DIM = 128
NUM_LAYERS = 3
NUM_DIRS = 2                      # bidirectional
FEATURE_DIM = 4
MAX_NORM = 1.0
BN_EPS = 1e-5


# ----------------------------- Pallas kernel --------------------------------
def _bidir_lstm_kernel(gx_ref, whh_ref, len_ref, out_ref, h_ref, c_ref):
    """One direction (selected by the grid index) of one LSTM layer.

    gx_ref : (T, B, 4H) f32  precomputed x @ W_ih + b for this direction
    whh_ref: (H, 4H)   bf16  recurrent weights (transposed, gate order i,f,g,o)
    len_ref: (B, H)    i32   per-row sequence length broadcast across lanes
    out_ref: (T, B, H) f32   this direction's half of the (T, B, 2H) output
    h_ref, c_ref: (B, H) f32 VMEM scratch carrying the recurrence
    """
    T = out_ref.shape[0]
    H = h_ref.shape[-1]

    h_ref[...] = jnp.zeros_like(h_ref)
    c_ref[...] = jnp.zeros_like(c_ref)

    lens = len_ref[...]          # (B, H) int32, loaded once
    w_hh = whh_ref[...]          # (H, 4H) bf16, loaded once

    def step(t):
        # pack_padded_sequence semantics: padded steps (t >= length) neither
        # update (h, c) nor emit non-zero output.
        valid = t < lens                                            # (B, H) bool
        gates = gx_ref[t] + jnp.dot(h_ref[...].astype(w_hh.dtype), w_hh,
                                    preferred_element_type=jnp.float32)
        i_g = jax.nn.sigmoid(gates[:, 0 * H:1 * H])
        f_g = jax.nn.sigmoid(gates[:, 1 * H:2 * H])
        g_g = jnp.tanh(gates[:, 2 * H:3 * H])
        o_g = jax.nn.sigmoid(gates[:, 3 * H:4 * H])
        c_new = f_g * c_ref[...] + i_g * g_g
        h_new = o_g * jnp.tanh(c_new)
        c_ref[...] = jnp.where(valid, c_new, c_ref[...])
        h_ref[...] = jnp.where(valid, h_new, h_ref[...])
        out_ref[t] = jnp.where(valid, h_new, 0.0).astype(out_ref.dtype)

    # Direction 0 walks time forward, direction 1 backward.  Static Python
    # loops (T is small) keep every slice index static / lane-aligned.
    @pl.when(pl.program_id(0) == 0)
    def _fwd():
        for t in range(T):
            step(t)

    @pl.when(pl.program_id(0) == 1)
    def _bwd():
        for t in range(T - 1, -1, -1):
            step(t)


def bidir_lstm_layer(x_tbd, lens_bh, w_ih_t, w_hh_t, bias):
    """One bidirectional LSTM layer. x_tbd: (T, B, D) -> (T, B, 2H)."""
    T, B, D = x_tbd.shape
    H = HIDDEN_DIM

    # Hoisted input projection for both directions: one GEMM with M = T*B
    # rows (good MXU utilization) instead of a tiny matmul in the serial
    # time loop.
    gx = jnp.einsum("nd,kdg->kng", x_tbd.reshape(T * B, D), w_ih_t)
    gx = (gx + bias[:, None, :]).reshape(NUM_DIRS, T, B, 4 * H)

    return pl.pallas_call(
        _bidir_lstm_kernel,
        out_shape=jax.ShapeDtypeStruct((T, B, NUM_DIRS * H), jnp.float32),
        grid_spec=pltpu.PrefetchScalarGridSpec(
            num_scalar_prefetch=0,
            grid=(NUM_DIRS,),          # direction axis: parallel (2 TCs on v7x)
            in_specs=[
                pl.BlockSpec((None, T, B, 4 * H), lambda d: (d, 0, 0, 0)),
                pl.BlockSpec((None, H, 4 * H), lambda d: (d, 0, 0)),
                pl.BlockSpec((B, H), lambda d: (0, 0)),
            ],
            out_specs=pl.BlockSpec((T, B, H), lambda d: (0, 0, d)),
            scratch_shapes=[
                pltpu.VMEM((B, H), jnp.float32),   # h
                pltpu.VMEM((B, H), jnp.float32),   # c
            ],
        ),
        compiler_params=pltpu.CompilerParams(
            dimension_semantics=("parallel",)),
    )(gx, w_hh_t, lens_bh)


# --------------------------- parameter creation ------------------------------
def _kaiming_normal(key, shape, fan_in):
    std = (2.0 / fan_in) ** 0.5
    return std * jax.random.normal(key, shape, dtype=jnp.float32)


def init_params(key):
    params = {}
    keys = jax.random.split(key, 64)
    k = iter(keys)

    # nn.Embedding(vocab, emb_dim, max_norm=1, padding_idx=0) re-initialized by
    # _initialize_weights with uniform(-0.1, 0.1).
    params["embedding"] = jax.random.uniform(
        next(k), (VOCAB_SIZE, EMBEDDING_DIM), jnp.float32, -0.1, 0.1)

    # nn.Linear(feature_dim, feature_dim): kaiming_normal weight, zero bias.
    params["feat_w"] = _kaiming_normal(next(k), (FEATURE_DIM, FEATURE_DIM),
                                       FEATURE_DIM)            # (out, in)
    params["feat_b"] = jnp.zeros((FEATURE_DIM,), jnp.float32)

    # LSTM weights, stored transposed and stacked per direction.
    lstm_input_dim = EMBEDDING_DIM + FEATURE_DIM
    lstm = []
    for layer in range(NUM_LAYERS):
        d_in = lstm_input_dim if layer == 0 else HIDDEN_DIM * NUM_DIRS
        w_ih_t = jnp.stack([
            _kaiming_normal(next(k), (d_in, 4 * HIDDEN_DIM), d_in)
            for _ in range(NUM_DIRS)])                         # (2, D, 4H) f32
        w_hh_t = jnp.stack([
            _kaiming_normal(next(k), (HIDDEN_DIM, 4 * HIDDEN_DIM), HIDDEN_DIM)
            for _ in range(NUM_DIRS)]).astype(jnp.bfloat16)    # (2, H, 4H) bf16
        # bias_ih + bias_hh: zeros except forget gate (2nd quarter) = 1 + 1.
        b = jnp.zeros((NUM_DIRS, 4 * HIDDEN_DIM), jnp.float32)
        b = b.at[:, HIDDEN_DIM:2 * HIDDEN_DIM].set(2.0)
        lstm.append({"w_ih_t": w_ih_t, "w_hh_t": w_hh_t, "b": b})
    params["lstm"] = lstm
    return params


# ------------------------------- forward -------------------------------------
def embedding_lstm_forward(params, states, lengths, features):
    """states: (B, T) int32, lengths: (B,) int32, features: (B, F) f32."""
    B, T = states.shape
    H = HIDDEN_DIM
    lengths = lengths.astype(jnp.int32)

    # torch.sort(lengths, descending=True) + reorder.  Like the PyTorch
    # reference, the output stays in sorted order (no inverse permutation).
    sorted_indices = jnp.argsort(-lengths)
    sorted_lengths = lengths[sorted_indices]
    states = states[sorted_indices]
    features = features[sorted_indices]

    # Embedding lookup with max_norm=1 renorm applied to the looked-up rows.
    emb = params["embedding"][states]                              # (B, T, E)
    norm = jnp.sqrt(jnp.sum(emb * emb, axis=-1, keepdims=True))
    scale = jnp.where(norm > MAX_NORM, MAX_NORM / (norm + 1e-7), 1.0)
    emb = emb * scale

    # feature_transform (Linear) + feature_bn.
    # TODO(synk): BatchNorm eval uses default running stats (mean=0, var=1);
    # trained running stats are not representable without loading them.
    tf = features @ params["feat_w"].T + params["feat_b"]          # (B, F)
    tf = tf / jnp.sqrt(1.0 + BN_EPS)

    feat_rep = jnp.broadcast_to(tf[:, None, :], (B, T, FEATURE_DIM))
    x = jnp.concatenate([emb, feat_rep], axis=-1)                  # (B, T, E+F)
    # dropout1: identity in eval.

    # Time-major; pad batch to a multiple of 8 (f32 sublane) so every h/c
    # update and output store in the kernel is an unmasked full-tile access.
    B_pad = max(8, -(-B // 8) * 8)
    x_tbd = jnp.transpose(x, (1, 0, 2)).astype(jnp.float32)        # (T, B, D)
    x_tbd = jnp.pad(x_tbd, ((0, 0), (0, B_pad - B), (0, 0)))
    lens_pad = jnp.pad(sorted_lengths, (0, B_pad - B))             # pad rows: len 0
    lens_bh = jnp.broadcast_to(lens_pad[:, None],
                               (B_pad, H)).astype(jnp.int32)       # lane-dense

    layer_in = x_tbd
    for layer_p in params["lstm"]:
        layer_in = bidir_lstm_layer(layer_in, lens_bh,
                                    layer_p["w_ih_t"], layer_p["w_hh_t"],
                                    layer_p["b"])                  # (T, Bp, 2H)
        # inter-layer dropout: identity in eval.

    # dropout2: identity.  ExtractLastTensor: x[b, lengths[b]-1].
    last = layer_in[sorted_lengths - 1, jnp.arange(B)]             # (B, 2H)

    # classifier_bn (eval, default running stats); dropout3: identity.
    return last / jnp.sqrt(1.0 + BN_EPS)


# --------------------------------- main ---------------------------------------
if __name__ == "__main__":
    key = jax.random.PRNGKey(0)
    pkey, skey, fkey = jax.random.split(key, 3)

    params = init_params(pkey)

    B, T = 4, 8
    states = jax.random.randint(skey, (B, T), 0, VOCAB_SIZE, dtype=jnp.int32)
    lengths = jnp.array([6, 8, 3, 7], dtype=jnp.int32)
    features = jax.random.normal(fkey, (B, FEATURE_DIM), dtype=jnp.float32)

    fwd = jax.jit(functools.partial(embedding_lstm_forward, params))
    out = fwd(states, lengths, features)
    jax.block_until_ready(out)

    assert out.shape == (B, HIDDEN_DIM * 2), out.shape
    assert jnp.all(jnp.isfinite(out))
    print("KERNEL_OK")
</pallas_src>

<mosaic_0001>
module attributes {stable_mosaic.version = 11 : i64} {
  func.func @_bidir_lstm_kernel(%arg0: i32, %arg1: memref<1x8x8x512xf32, #tpu.memory_space<vmem>>, %arg2: memref<1x128x512xbf16, #tpu.memory_space<vmem>>, %arg3: memref<8x128xi32, #tpu.memory_space<vmem>>, %arg4: memref<8x8x128xf32, #tpu.memory_space<vmem>>, %arg5: memref<8x128xf32, #tpu.memory_space<vmem>>, %arg6: memref<8x128xf32, #tpu.memory_space<vmem>>) attributes {dimension_semantics = [#tpu.dimension_semantics<parallel>], iteration_bounds = array<i64: 2>, scalar_prefetch = 0 : i64, scratch_operands = 2 : i64, tpu.core_type = #tpu.core_type<tc>, window_params = [{transform_indices = @transform_0, window_bounds = array<i64: 1, 8, 8, 512>}, {transform_indices = @transform_1, window_bounds = array<i64: 1, 128, 512>}, {pipeline_mode = #tpu.pipeline_mode<synchronous>, transform_indices = @transform_2, window_bounds = array<i64: 8, 128>}, {transform_indices = @transform_3, window_bounds = array<i64: 8, 8, 128>}]} {
    %cst = arith.constant 0.000000e+00 : f32
    %0 = vector.broadcast %cst : f32 to vector<8x128xf32>
    %c0 = arith.constant 0 : index
    %c0_0 = arith.constant 0 : index
    %1 = vector.load %arg5[%c0, %c0_0] : memref<8x128xf32, #tpu.memory_space<vmem>>, vector<8x128xf32>
    tpu.vector_store %arg5[%c0, %c0_0], %0 {strides = array<i32>} : memref<8x128xf32, #tpu.memory_space<vmem>>, vector<8x128xf32>,
    %cst_1 = arith.constant 0.000000e+00 : f32
    %2 = vector.broadcast %cst_1 : f32 to vector<8x128xf32>
    %c0_2 = arith.constant 0 : index
    %c0_3 = arith.constant 0 : index
    %3 = vector.load %arg6[%c0_2, %c0_3] : memref<8x128xf32, #tpu.memory_space<vmem>>, vector<8x128xf32>
    tpu.vector_store %arg6[%c0_2, %c0_3], %2 {strides = array<i32>} : memref<8x128xf32, #tpu.memory_space<vmem>>, vector<8x128xf32>,
    %c0_4 = arith.constant 0 : index
    %c0_5 = arith.constant 0 : index
    %4 = vector.load %arg3[%c0_4, %c0_5] : memref<8x128xi32, #tpu.memory_space<vmem>>, vector<8x128xi32>
    %c0_6 = arith.constant 0 : index
    %c0_7 = arith.constant 0 : index
    %c0_8 = arith.constant 0 : index
    %5 = vector.load %arg2[%c0_6, %c0_7, %c0_8] : memref<1x128x512xbf16, #tpu.memory_space<vmem>>, vector<1x128x512xbf16>
    %6 = vector.shape_cast %5 : vector<1x128x512xbf16> to vector<128x512xbf16>
    %c0_i32 = arith.constant 0 : i32
    %7 = arith.cmpi eq, %arg0, %c0_i32 : i32
    %8 = arith.extui %7 : i1 to i32
    %c0_i32_9 = arith.constant 0 : i32
    %9 = arith.cmpi ne, %8, %c0_i32_9 : i32
    scf.if %9 {
      %c0_i32_11 = arith.constant 0 : i32
      %13 = vector.broadcast %c0_i32_11 : i32 to vector<8x128xi32>
      %14 = arith.cmpi sgt, %4, %13 : vector<8x128xi32>
      %c0_12 = arith.constant 0 : index
      %c0_13 = arith.constant 0 : index
      %c0_14 = arith.constant 0 : index
      %c0_15 = arith.constant 0 : index
      %15 = vector.load %arg1[%c0_12, %c0_13, %c0_14, %c0_15] : memref<1x8x8x512xf32, #tpu.memory_space<vmem>>, vector<1x1x8x512xf32>
      %16 = vector.shape_cast %15 : vector<1x1x8x512xf32> to vector<8x512xf32>
      %c0_16 = arith.constant 0 : index
      %c0_17 = arith.constant 0 : index
      %17 = vector.load %arg5[%c0_16, %c0_17] : memref<8x128xf32, #tpu.memory_space<vmem>>, vector<8x128xf32>
      %18 = arith.truncf %17 : vector<8x128xf32> to vector<8x128xbf16>
      %cst_18 = arith.constant dense<0.000000e+00> : vector<8x512xf32>
      %19 = tpu.matmul %18, %6, %cst_18 {dimension_numbers = #tpu.dot_dimension_numbers<[1], [0], [0], [1], [0, 0, 1, 1], [], []>} : vector<8x128xbf16>, vector<128x512xbf16>, vector<8x512xf32> -> vector<8x512xf32>
      %20 = arith.addf %16, %19 : vector<8x512xf32>
      %21 = vector.extract_strided_slice %20 {offsets = [0, 0], sizes = [8, 128], strides = [1, 1]} : vector<8x512xf32> to vector<8x128xf32>
      %22 = arith.negf %21 : vector<8x128xf32>
      %23 = math.exp %22 : vector<8x128xf32>
      %cst_19 = arith.constant 1.000000e+00 : f32
      %24 = vector.broadcast %cst_19 : f32 to vector<8x128xf32>
      %25 = arith.addf %24, %23 : vector<8x128xf32>
      %26 = arith.divf %24, %25 : vector<8x128xf32>
      %27 = vector.extract_strided_slice %20 {offsets = [0, 128], sizes = [8, 128], strides = [1, 1]} : vector<8x512xf32> to vector<8x128xf32>
      %28 = arith.negf %27 : vector<8x128xf32>
      %29 = math.exp %28 : vector<8x128xf32>
      %cst_20 = arith.constant 1.000000e+00 : f32
      %30 = vector.broadcast %cst_20 : f32 to vector<8x128xf32>
      %31 = arith.addf %30, %29 : vector<8x128xf32>
      %32 = arith.divf %30, %31 : vector<8x128xf32>
      %33 = vector.extract_strided_slice %20 {offsets = [0, 256], sizes = [8, 128], strides = [1, 1]} : vector<8x512xf32> to vector<8x128xf32>
      %34 = math.tanh %33 : vector<8x128xf32>
      %35 = vector.extract_strided_slice %20 {offsets = [0, 384], sizes = [8, 128], strides = [1, 1]} : vector<8x512xf32> to vector<8x128xf32>
      %36 = arith.negf %35 : vector<8x128xf32>
      %37 = math.exp %36 : vector<8x128xf32>
      %cst_21 = arith.constant 1.000000e+00 : f32
      %38 = vector.broadcast %cst_21 : f32 to vector<8x128xf32>
      %39 = arith.addf %38, %37 : vector<8x128xf32>
      %40 = arith.divf %38, %39 : vector<8x128xf32>
      %c0_22 = arith.constant 0 : index
      %c0_23 = arith.constant 0 : index
      %41 = vector.load %arg6[%c0_22, %c0_23] : memref<8x128xf32, #tpu.memory_space<vmem>>, vector<8x128xf32>
      %42 = arith.mulf %32, %41 : vector<8x128xf32>
      %43 = arith.mulf %26, %34 : vector<8x128xf32>
      %44 = arith.addf %42, %43 : vector<8x128xf32>
      %45 = math.tanh %44 : vector<8x128xf32>
      %46 = arith.mulf %40, %45 : vector<8x128xf32>
      %c0_24 = arith.constant 0 : index
      %c0_25 = arith.constant 0 : index
      %47 = vector.load %arg6[%c0_24, %c0_25] : memref<8x128xf32, #tpu.memory_space<vmem>>, vector<8x128xf32>
      %48 = arith.select %14, %44, %47 : vector<8x128xi1>, vector<8x128xf32>
      %c0_26 = arith.constant 0 : index
      %c0_27 = arith.constant 0 : index
      %49 = vector.load %arg6[%c0_26, %c0_27] : memref<8x128xf32, #tpu.memory_space<vmem>>, vector<8x128xf32>
      tpu.vector_store %arg6[%c0_26, %c0_27], %48 {strides = array<i32>} : memref<8x128xf32, #tpu.memory_space<vmem>>, vector<8x128xf32>,
      %c0_28 = arith.constant 0 : index
      %c0_29 = arith.constant 0 : index
      %50 = vector.load %arg5[%c0_28, %c0_29] : memref<8x128xf32, #tpu.memory_space<vmem>>, vector<8x128xf32>
      %51 = arith.select %14, %46, %50 : vector<8x128xi1>, vector<8x128xf32>
      %c0_30 = arith.constant 0 : index
      %c0_31 = arith.constant 0 : index
      %52 = vector.load %arg5[%c0_30, %c0_31] : memref<8x128xf32, #tpu.memory_space<vmem>>, vector<8x128xf32>
      tpu.vector_store %arg5[%c0_30, %c0_31], %51 {strides = array<i32>} : memref<8x128xf32, #tpu.memory_space<vmem>>, vector<8x128xf32>,
      %cst_32 = arith.constant 0.000000e+00 : f32
      %53 = vector.broadcast %cst_32 : f32 to vector<8x128xf32>
      %54 = arith.select %14, %46, %53 : vector<8x128xi1>, vector<8x128xf32>
      %c0_33 = arith.constant 0 : index
      %c0_34 = arith.constant 0 : index
      %c0_35 = arith.constant 0 : index
      %55 = vector.load %arg4[%c0_33, %c0_34, %c0_35] : memref<8x8x128xf32, #tpu.memory_space<vmem>>, vector<1x8x128xf32>
      %56 = vector.shape_cast %55 : vector<1x8x128xf32> to vector<8x128xf32>
      %57 = vector.shape_cast %54 : vector<8x128xf32> to vector<1x8x128xf32>
      tpu.vector_store %arg4[%c0_33, %c0_34, %c0_35], %57 {strides = array<i32>} : memref<8x8x128xf32, #tpu.memory_space<vmem>>, vector<1x8x128xf32>,
      %c1_i32_36 = arith.constant 1 : i32
      %58 = vector.broadcast %c1_i32_36 : i32 to vector<8x128xi32>
      %59 = arith.cmpi sgt, %4, %58 : vector<8x128xi32>
      %c0_37 = arith.constant 0 : index
      %c1 = arith.constant 1 : index
      %c0_38 = arith.constant 0 : index
      %c0_39 = arith.constant 0 : index
      %60 = vector.load %arg1[%c0_37, %c1, %c0_38, %c0_39] : memref<1x8x8x512xf32, #tpu.memory_space<vmem>>, vector<1x1x8x512xf32>
      %61 = vector.shape_cast %60 : vector<1x1x8x512xf32> to vector<8x512xf32>
      %c0_40 = arith.constant 0 : index
      %c0_41 = arith.constant 0 : index
      %62 = vector.load %arg5[%c0_40, %c0_41] : memref<8x128xf32, #tpu.memory_space<vmem>>, vector<8x128xf32>
      %63 = arith.truncf %62 : vector<8x128xf32> to vector<8x128xbf16>
      %cst_42 = arith.constant dense<0.000000e+00> : vector<8x512xf32>
      %64 = tpu.matmul %63, %6, %cst_42 {dimension_numbers = #tpu.dot_dimension_numbers<[1], [0], [0], [1], [0, 0, 1, 1], [], []>} : vector<8x128xbf16>, vector<128x512xbf16>, vector<8x512xf32> -> vector<8x512xf32>
      %65 = arith.addf %61, %64 : vector<8x512xf32>
      %66 = vector.extract_strided_slice %65 {offsets = [0, 0], sizes = [8, 128], strides = [1, 1]} : vector<8x512xf32> to vector<8x128xf32>
      %67 = arith.negf %66 : vector<8x128xf32>
      %68 = math.exp %67 : vector<8x128xf32>
      %cst_43 = arith.constant 1.000000e+00 : f32
      %69 = vector.broadcast %cst_43 : f32 to vector<8x128xf32>
      %70 = arith.addf %69, %68 : vector<8x128xf32>
      %71 = arith.divf %69, %70 : vector<8x128xf32>
      %72 = vector.extract_strided_slice %65 {offsets = [0, 128], sizes = [8, 128], strides = [1, 1]} : vector<8x512xf32> to vector<8x128xf32>
      %73 = arith.negf %72 : vector<8x128xf32>
      %74 = math.exp %73 : vector<8x128xf32>
      %cst_44 = arith.constant 1.000000e+00 : f32
      %75 = vector.broadcast %cst_44 : f32 to vector<8x128xf32>
      %76 = arith.addf %75, %74 : vector<8x128xf32>
      %77 = arith.divf %75, %76 : vector<8x128xf32>
      %78 = vector.extract_strided_slice %65 {offsets = [0, 256], sizes = [8, 128], strides = [1, 1]} : vector<8x512xf32> to vector<8x128xf32>
      %79 = math.tanh %78 : vector<8x128xf32>
      %80 = vector.extract_strided_slice %65 {offsets = [0, 384], sizes = [8, 128], strides = [1, 1]} : vector<8x512xf32> to vector<8x128xf32>
      %81 = arith.negf %80 : vector<8x128xf32>
      %82 = math.exp %81 : vector<8x128xf32>
      %cst_45 = arith.constant 1.000000e+00 : f32
      %83 = vector.broadcast %cst_45 : f32 to vector<8x128xf32>
      %84 = arith.addf %83, %82 : vector<8x128xf32>
      %85 = arith.divf %83, %84 : vector<8x128xf32>
      %c0_46 = arith.constant 0 : index
      %c0_47 = arith.constant 0 : index
      %86 = vector.load %arg6[%c0_46, %c0_47] : memref<8x128xf32, #tpu.memory_space<vmem>>, vector<8x128xf32>
      %87 = arith.mulf %77, %86 : vector<8x128xf32>
      %88 = arith.mulf %71, %79 : vector<8x128xf32>
      %89 = arith.addf %87, %88 : vector<8x128xf32>
      %90 = math.tanh %89 : vector<8x128xf32>
      %91 = arith.mulf %85, %90 : vector<8x128xf32>
      %c0_48 = arith.constant 0 : index
      %c0_49 = arith.constant 0 : index
      %92 = vector.load %arg6[%c0_48, %c0_49] : memref<8x128xf32, #tpu.memory_space<vmem>>, vector<8x128xf32>
      %93 = arith.select %59, %89, %92 : vector<8x128xi1>, vector<8x128xf32>
      %c0_50 = arith.constant 0 : index
      %c0_51 = arith.constant 0 : index
      %94 = vector.load %arg6[%c0_50, %c0_51] : memref<8x128xf32, #tpu.memory_space<vmem>>, vector<8x128xf32>
      tpu.vector_store %arg6[%c0_50, %c0_51], %93 {strides = array<i32>} : memref<8x128xf32, #tpu.memory_space<vmem>>, vector<8x128xf32>,
      %c0_52 = arith.constant 0 : index
      %c0_53 = arith.constant 0 : index
      %95 = vector.load %arg5[%c0_52, %c0_53] : memref<8x128xf32, #tpu.memory_space<vmem>>, vector<8x128xf32>
      %96 = arith.select %59, %91, %95 : vector<8x128xi1>, vector<8x128xf32>
      %c0_54 = arith.constant 0 : index
      %c0_55 = arith.constant 0 : index
      %97 = vector.load %arg5[%c0_54, %c0_55] : memref<8x128xf32, #tpu.memory_space<vmem>>, vector<8x128xf32>
      tpu.vector_store %arg5[%c0_54, %c0_55], %96 {strides = array<i32>} : memref<8x128xf32, #tpu.memory_space<vmem>>, vector<8x128xf32>,
      %cst_56 = arith.constant 0.000000e+00 : f32
      %98 = vector.broadcast %cst_56 : f32 to vector<8x128xf32>
      %99 = arith.select %59, %91, %98 : vector<8x128xi1>, vector<8x128xf32>
      %c1_57 = arith.constant 1 : index
      %c0_58 = arith.constant 0 : index
      %c0_59 = arith.constant 0 : index
      %100 = vector.load %arg4[%c1_57, %c0_58, %c0_59] : memref<8x8x128xf32, #tpu.memory_space<vmem>>, vector<1x8x128xf32>
      %101 = vector.shape_cast %100 : vector<1x8x128xf32> to vector<8x128xf32>
      %102 = vector.shape_cast %99 : vector<8x128xf32> to vector<1x8x128xf32>
      tpu.vector_store %arg4[%c1_57, %c0_58, %c0_59], %102 {strides = array<i32>} : memref<8x8x128xf32, #tpu.memory_space<vmem>>, vector<1x8x128xf32>,
      %c2_i32 = arith.constant 2 : i32
      %103 = vector.broadcast %c2_i32 : i32 to vector<8x128xi32>
      %104 = arith.cmpi sgt, %4, %103 : vector<8x128xi32>
      %c0_60 = arith.constant 0 : index
      %c2 = arith.constant 2 : index
      %c0_61 = arith.constant 0 : index
      %c0_62 = arith.constant 0 : index
      %105 = vector.load %arg1[%c0_60, %c2, %c0_61, %c0_62] : memref<1x8x8x512xf32, #tpu.memory_space<vmem>>, vector<1x1x8x512xf32>
      %106 = vector.shape_cast %105 : vector<1x1x8x512xf32> to vector<8x512xf32>
      %c0_63 = arith.constant 0 : index
      %c0_64 = arith.constant 0 : index
      %107 = vector.load %arg5[%c0_63, %c0_64] : memref<8x128xf32, #tpu.memory_space<vmem>>, vector<8x128xf32>
      %108 = arith.truncf %107 : vector<8x128xf32> to vector<8x128xbf16>
      %cst_65 = arith.constant dense<0.000000e+00> : vector<8x512xf32>
      %109 = tpu.matmul %108, %6, %cst_65 {dimension_numbers = #tpu.dot_dimension_numbers<[1], [0], [0], [1], [0, 0, 1, 1], [], []>} : vector<8x128xbf16>, vector<128x512xbf16>, vector<8x512xf32> -> vector<8x512xf32>
      %110 = arith.addf %106, %109 : vector<8x512xf32>
      %111 = vector.extract_strided_slice %110 {offsets = [0, 0], sizes = [8, 128], strides = [1, 1]} : vector<8x512xf32> to vector<8x128xf32>
      %112 = arith.negf %111 : vector<8x128xf32>
      %113 = math.exp %112 : vector<8x128xf32>
      %cst_66 = arith.constant 1.000000e+00 : f32
      %114 = vector.broadcast %cst_66 : f32 to vector<8x128xf32>
      %115 = arith.addf %114, %113 : vector<8x128xf32>
      %116 = arith.divf %114, %115 : vector<8x128xf32>
      %117 = vector.extract_strided_slice %110 {offsets = [0, 128], sizes = [8, 128], strides = [1, 1]} : vector<8x512xf32> to vector<8x128xf32>
      %118 = arith.negf %117 : vector<8x128xf32>
      %119 = math.exp %118 : vector<8x128xf32>
      %cst_67 = arith.constant 1.000000e+00 : f32
      %120 = vector.broadcast %cst_67 : f32 to vector<8x128xf32>
      %121 = arith.addf %120, %119 : vector<8x128xf32>
      %122 = arith.divf %120, %121 : vector<8x128xf32>
      %123 = vector.extract_strided_slice %110 {offsets = [0, 256], sizes = [8, 128], strides = [1, 1]} : vector<8x512xf32> to vector<8x128xf32>
      %124 = math.tanh %123 : vector<8x128xf32>
      %125 = vector.extract_strided_slice %110 {offsets = [0, 384], sizes = [8, 128], strides = [1, 1]} : vector<8x512xf32> to vector<8x128xf32>
      %126 = arith.negf %125 : vector<8x128xf32>
      %127 = math.exp %126 : vector<8x128xf32>
      %cst_68 = arith.constant 1.000000e+00 : f32
      %128 = vector.broadcast %cst_68 : f32 to vector<8x128xf32>
      %129 = arith.addf %128, %127 : vector<8x128xf32>
      %130 = arith.divf %128, %129 : vector<8x128xf32>
      %c0_69 = arith.constant 0 : index
      %c0_70 = arith.constant 0 : index
      %131 = vector.load %arg6[%c0_69, %c0_70] : memref<8x128xf32, #tpu.memory_space<vmem>>, vector<8x128xf32>
      %132 = arith.mulf %122, %131 : vector<8x128xf32>
      %133 = arith.mulf %116, %124 : vector<8x128xf32>
      %134 = arith.addf %132, %133 : vector<8x128xf32>
      %135 = math.tanh %134 : vector<8x128xf32>
      %136 = arith.mulf %130, %135 : vector<8x128xf32>
      %c0_71 = arith.constant 0 : index
      %c0_72 = arith.constant 0 : index
      %137 = vector.load %arg6[%c0_71, %c0_72] : memref<8x128xf32, #tpu.memory_space<vmem>>, vector<8x128xf32>
      %138 = arith.select %104, %134, %137 : vector<8x128xi1>, vector<8x128xf32>
      %c0_73 = arith.constant 0 : index
      %c0_74 = arith.constant 0 : index
      %139 = vector.load %arg6[%c0_73, %c0_74] : memref<8x128xf32, #tpu.memory_space<vmem>>, vector<8x128xf32>
      tpu.vector_store %arg6[%c0_73, %c0_74], %138 {strides = array<i32>} : memref<8x128xf32, #tpu.memory_space<vmem>>, vector<8x128xf32>,
      %c0_75 = arith.constant 0 : index
      %c0_76 = arith.constant 0 : index
      %140 = vector.load %arg5[%c0_75, %c0_76] : memref<8x128xf32, #tpu.memory_space<vmem>>, vector<8x128xf32>
      %141 = arith.select %104, %136, %140 : vector<8x128xi1>, vector<8x128xf32>
      %c0_77 = arith.constant 0 : index
      %c0_78 = arith.constant 0 : index
      %142 = vector.load %arg5[%c0_77, %c0_78] : memref<8x128xf32, #tpu.memory_space<vmem>>, vector<8x128xf32>
      tpu.vector_store %arg5[%c0_77, %c0_78], %141 {strides = array<i32>} : memref<8x128xf32, #tpu.memory_space<vmem>>, vector<8x128xf32>,
      %cst_79 = arith.constant 0.000000e+00 : f32
      %143 = vector.broadcast %cst_79 : f32 to vector<8x128xf32>
      %144 = arith.select %104, %136, %143 : vector<8x128xi1>, vector<8x128xf32>
      %c2_80 = arith.constant 2 : index
      %c0_81 = arith.constant 0 : index
      %c0_82 = arith.constant 0 : index
      %145 = vector.load %arg4[%c2_80, %c0_81, %c0_82] : memref<8x8x128xf32, #tpu.memory_space<vmem>>, vector<1x8x128xf32>
      %146 = vector.shape_cast %145 : vector<1x8x128xf32> to vector<8x128xf32>
      %147 = vector.shape_cast %144 : vector<8x128xf32> to vector<1x8x128xf32>
      tpu.vector_store %arg4[%c2_80, %c0_81, %c0_82], %147 {strides = array<i32>} : memref<8x8x128xf32, #tpu.memory_space<vmem>>, vector<1x8x128xf32>,
      %c3_i32 = arith.constant 3 : i32
      %148 = vector.broadcast %c3_i32 : i32 to vector<8x128xi32>
      %149 = arith.cmpi sgt, %4, %148 : vector<8x128xi32>
      %c0_83 = arith.constant 0 : index
      %c3 = arith.constant 3 : index
      %c0_84 = arith.constant 0 : index
      %c0_85 = arith.constant 0 : index
      %150 = vector.load %arg1[%c0_83, %c3, %c0_84, %c0_85] : memref<1x8x8x512xf32, #tpu.memory_space<vmem>>, vector<1x1x8x512xf32>
      %151 = vector.shape_cast %150 : vector<1x1x8x512xf32> to vector<8x512xf32>
      %c0_86 = arith.constant 0 : index
      %c0_87 = arith.constant 0 : index
      %152 = vector.load %arg5[%c0_86, %c0_87] : memref<8x128xf32, #tpu.memory_space<vmem>>, vector<8x128xf32>
      %153 = arith.truncf %152 : vector<8x128xf32> to vector<8x128xbf16>
      %cst_88 = arith.constant dense<0.000000e+00> : vector<8x512xf32>
      %154 = tpu.matmul %153, %6, %cst_88 {dimension_numbers = #tpu.dot_dimension_numbers<[1], [0], [0], [1], [0, 0, 1, 1], [], []>} : vector<8x128xbf16>, vector<128x512xbf16>, vector<8x512xf32> -> vector<8x512xf32>
      %155 = arith.addf %151, %154 : vector<8x512xf32>
      %156 = vector.extract_strided_slice %155 {offsets = [0, 0], sizes = [8, 128], strides = [1, 1]} : vector<8x512xf32> to vector<8x128xf32>
      %157 = arith.negf %156 : vector<8x128xf32>
      %158 = math.exp %157 : vector<8x128xf32>
      %cst_89 = arith.constant 1.000000e+00 : f32
      %159 = vector.broadcast %cst_89 : f32 to vector<8x128xf32>
      %160 = arith.addf %159, %158 : vector<8x128xf32>
      %161 = arith.divf %159, %160 : vector<8x128xf32>
      %162 = vector.extract_strided_slice %155 {offsets = [0, 128], sizes = [8, 128], strides = [1, 1]} : vector<8x512xf32> to vector<8x128xf32>
      %163 = arith.negf %162 : vector<8x128xf32>
      %164 = math.exp %163 : vector<8x128xf32>
      %cst_90 = arith.constant 1.000000e+00 : f32
      %165 = vector.broadcast %cst_90 : f32 to vector<8x128xf32>
      %166 = arith.addf %165, %164 : vector<8x128xf32>
      %167 = arith.divf %165, %166 : vector<8x128xf32>
      %168 = vector.extract_strided_slice %155 {offsets = [0, 256], sizes = [8, 128], strides = [1, 1]} : vector<8x512xf32> to vector<8x128xf32>
      %169 = math.tanh %168 : vector<8x128xf32>
      %170 = vector.extract_strided_slice %155 {offsets = [0, 384], sizes = [8, 128], strides = [1, 1]} : vector<8x512xf32> to vector<8x128xf32>
      %171 = arith.negf %170 : vector<8x128xf32>
      %172 = math.exp %171 : vector<8x128xf32>
      %cst_91 = arith.constant 1.000000e+00 : f32
      %173 = vector.broadcast %cst_91 : f32 to vector<8x128xf32>
      %174 = arith.addf %173, %172 : vector<8x128xf32>
      %175 = arith.divf %173, %174 : vector<8x128xf32>
      %c0_92 = arith.constant 0 : index
      %c0_93 = arith.constant 0 : index
      %176 = vector.load %arg6[%c0_92, %c0_93] : memref<8x128xf32, #tpu.memory_space<vmem>>, vector<8x128xf32>
      %177 = arith.mulf %167, %176 : vector<8x128xf32>
      %178 = arith.mulf %161, %169 : vector<8x128xf32>
      %179 = arith.addf %177, %178 : vector<8x128xf32>
      %180 = math.tanh %179 : vector<8x128xf32>
      %181 = arith.mulf %175, %180 : vector<8x128xf32>
      %c0_94 = arith.constant 0 : index
      %c0_95 = arith.constant 0 : index
      %182 = vector.load %arg6[%c0_94, %c0_95] : memref<8x128xf32, #tpu.memory_space<vmem>>, vector<8x128xf32>
      %183 = arith.select %149, %179, %182 : vector<8x128xi1>, vector<8x128xf32>
      %c0_96 = arith.constant 0 : index
      %c0_97 = arith.constant 0 : index
      %184 = vector.load %arg6[%c0_96, %c0_97] : memref<8x128xf32, #tpu.memory_space<vmem>>, vector<8x128xf32>
      tpu.vector_store %arg6[%c0_96, %c0_97], %183 {strides = array<i32>} : memref<8x128xf32, #tpu.memory_space<vmem>>, vector<8x128xf32>,
      %c0_98 = arith.constant 0 : index
      %c0_99 = arith.constant 0 : index
      %185 = vector.load %arg5[%c0_98, %c0_99] : memref<8x128xf32, #tpu.memory_space<vmem>>, vector<8x128xf32>
      %186 = arith.select %149, %181, %185 : vector<8x128xi1>, vector<8x128xf32>
      %c0_100 = arith.constant 0 : index
      %c0_101 = arith.constant 0 : index
      %187 = vector.load %arg5[%c0_100, %c0_101] : memref<8x128xf32, #tpu.memory_space<vmem>>, vector<8x128xf32>
      tpu.vector_store %arg5[%c0_100, %c0_101], %186 {strides = array<i32>} : memref<8x128xf32, #tpu.memory_space<vmem>>, vector<8x128xf32>,
      %cst_102 = arith.constant 0.000000e+00 : f32
      %188 = vector.broadcast %cst_102 : f32 to vector<8x128xf32>
      %189 = arith.select %149, %181, %188 : vector<8x128xi1>, vector<8x128xf32>
      %c3_103 = arith.constant 3 : index
      %c0_104 = arith.constant 0 : index
      %c0_105 = arith.constant 0 : index
      %190 = vector.load %arg4[%c3_103, %c0_104, %c0_105] : memref<8x8x128xf32, #tpu.memory_space<vmem>>, vector<1x8x128xf32>
      %191 = vector.shape_cast %190 : vector<1x8x128xf32> to vector<8x128xf32>
      %192 = vector.shape_cast %189 : vector<8x128xf32> to vector<1x8x128xf32>
      tpu.vector_store %arg4[%c3_103, %c0_104, %c0_105], %192 {strides = array<i32>} : memref<8x8x128xf32, #tpu.memory_space<vmem>>, vector<1x8x128xf32>,
      %c4_i32 = arith.constant 4 : i32
      %193 = vector.broadcast %c4_i32 : i32 to vector<8x128xi32>
      %194 = arith.cmpi sgt, %4, %193 : vector<8x128xi32>
      %c0_106 = arith.constant 0 : index
      %c4 = arith.constant 4 : index
      %c0_107 = arith.constant 0 : index
      %c0_108 = arith.constant 0 : index
      %195 = vector.load %arg1[%c0_106, %c4, %c0_107, %c0_108] : memref<1x8x8x512xf32, #tpu.memory_space<vmem>>, vector<1x1x8x512xf32>
      %196 = vector.shape_cast %195 : vector<1x1x8x512xf32> to vector<8x512xf32>
      %c0_109 = arith.constant 0 : index
      %c0_110 = arith.constant 0 : index
      %197 = vector.load %arg5[%c0_109, %c0_110] : memref<8x128xf32, #tpu.memory_space<vmem>>, vector<8x128xf32>
      %198 = arith.truncf %197 : vector<8x128xf32> to vector<8x128xbf16>
      %cst_111 = arith.constant dense<0.000000e+00> : vector<8x512xf32>
      %199 = tpu.matmul %198, %6, %cst_111 {dimension_numbers = #tpu.dot_dimension_numbers<[1], [0], [0], [1], [0, 0, 1, 1], [], []>} : vector<8x128xbf16>, vector<128x512xbf16>, vector<8x512xf32> -> vector<8x512xf32>
      %200 = arith.addf %196, %199 : vector<8x512xf32>
      %201 = vector.extract_strided_slice %200 {offsets = [0, 0], sizes = [8, 128], strides = [1, 1]} : vector<8x512xf32> to vector<8x128xf32>
      %202 = arith.negf %201 : vector<8x128xf32>
      %203 = math.exp %202 : vector<8x128xf32>
      %cst_112 = arith.constant 1.000000e+00 : f32
      %204 = vector.broadcast %cst_112 : f32 to vector<8x128xf32>
      %205 = arith.addf %204, %203 : vector<8x128xf32>
      %206 = arith.divf %204, %205 : vector<8x128xf32>
      %207 = vector.extract_strided_slice %200 {offsets = [0, 128], sizes = [8, 128], strides = [1, 1]} : vector<8x512xf32> to vector<8x128xf32>
      %208 = arith.negf %207 : vector<8x128xf32>
      %209 = math.exp %208 : vector<8x128xf32>
      %cst_113 = arith.constant 1.000000e+00 : f32
      %210 = vector.broadcast %cst_113 : f32 to vector<8x128xf32>
      %211 = arith.addf %210, %209 : vector<8x128xf32>
      %212 = arith.divf %210, %211 : vector<8x128xf32>
      %213 = vector.extract_strided_slice %200 {offsets = [0, 256], sizes = [8, 128], strides = [1, 1]} : vector<8x512xf32> to vector<8x128xf32>
      %214 = math.tanh %213 : vector<8x128xf32>
      %215 = vector.extract_strided_slice %200 {offsets = [0, 384], sizes = [8, 128], strides = [1, 1]} : vector<8x512xf32> to vector<8x128xf32>
      %216 = arith.negf %215 : vector<8x128xf32>
      %217 = math.exp %216 : vector<8x128xf32>
      %cst_114 = arith.constant 1.000000e+00 : f32
      %218 = vector.broadcast %cst_114 : f32 to vector<8x128xf32>
      %219 = arith.addf %218, %217 : vector<8x128xf32>
      %220 = arith.divf %218, %219 : vector<8x128xf32>
      %c0_115 = arith.constant 0 : index
      %c0_116 = arith.constant 0 : index
      %221 = vector.load %arg6[%c0_115, %c0_116] : memref<8x128xf32, #tpu.memory_space<vmem>>, vector<8x128xf32>
      %222 = arith.mulf %212, %221 : vector<8x128xf32>
      %223 = arith.mulf %206, %214 : vector<8x128xf32>
      %224 = arith.addf %222, %223 : vector<8x128xf32>
      %225 = math.tanh %224 : vector<8x128xf32>
      %226 = arith.mulf %220, %225 : vector<8x128xf32>
      %c0_117 = arith.constant 0 : index
      %c0_118 = arith.constant 0 : index
      %227 = vector.load %arg6[%c0_117, %c0_118] : memref<8x128xf32, #tpu.memory_space<vmem>>, vector<8x128xf32>
      %228 = arith.select %194, %224, %227 : vector<8x128xi1>, vector<8x128xf32>
      %c0_119 = arith.constant 0 : index
      %c0_120 = arith.constant 0 : index
      %229 = vector.load %arg6[%c0_119, %c0_120] : memref<8x128xf32, #tpu.memory_space<vmem>>, vector<8x128xf32>
      tpu.vector_store %arg6[%c0_119, %c0_120], %228 {strides = array<i32>} : memref<8x128xf32, #tpu.memory_space<vmem>>, vector<8x128xf32>,
      %c0_121 = arith.constant 0 : index
      %c0_122 = arith.constant 0 : index
      %230 = vector.load %arg5[%c0_121, %c0_122] : memref<8x128xf32, #tpu.memory_space<vmem>>, vector<8x128xf32>
      %231 = arith.select %194, %226, %230 : vector<8x128xi1>, vector<8x128xf32>
      %c0_123 = arith.constant 0 : index
      %c0_124 = arith.constant 0 : index
      %232 = vector.load %arg5[%c0_123, %c0_124] : memref<8x128xf32, #tpu.memory_space<vmem>>, vector<8x128xf32>
      tpu.vector_store %arg5[%c0_123, %c0_124], %231 {strides = array<i32>} : memref<8x128xf32, #tpu.memory_space<vmem>>, vector<8x128xf32>,
      %cst_125 = arith.constant 0.000000e+00 : f32
      %233 = vector.broadcast %cst_125 : f32 to vector<8x128xf32>
      %234 = arith.select %194, %226, %233 : vector<8x128xi1>, vector<8x128xf32>
      %c4_126 = arith.constant 4 : index
      %c0_127 = arith.constant 0 : index
      %c0_128 = arith.constant 0 : index
      %235 = vector.load %arg4[%c4_126, %c0_127, %c0_128] : memref<8x8x128xf32, #tpu.memory_space<vmem>>, vector<1x8x128xf32>
      %236 = vector.shape_cast %235 : vector<1x8x128xf32> to vector<8x128xf32>
      %237 = vector.shape_cast %234 : vector<8x128xf32> to vector<1x8x128xf32>
      tpu.vector_store %arg4[%c4_126, %c0_127, %c0_128], %237 {strides = array<i32>} : memref<8x8x128xf32, #tpu.memory_space<vmem>>, vector<1x8x128xf32>,
      %c5_i32 = arith.constant 5 : i32
      %238 = vector.broadcast %c5_i32 : i32 to vector<8x128xi32>
      %239 = arith.cmpi sgt, %4, %238 : vector<8x128xi32>
      %c0_129 = arith.constant 0 : index
      %c5 = arith.constant 5 : index
      %c0_130 = arith.constant 0 : index
      %c0_131 = arith.constant 0 : index
      %240 = vector.load %arg1[%c0_129, %c5, %c0_130, %c0_131] : memref<1x8x8x512xf32, #tpu.memory_space<vmem>>, vector<1x1x8x512xf32>
      %241 = vector.shape_cast %240 : vector<1x1x8x512xf32> to vector<8x512xf32>
      %c0_132 = arith.constant 0 : index
      %c0_133 = arith.constant 0 : index
      %242 = vector.load %arg5[%c0_132, %c0_133] : memref<8x128xf32, #tpu.memory_space<vmem>>, vector<8x128xf32>
      %243 = arith.truncf %242 : vector<8x128xf32> to vector<8x128xbf16>
      %cst_134 = arith.constant dense<0.000000e+00> : vector<8x512xf32>
      %244 = tpu.matmul %243, %6, %cst_134 {dimension_numbers = #tpu.dot_dimension_numbers<[1], [0], [0], [1], [0, 0, 1, 1], [], []>} : vector<8x128xbf16>, vector<128x512xbf16>, vector<8x512xf32> -> vector<8x512xf32>
      %245 = arith.addf %241, %244 : vector<8x512xf32>
      %246 = vector.extract_strided_slice %245 {offsets = [0, 0], sizes = [8, 128], strides = [1, 1]} : vector<8x512xf32> to vector<8x128xf32>
      %247 = arith.negf %246 : vector<8x128xf32>
      %248 = math.exp %247 : vector<8x128xf32>
      %cst_135 = arith.constant 1.000000e+00 : f32
      %249 = vector.broadcast %cst_135 : f32 to vector<8x128xf32>
      %250 = arith.addf %249, %248 : vector<8x128xf32>
      %251 = arith.divf %249, %250 : vector<8x128xf32>
      %252 = vector.extract_strided_slice %245 {offsets = [0, 128], sizes = [8, 128], strides = [1, 1]} : vector<8x512xf32> to vector<8x128xf32>
      %253 = arith.negf %252 : vector<8x128xf32>
      %254 = math.exp %253 : vector<8x128xf32>
      %cst_136 = arith.constant 1.000000e+00 : f32
      %255 = vector.broadcast %cst_136 : f32 to vector<8x128xf32>
      %256 = arith.addf %255, %254 : vector<8x128xf32>
      %257 = arith.divf %255, %256 : vector<8x128xf32>
      %258 = vector.extract_strided_slice %245 {offsets = [0, 256], sizes = [8, 128], strides = [1, 1]} : vector<8x512xf32> to vector<8x128xf32>
      %259 = math.tanh %258 : vector<8x128xf32>
      %260 = vector.extract_strided_slice %245 {offsets = [0, 384], sizes = [8, 128], strides = [1, 1]} : vector<8x512xf32> to vector<8x128xf32>
      %261 = arith.negf %260 : vector<8x128xf32>
      %262 = math.exp %261 : vector<8x128xf32>
      %cst_137 = arith.constant 1.000000e+00 : f32
      %263 = vector.broadcast %cst_137 : f32 to vector<8x128xf32>
      %264 = arith.addf %263, %262 : vector<8x128xf32>
      %265 = arith.divf %263, %264 : vector<8x128xf32>
      %c0_138 = arith.constant 0 : index
      %c0_139 = arith.constant 0 : index
      %266 = vector.load %arg6[%c0_138, %c0_139] : memref<8x128xf32, #tpu.memory_space<vmem>>, vector<8x128xf32>
      %267 = arith.mulf %257, %266 : vector<8x128xf32>
      %268 = arith.mulf %251, %259 : vector<8x128xf32>
      %269 = arith.addf %267, %268 : vector<8x128xf32>
      %270 = math.tanh %269 : vector<8x128xf32>
      %271 = arith.mulf %265, %270 : vector<8x128xf32>
      %c0_140 = arith.constant 0 : index
      %c0_141 = arith.constant 0 : index
      %272 = vector.load %arg6[%c0_140, %c0_141] : memref<8x128xf32, #tpu.memory_space<vmem>>, vector<8x128xf32>
      %273 = arith.select %239, %269, %272 : vector<8x128xi1>, vector<8x128xf32>
      %c0_142 = arith.constant 0 : index
      %c0_143 = arith.constant 0 : index
      %274 = vector.load %arg6[%c0_142, %c0_143] : memref<8x128xf32, #tpu.memory_space<vmem>>, vector<8x128xf32>
      tpu.vector_store %arg6[%c0_142, %c0_143], %273 {strides = array<i32>} : memref<8x128xf32, #tpu.memory_space<vmem>>, vector<8x128xf32>,
      %c0_144 = arith.constant 0 : index
      %c0_145 = arith.constant 0 : index
      %275 = vector.load %arg5[%c0_144, %c0_145] : memref<8x128xf32, #tpu.memory_space<vmem>>, vector<8x128xf32>
      %276 = arith.select %239, %271, %275 : vector<8x128xi1>, vector<8x128xf32>
      %c0_146 = arith.constant 0 : index
      %c0_147 = arith.constant 0 : index
      %277 = vector.load %arg5[%c0_146, %c0_147] : memref<8x128xf32, #tpu.memory_space<vmem>>, vector<8x128xf32>
      tpu.vector_store %arg5[%c0_146, %c0_147], %276 {strides = array<i32>} : memref<8x128xf32, #tpu.memory_space<vmem>>, vector<8x128xf32>,
      %cst_148 = arith.constant 0.000000e+00 : f32
      %278 = vector.broadcast %cst_148 : f32 to vector<8x128xf32>
      %279 = arith.select %239, %271, %278 : vector<8x128xi1>, vector<8x128xf32>
      %c5_149 = arith.constant 5 : index
      %c0_150 = arith.constant 0 : index
      %c0_151 = arith.constant 0 : index
      %280 = vector.load %arg4[%c5_149, %c0_150, %c0_151] : memref<8x8x128xf32, #tpu.memory_space<vmem>>, vector<1x8x128xf32>
      %281 = vector.shape_cast %280 : vector<1x8x128xf32> to vector<8x128xf32>
      %282 = vector.shape_cast %279 : vector<8x128xf32> to vector<1x8x128xf32>
      tpu.vector_store %arg4[%c5_149, %c0_150, %c0_151], %282 {strides = array<i32>} : memref<8x8x128xf32, #tpu.memory_space<vmem>>, vector<1x8x128xf32>,
      %c6_i32 = arith.constant 6 : i32
      %283 = vector.broadcast %c6_i32 : i32 to vector<8x128xi32>
      %284 = arith.cmpi sgt, %4, %283 : vector<8x128xi32>
      %c0_152 = arith.constant 0 : index
      %c6 = arith.constant 6 : index
      %c0_153 = arith.constant 0 : index
      %c0_154 = arith.constant 0 : index
      %285 = vector.load %arg1[%c0_152, %c6, %c0_153, %c0_154] : memref<1x8x8x512xf32, #tpu.memory_space<vmem>>, vector<1x1x8x512xf32>
      %286 = vector.shape_cast %285 : vector<1x1x8x512xf32> to vector<8x512xf32>
      %c0_155 = arith.constant 0 : index
      %c0_156 = arith.constant 0 : index
      %287 = vector.load %arg5[%c0_155, %c0_156] : memref<8x128xf32, #tpu.memory_space<vmem>>, vector<8x128xf32>
      %288 = arith.truncf %287 : vector<8x128xf32> to vector<8x128xbf16>
      %cst_157 = arith.constant dense<0.000000e+00> : vector<8x512xf32>
      %289 = tpu.matmul %288, %6, %cst_157 {dimension_numbers = #tpu.dot_dimension_numbers<[1], [0], [0], [1], [0, 0, 1, 1], [], []>} : vector<8x128xbf16>, vector<128x512xbf16>, vector<8x512xf32> -> vector<8x512xf32>
      %290 = arith.addf %286, %289 : vector<8x512xf32>
      %291 = vector.extract_strided_slice %290 {offsets = [0, 0], sizes = [8, 128], strides = [1, 1]} : vector<8x512xf32> to vector<8x128xf32>
      %292 = arith.negf %291 : vector<8x128xf32>
      %293 = math.exp %292 : vector<8x128xf32>
      %cst_158 = arith.constant 1.000000e+00 : f32
      %294 = vector.broadcast %cst_158 : f32 to vector<8x128xf32>
      %295 = arith.addf %294, %293 : vector<8x128xf32>
      %296 = arith.divf %294, %295 : vector<8x128xf32>
      %297 = vector.extract_strided_slice %290 {offsets = [0, 128], sizes = [8, 128], strides = [1, 1]} : vector<8x512xf32> to vector<8x128xf32>
      %298 = arith.negf %297 : vector<8x128xf32>
      %299 = math.exp %298 : vector<8x128xf32>
      %cst_159 = arith.constant 1.000000e+00 : f32
      %300 = vector.broadcast %cst_159 : f32 to vector<8x128xf32>
      %301 = arith.addf %300, %299 : vector<8x128xf32>
      %302 = arith.divf %300, %301 : vector<8x128xf32>
      %303 = vector.extract_strided_slice %290 {offsets = [0, 256], sizes = [8, 128], strides = [1, 1]} : vector<8x512xf32> to vector<8x128xf32>
      %304 = math.tanh %303 : vector<8x128xf32>
      %305 = vector.extract_strided_slice %290 {offsets = [0, 384], sizes = [8, 128], strides = [1, 1]} : vector<8x512xf32> to vector<8x128xf32>
      %306 = arith.negf %305 : vector<8x128xf32>
      %307 = math.exp %306 : vector<8x128xf32>
      %cst_160 = arith.constant 1.000000e+00 : f32
      %308 = vector.broadcast %cst_160 : f32 to vector<8x128xf32>
      %309 = arith.addf %308, %307 : vector<8x128xf32>
      %310 = arith.divf %308, %309 : vector<8x128xf32>
      %c0_161 = arith.constant 0 : index
      %c0_162 = arith.constant 0 : index
      %311 = vector.load %arg6[%c0_161, %c0_162] : memref<8x128xf32, #tpu.memory_space<vmem>>, vector<8x128xf32>
      %312 = arith.mulf %302, %311 : vector<8x128xf32>
      %313 = arith.mulf %296, %304 : vector<8x128xf32>
      %314 = arith.addf %312, %313 : vector<8x128xf32>
      %315 = math.tanh %314 : vector<8x128xf32>
      %316 = arith.mulf %310, %315 : vector<8x128xf32>
      %c0_163 = arith.constant 0 : index
      %c0_164 = arith.constant 0 : index
      %317 = vector.load %arg6[%c0_163, %c0_164] : memref<8x128xf32, #tpu.memory_space<vmem>>, vector<8x128xf32>
      %318 = arith.select %284, %314, %317 : vector<8x128xi1>, vector<8x128xf32>
      %c0_165 = arith.constant 0 : index
      %c0_166 = arith.constant 0 : index
      %319 = vector.load %arg6[%c0_165, %c0_166] : memref<8x128xf32, #tpu.memory_space<vmem>>, vector<8x128xf32>
      tpu.vector_store %arg6[%c0_165, %c0_166], %318 {strides = array<i32>} : memref<8x128xf32, #tpu.memory_space<vmem>>, vector<8x128xf32>,
      %c0_167 = arith.constant 0 : index
      %c0_168 = arith.constant 0 : index
      %320 = vector.load %arg5[%c0_167, %c0_168] : memref<8x128xf32, #tpu.memory_space<vmem>>, vector<8x128xf32>
      %321 = arith.select %284, %316, %320 : vector<8x128xi1>, vector<8x128xf32>
      %c0_169 = arith.constant 0 : index
      %c0_170 = arith.constant 0 : index
      %322 = vector.load %arg5[%c0_169, %c0_170] : memref<8x128xf32, #tpu.memory_space<vmem>>, vector<8x128xf32>
      tpu.vector_store %arg5[%c0_169, %c0_170], %321 {strides = array<i32>} : memref<8x128xf32, #tpu.memory_space<vmem>>, vector<8x128xf32>,
      %cst_171 = arith.constant 0.000000e+00 : f32
      %323 = vector.broadcast %cst_171 : f32 to vector<8x128xf32>
      %324 = arith.select %284, %316, %323 : vector<8x128xi1>, vector<8x128xf32>
      %c6_172 = arith.constant 6 : index
      %c0_173 = arith.constant 0 : index
      %c0_174 = arith.constant 0 : index
      %325 = vector.load %arg4[%c6_172, %c0_173, %c0_174] : memref<8x8x128xf32, #tpu.memory_space<vmem>>, vector<1x8x128xf32>
      %326 = vector.shape_cast %325 : vector<1x8x128xf32> to vector<8x128xf32>
      %327 = vector.shape_cast %324 : vector<8x128xf32> to vector<1x8x128xf32>
      tpu.vector_store %arg4[%c6_172, %c0_173, %c0_174], %327 {strides = array<i32>} : memref<8x8x128xf32, #tpu.memory_space<vmem>>, vector<1x8x128xf32>,
      %c7_i32 = arith.constant 7 : i32
      %328 = vector.broadcast %c7_i32 : i32 to vector<8x128xi32>
      %329 = arith.cmpi sgt, %4, %328 : vector<8x128xi32>
      %c0_175 = arith.constant 0 : index
      %c7 = arith.constant 7 : index
      %c0_176 = arith.constant 0 : index
      %c0_177 = arith.constant 0 : index
      %330 = vector.load %arg1[%c0_175, %c7, %c0_176, %c0_177] : memref<1x8x8x512xf32, #tpu.memory_space<vmem>>, vector<1x1x8x512xf32>
      %331 = vector.shape_cast %330 : vector<1x1x8x512xf32> to vector<8x512xf32>
      %c0_178 = arith.constant 0 : index
      %c0_179 = arith.constant 0 : index
      %332 = vector.load %arg5[%c0_178, %c0_179] : memref<8x128xf32, #tpu.memory_space<vmem>>, vector<8x128xf32>
      %333 = arith.truncf %332 : vector<8x128xf32> to vector<8x128xbf16>
      %cst_180 = arith.constant dense<0.000000e+00> : vector<8x512xf32>
      %334 = tpu.matmul %333, %6, %cst_180 {dimension_numbers = #tpu.dot_dimension_numbers<[1], [0], [0], [1], [0, 0, 1, 1], [], []>} : vector<8x128xbf16>, vector<128x512xbf16>, vector<8x512xf32> -> vector<8x512xf32>
      %335 = arith.addf %331, %334 : vector<8x512xf32>
      %336 = vector.extract_strided_slice %335 {offsets = [0, 0], sizes = [8, 128], strides = [1, 1]} : vector<8x512xf32> to vector<8x128xf32>
      %337 = arith.negf %336 : vector<8x128xf32>
      %338 = math.exp %337 : vector<8x128xf32>
      %cst_181 = arith.constant 1.000000e+00 : f32
      %339 = vector.broadcast %cst_181 : f32 to vector<8x128xf32>
      %340 = arith.addf %339, %338 : vector<8x128xf32>
      %341 = arith.divf %339, %340 : vector<8x128xf32>
      %342 = vector.extract_strided_slice %335 {offsets = [0, 128], sizes = [8, 128], strides = [1, 1]} : vector<8x512xf32> to vector<8x128xf32>
      %343 = arith.negf %342 : vector<8x128xf32>
      %344 = math.exp %343 : vector<8x128xf32>
      %cst_182 = arith.constant 1.000000e+00 : f32
      %345 = vector.broadcast %cst_182 : f32 to vector<8x128xf32>
      %346 = arith.addf %345, %344 : vector<8x128xf32>
      %347 = arith.divf %345, %346 : vector<8x128xf32>
      %348 = vector.extract_strided_slice %335 {offsets = [0, 256], sizes = [8, 128], strides = [1, 1]} : vector<8x512xf32> to vector<8x128xf32>
      %349 = math.tanh %348 : vector<8x128xf32>
      %350 = vector.extract_strided_slice %335 {offsets = [0, 384], sizes = [8, 128], strides = [1, 1]} : vector<8x512xf32> to vector<8x128xf32>
      %351 = arith.negf %350 : vector<8x128xf32>
      %352 = math.exp %351 : vector<8x128xf32>
      %cst_183 = arith.constant 1.000000e+00 : f32
      %353 = vector.broadcast %cst_183 : f32 to vector<8x128xf32>
      %354 = arith.addf %353, %352 : vector<8x128xf32>
      %355 = arith.divf %353, %354 : vector<8x128xf32>
      %c0_184 = arith.constant 0 : index
      %c0_185 = arith.constant 0 : index
      %356 = vector.load %arg6[%c0_184, %c0_185] : memref<8x128xf32, #tpu.memory_space<vmem>>, vector<8x128xf32>
      %357 = arith.mulf %347, %356 : vector<8x128xf32>
      %358 = arith.mulf %341, %349 : vector<8x128xf32>
      %359 = arith.addf %357, %358 : vector<8x128xf32>
      %360 = math.tanh %359 : vector<8x128xf32>
      %361 = arith.mulf %355, %360 : vector<8x128xf32>
      %c0_186 = arith.constant 0 : index
      %c0_187 = arith.constant 0 : index
      %362 = vector.load %arg6[%c0_186, %c0_187] : memref<8x128xf32, #tpu.memory_space<vmem>>, vector<8x128xf32>
      %363 = arith.select %329, %359, %362 : vector<8x128xi1>, vector<8x128xf32>
      %c0_188 = arith.constant 0 : index
      %c0_189 = arith.constant 0 : index
      %364 = vector.load %arg6[%c0_188, %c0_189] : memref<8x128xf32, #tpu.memory_space<vmem>>, vector<8x128xf32>
      tpu.vector_store %arg6[%c0_188, %c0_189], %363 {strides = array<i32>} : memref<8x128xf32, #tpu.memory_space<vmem>>, vector<8x128xf32>,
      %c0_190 = arith.constant 0 : index
      %c0_191 = arith.constant 0 : index
      %365 = vector.load %arg5[%c0_190, %c0_191] : memref<8x128xf32, #tpu.memory_space<vmem>>, vector<8x128xf32>
      %366 = arith.select %329, %361, %365 : vector<8x128xi1>, vector<8x128xf32>
      %c0_192 = arith.constant 0 : index
      %c0_193 = arith.constant 0 : index
      %367 = vector.load %arg5[%c0_192, %c0_193] : memref<8x128xf32, #tpu.memory_space<vmem>>, vector<8x128xf32>
      tpu.vector_store %arg5[%c0_192, %c0_193], %366 {strides = array<i32>} : memref<8x128xf32, #tpu.memory_space<vmem>>, vector<8x128xf32>,
      %cst_194 = arith.constant 0.000000e+00 : f32
      %368 = vector.broadcast %cst_194 : f32 to vector<8x128xf32>
      %369 = arith.select %329, %361, %368 : vector<8x128xi1>, vector<8x128xf32>
      %c7_195 = arith.constant 7 : index
      %c0_196 = arith.constant 0 : index
      %c0_197 = arith.constant 0 : index
      %370 = vector.load %arg4[%c7_195, %c0_196, %c0_197] : memref<8x8x128xf32, #tpu.memory_space<vmem>>, vector<1x8x128xf32>
      %371 = vector.shape_cast %370 : vector<1x8x128xf32> to vector<8x128xf32>
      %372 = vector.shape_cast %369 : vector<8x128xf32> to vector<1x8x128xf32>
      tpu.vector_store %arg4[%c7_195, %c0_196, %c0_197], %372 {strides = array<i32>} : memref<8x8x128xf32, #tpu.memory_space<vmem>>, vector<1x8x128xf32>,
    } else {
    }
    %c1_i32 = arith.constant 1 : i32
    %10 = arith.cmpi eq, %arg0, %c1_i32 : i32
    %11 = arith.extui %10 : i1 to i32
    %c0_i32_10 = arith.constant 0 : i32
    %12 = arith.cmpi ne, %11, %c0_i32_10 : i32
    scf.if %12 {
      %c7_i32 = arith.constant 7 : i32
      %13 = vector.broadcast %c7_i32 : i32 to vector<8x128xi32>
      %14 = arith.cmpi sgt, %4, %13 : vector<8x128xi32>
      %c0_11 = arith.constant 0 : index
      %c7 = arith.constant 7 : index
      %c0_12 = arith.constant 0 : index
      %c0_13 = arith.constant 0 : index
      %15 = vector.load %arg1[%c0_11, %c7, %c0_12, %c0_13] : memref<1x8x8x512xf32, #tpu.memory_space<vmem>>, vector<1x1x8x512xf32>
      %16 = vector.shape_cast %15 : vector<1x1x8x512xf32> to vector<8x512xf32>
      %c0_14 = arith.constant 0 : index
      %c0_15 = arith.constant 0 : index
      %17 = vector.load %arg5[%c0_14, %c0_15] : memref<8x128xf32, #tpu.memory_space<vmem>>, vector<8x128xf32>
      %18 = arith.truncf %17 : vector<8x128xf32> to vector<8x128xbf16>
      %cst_16 = arith.constant dense<0.000000e+00> : vector<8x512xf32>
      %19 = tpu.matmul %18, %6, %cst_16 {dimension_numbers = #tpu.dot_dimension_numbers<[1], [0], [0], [1], [0, 0, 1, 1], [], []>} : vector<8x128xbf16>, vector<128x512xbf16>, vector<8x512xf32> -> vector<8x512xf32>
      %20 = arith.addf %16, %19 : vector<8x512xf32>
      %21 = vector.extract_strided_slice %20 {offsets = [0, 0], sizes = [8, 128], strides = [1, 1]} : vector<8x512xf32> to vector<8x128xf32>
      %22 = arith.negf %21 : vector<8x128xf32>
      %23 = math.exp %22 : vector<8x128xf32>
      %cst_17 = arith.constant 1.000000e+00 : f32
      %24 = vector.broadcast %cst_17 : f32 to vector<8x128xf32>
      %25 = arith.addf %24, %23 : vector<8x128xf32>
      %26 = arith.divf %24, %25 : vector<8x128xf32>
      %27 = vector.extract_strided_slice %20 {offsets = [0, 128], sizes = [8, 128], strides = [1, 1]} : vector<8x512xf32> to vector<8x128xf32>
      %28 = arith.negf %27 : vector<8x128xf32>
      %29 = math.exp %28 : vector<8x128xf32>
      %cst_18 = arith.constant 1.000000e+00 : f32
      %30 = vector.broadcast %cst_18 : f32 to vector<8x128xf32>
      %31 = arith.addf %30, %29 : vector<8x128xf32>
      %32 = arith.divf %30, %31 : vector<8x128xf32>
      %33 = vector.extract_strided_slice %20 {offsets = [0, 256], sizes = [8, 128], strides = [1, 1]} : vector<8x512xf32> to vector<8x128xf32>
      %34 = math.tanh %33 : vector<8x128xf32>
      %35 = vector.extract_strided_slice %20 {offsets = [0, 384], sizes = [8, 128], strides = [1, 1]} : vector<8x512xf32> to vector<8x128xf32>
      %36 = arith.negf %35 : vector<8x128xf32>
      %37 = math.exp %36 : vector<8x128xf32>
      %cst_19 = arith.constant 1.000000e+00 : f32
      %38 = vector.broadcast %cst_19 : f32 to vector<8x128xf32>
      %39 = arith.addf %38, %37 : vector<8x128xf32>
      %40 = arith.divf %38, %39 : vector<8x128xf32>
      %c0_20 = arith.constant 0 : index
      %c0_21 = arith.constant 0 : index
      %41 = vector.load %arg6[%c0_20, %c0_21] : memref<8x128xf32, #tpu.memory_space<vmem>>, vector<8x128xf32>
      %42 = arith.mulf %32, %41 : vector<8x128xf32>
      %43 = arith.mulf %26, %34 : vector<8x128xf32>
      %44 = arith.addf %42, %43 : vector<8x128xf32>
      %45 = math.tanh %44 : vector<8x128xf32>
      %46 = arith.mulf %40, %45 : vector<8x128xf32>
      %c0_22 = arith.constant 0 : index
      %c0_23 = arith.constant 0 : index
      %47 = vector.load %arg6[%c0_22, %c0_23] : memref<8x128xf32, #tpu.memory_space<vmem>>, vector<8x128xf32>
      %48 = arith.select %14, %44, %47 : vector<8x128xi1>, vector<8x128xf32>
      %c0_24 = arith.constant 0 : index
      %c0_25 = arith.constant 0 : index
      %49 = vector.load %arg6[%c0_24, %c0_25] : memref<8x128xf32, #tpu.memory_space<vmem>>, vector<8x128xf32>
      tpu.vector_store %arg6[%c0_24, %c0_25], %48 {strides = array<i32>} : memref<8x128xf32, #tpu.memory_space<vmem>>, vector<8x128xf32>,
      %c0_26 = arith.constant 0 : index
      %c0_27 = arith.constant 0 : index
      %50 = vector.load %arg5[%c0_26, %c0_27] : memref<8x128xf32, #tpu.memory_space<vmem>>, vector<8x128xf32>
      %51 = arith.select %14, %46, %50 : vector<8x128xi1>, vector<8x128xf32>
      %c0_28 = arith.constant 0 : index
      %c0_29 = arith.constant 0 : index
      %52 = vector.load %arg5[%c0_28, %c0_29] : memref<8x128xf32, #tpu.memory_space<vmem>>, vector<8x128xf32>
      tpu.vector_store %arg5[%c0_28, %c0_29], %51 {strides = array<i32>} : memref<8x128xf32, #tpu.memory_space<vmem>>, vector<8x128xf32>,
      %cst_30 = arith.constant 0.000000e+00 : f32
      %53 = vector.broadcast %cst_30 : f32 to vector<8x128xf32>
      %54 = arith.select %14, %46, %53 : vector<8x128xi1>, vector<8x128xf32>
      %c7_31 = arith.constant 7 : index
      %c0_32 = arith.constant 0 : index
      %c0_33 = arith.constant 0 : index
      %55 = vector.load %arg4[%c7_31, %c0_32, %c0_33] : memref<8x8x128xf32, #tpu.memory_space<vmem>>, vector<1x8x128xf32>
      %56 = vector.shape_cast %55 : vector<1x8x128xf32> to vector<8x128xf32>
      %57 = vector.shape_cast %54 : vector<8x128xf32> to vector<1x8x128xf32>
      tpu.vector_store %arg4[%c7_31, %c0_32, %c0_33], %57 {strides = array<i32>} : memref<8x8x128xf32, #tpu.memory_space<vmem>>, vector<1x8x128xf32>,
      %c6_i32 = arith.constant 6 : i32
      %58 = vector.broadcast %c6_i32 : i32 to vector<8x128xi32>
      %59 = arith.cmpi sgt, %4, %58 : vector<8x128xi32>
      %c0_34 = arith.constant 0 : index
      %c6 = arith.constant 6 : index
      %c0_35 = arith.constant 0 : index
      %c0_36 = arith.constant 0 : index
      %60 = vector.load %arg1[%c0_34, %c6, %c0_35, %c0_36] : memref<1x8x8x512xf32, #tpu.memory_space<vmem>>, vector<1x1x8x512xf32>
      %61 = vector.shape_cast %60 : vector<1x1x8x512xf32> to vector<8x512xf32>
      %c0_37 = arith.constant 0 : index
      %c0_38 = arith.constant 0 : index
      %62 = vector.load %arg5[%c0_37, %c0_38] : memref<8x128xf32, #tpu.memory_space<vmem>>, vector<8x128xf32>
      %63 = arith.truncf %62 : vector<8x128xf32> to vector<8x128xbf16>
      %cst_39 = arith.constant dense<0.000000e+00> : vector<8x512xf32>
      %64 = tpu.matmul %63, %6, %cst_39 {dimension_numbers = #tpu.dot_dimension_numbers<[1], [0], [0], [1], [0, 0, 1, 1], [], []>} : vector<8x128xbf16>, vector<128x512xbf16>, vector<8x512xf32> -> vector<8x512xf32>
      %65 = arith.addf %61, %64 : vector<8x512xf32>
      %66 = vector.extract_strided_slice %65 {offsets = [0, 0], sizes = [8, 128], strides = [1, 1]} : vector<8x512xf32> to vector<8x128xf32>
      %67 = arith.negf %66 : vector<8x128xf32>
      %68 = math.exp %67 : vector<8x128xf32>
      %cst_40 = arith.constant 1.000000e+00 : f32
      %69 = vector.broadcast %cst_40 : f32 to vector<8x128xf32>
      %70 = arith.addf %69, %68 : vector<8x128xf32>
      %71 = arith.divf %69, %70 : vector<8x128xf32>
      %72 = vector.extract_strided_slice %65 {offsets = [0, 128], sizes = [8, 128], strides = [1, 1]} : vector<8x512xf32> to vector<8x128xf32>
      %73 = arith.negf %72 : vector<8x128xf32>
      %74 = math.exp %73 : vector<8x128xf32>
      %cst_41 = arith.constant 1.000000e+00 : f32
      %75 = vector.broadcast %cst_41 : f32 to vector<8x128xf32>
      %76 = arith.addf %75, %74 : vector<8x128xf32>
      %77 = arith.divf %75, %76 : vector<8x128xf32>
      %78 = vector.extract_strided_slice %65 {offsets = [0, 256], sizes = [8, 128], strides = [1, 1]} : vector<8x512xf32> to vector<8x128xf32>
      %79 = math.tanh %78 : vector<8x128xf32>
      %80 = vector.extract_strided_slice %65 {offsets = [0, 384], sizes = [8, 128], strides = [1, 1]} : vector<8x512xf32> to vector<8x128xf32>
      %81 = arith.negf %80 : vector<8x128xf32>
      %82 = math.exp %81 : vector<8x128xf32>
      %cst_42 = arith.constant 1.000000e+00 : f32
      %83 = vector.broadcast %cst_42 : f32 to vector<8x128xf32>
      %84 = arith.addf %83, %82 : vector<8x128xf32>
      %85 = arith.divf %83, %84 : vector<8x128xf32>
      %c0_43 = arith.constant 0 : index
      %c0_44 = arith.constant 0 : index
      %86 = vector.load %arg6[%c0_43, %c0_44] : memref<8x128xf32, #tpu.memory_space<vmem>>, vector<8x128xf32>
      %87 = arith.mulf %77, %86 : vector<8x128xf32>
      %88 = arith.mulf %71, %79 : vector<8x128xf32>
      %89 = arith.addf %87, %88 : vector<8x128xf32>
      %90 = math.tanh %89 : vector<8x128xf32>
      %91 = arith.mulf %85, %90 : vector<8x128xf32>
      %c0_45 = arith.constant 0 : index
      %c0_46 = arith.constant 0 : index
      %92 = vector.load %arg6[%c0_45, %c0_46] : memref<8x128xf32, #tpu.memory_space<vmem>>, vector<8x128xf32>
      %93 = arith.select %59, %89, %92 : vector<8x128xi1>, vector<8x128xf32>
      %c0_47 = arith.constant 0 : index
      %c0_48 = arith.constant 0 : index
      %94 = vector.load %arg6[%c0_47, %c0_48] : memref<8x128xf32, #tpu.memory_space<vmem>>, vector<8x128xf32>
      tpu.vector_store %arg6[%c0_47, %c0_48], %93 {strides = array<i32>} : memref<8x128xf32, #tpu.memory_space<vmem>>, vector<8x128xf32>,
      %c0_49 = arith.constant 0 : index
      %c0_50 = arith.constant 0 : index
      %95 = vector.load %arg5[%c0_49, %c0_50] : memref<8x128xf32, #tpu.memory_space<vmem>>, vector<8x128xf32>
      %96 = arith.select %59, %91, %95 : vector<8x128xi1>, vector<8x128xf32>
      %c0_51 = arith.constant 0 : index
      %c0_52 = arith.constant 0 : index
      %97 = vector.load %arg5[%c0_51, %c0_52] : memref<8x128xf32, #tpu.memory_space<vmem>>, vector<8x128xf32>
      tpu.vector_store %arg5[%c0_51, %c0_52], %96 {strides = array<i32>} : memref<8x128xf32, #tpu.memory_space<vmem>>, vector<8x128xf32>,
      %cst_53 = arith.constant 0.000000e+00 : f32
      %98 = vector.broadcast %cst_53 : f32 to vector<8x128xf32>
      %99 = arith.select %59, %91, %98 : vector<8x128xi1>, vector<8x128xf32>
      %c6_54 = arith.constant 6 : index
      %c0_55 = arith.constant 0 : index
      %c0_56 = arith.constant 0 : index
      %100 = vector.load %arg4[%c6_54, %c0_55, %c0_56] : memref<8x8x128xf32, #tpu.memory_space<vmem>>, vector<1x8x128xf32>
      %101 = vector.shape_cast %100 : vector<1x8x128xf32> to vector<8x128xf32>
      %102 = vector.shape_cast %99 : vector<8x128xf32> to vector<1x8x128xf32>
      tpu.vector_store %arg4[%c6_54, %c0_55, %c0_56], %102 {strides = array<i32>} : memref<8x8x128xf32, #tpu.memory_space<vmem>>, vector<1x8x128xf32>,
      %c5_i32 = arith.constant 5 : i32
      %103 = vector.broadcast %c5_i32 : i32 to vector<8x128xi32>
      %104 = arith.cmpi sgt, %4, %103 : vector<8x128xi32>
      %c0_57 = arith.constant 0 : index
      %c5 = arith.constant 5 : index
      %c0_58 = arith.constant 0 : index
      %c0_59 = arith.constant 0 : index
      %105 = vector.load %arg1[%c0_57, %c5, %c0_58, %c0_59] : memref<1x8x8x512xf32, #tpu.memory_space<vmem>>, vector<1x1x8x512xf32>
      %106 = vector.shape_cast %105 : vector<1x1x8x512xf32> to vector<8x512xf32>
      %c0_60 = arith.constant 0 : index
      %c0_61 = arith.constant 0 : index
      %107 = vector.load %arg5[%c0_60, %c0_61] : memref<8x128xf32, #tpu.memory_space<vmem>>, vector<8x128xf32>
      %108 = arith.truncf %107 : vector<8x128xf32> to vector<8x128xbf16>
      %cst_62 = arith.constant dense<0.000000e+00> : vector<8x512xf32>
      %109 = tpu.matmul %108, %6, %cst_62 {dimension_numbers = #tpu.dot_dimension_numbers<[1], [0], [0], [1], [0, 0, 1, 1], [], []>} : vector<8x128xbf16>, vector<128x512xbf16>, vector<8x512xf32> -> vector<8x512xf32>
      %110 = arith.addf %106, %109 : vector<8x512xf32>
      %111 = vector.extract_strided_slice %110 {offsets = [0, 0], sizes = [8, 128], strides = [1, 1]} : vector<8x512xf32> to vector<8x128xf32>
      %112 = arith.negf %111 : vector<8x128xf32>
      %113 = math.exp %112 : vector<8x128xf32>
      %cst_63 = arith.constant 1.000000e+00 : f32
      %114 = vector.broadcast %cst_63 : f32 to vector<8x128xf32>
      %115 = arith.addf %114, %113 : vector<8x128xf32>
      %116 = arith.divf %114, %115 : vector<8x128xf32>
      %117 = vector.extract_strided_slice %110 {offsets = [0, 128], sizes = [8, 128], strides = [1, 1]} : vector<8x512xf32> to vector<8x128xf32>
      %118 = arith.negf %117 : vector<8x128xf32>
      %119 = math.exp %118 : vector<8x128xf32>
      %cst_64 = arith.constant 1.000000e+00 : f32
      %120 = vector.broadcast %cst_64 : f32 to vector<8x128xf32>
      %121 = arith.addf %120, %119 : vector<8x128xf32>
      %122 = arith.divf %120, %121 : vector<8x128xf32>
      %123 = vector.extract_strided_slice %110 {offsets = [0, 256], sizes = [8, 128], strides = [1, 1]} : vector<8x512xf32> to vector<8x128xf32>
      %124 = math.tanh %123 : vector<8x128xf32>
      %125 = vector.extract_strided_slice %110 {offsets = [0, 384], sizes = [8, 128], strides = [1, 1]} : vector<8x512xf32> to vector<8x128xf32>
      %126 = arith.negf %125 : vector<8x128xf32>
      %127 = math.exp %126 : vector<8x128xf32>
      %cst_65 = arith.constant 1.000000e+00 : f32
      %128 = vector.broadcast %cst_65 : f32 to vector<8x128xf32>
      %129 = arith.addf %128, %127 : vector<8x128xf32>
      %130 = arith.divf %128, %129 : vector<8x128xf32>
      %c0_66 = arith.constant 0 : index
      %c0_67 = arith.constant 0 : index
      %131 = vector.load %arg6[%c0_66, %c0_67] : memref<8x128xf32, #tpu.memory_space<vmem>>, vector<8x128xf32>
      %132 = arith.mulf %122, %131 : vector<8x128xf32>
      %133 = arith.mulf %116, %124 : vector<8x128xf32>
      %134 = arith.addf %132, %133 : vector<8x128xf32>
      %135 = math.tanh %134 : vector<8x128xf32>
      %136 = arith.mulf %130, %135 : vector<8x128xf32>
      %c0_68 = arith.constant 0 : index
      %c0_69 = arith.constant 0 : index
      %137 = vector.load %arg6[%c0_68, %c0_69] : memref<8x128xf32, #tpu.memory_space<vmem>>, vector<8x128xf32>
      %138 = arith.select %104, %134, %137 : vector<8x128xi1>, vector<8x128xf32>
      %c0_70 = arith.constant 0 : index
      %c0_71 = arith.constant 0 : index
      %139 = vector.load %arg6[%c0_70, %c0_71] : memref<8x128xf32, #tpu.memory_space<vmem>>, vector<8x128xf32>
      tpu.vector_store %arg6[%c0_70, %c0_71], %138 {strides = array<i32>} : memref<8x128xf32, #tpu.memory_space<vmem>>, vector<8x128xf32>,
      %c0_72 = arith.constant 0 : index
      %c0_73 = arith.constant 0 : index
      %140 = vector.load %arg5[%c0_72, %c0_73] : memref<8x128xf32, #tpu.memory_space<vmem>>, vector<8x128xf32>
      %141 = arith.select %104, %136, %140 : vector<8x128xi1>, vector<8x128xf32>
      %c0_74 = arith.constant 0 : index
      %c0_75 = arith.constant 0 : index
      %142 = vector.load %arg5[%c0_74, %c0_75] : memref<8x128xf32, #tpu.memory_space<vmem>>, vector<8x128xf32>
      tpu.vector_store %arg5[%c0_74, %c0_75], %141 {strides = array<i32>} : memref<8x128xf32, #tpu.memory_space<vmem>>, vector<8x128xf32>,
      %cst_76 = arith.constant 0.000000e+00 : f32
      %143 = vector.broadcast %cst_76 : f32 to vector<8x128xf32>
      %144 = arith.select %104, %136, %143 : vector<8x128xi1>, vector<8x128xf32>
      %c5_77 = arith.constant 5 : index
      %c0_78 = arith.constant 0 : index
      %c0_79 = arith.constant 0 : index
      %145 = vector.load %arg4[%c5_77, %c0_78, %c0_79] : memref<8x8x128xf32, #tpu.memory_space<vmem>>, vector<1x8x128xf32>
      %146 = vector.shape_cast %145 : vector<1x8x128xf32> to vector<8x128xf32>
      %147 = vector.shape_cast %144 : vector<8x128xf32> to vector<1x8x128xf32>
      tpu.vector_store %arg4[%c5_77, %c0_78, %c0_79], %147 {strides = array<i32>} : memref<8x8x128xf32, #tpu.memory_space<vmem>>, vector<1x8x128xf32>,
      %c4_i32 = arith.constant 4 : i32
      %148 = vector.broadcast %c4_i32 : i32 to vector<8x128xi32>
      %149 = arith.cmpi sgt, %4, %148 : vector<8x128xi32>
      %c0_80 = arith.constant 0 : index
      %c4 = arith.constant 4 : index
      %c0_81 = arith.constant 0 : index
      %c0_82 = arith.constant 0 : index
      %150 = vector.load %arg1[%c0_80, %c4, %c0_81, %c0_82] : memref<1x8x8x512xf32, #tpu.memory_space<vmem>>, vector<1x1x8x512xf32>
      %151 = vector.shape_cast %150 : vector<1x1x8x512xf32> to vector<8x512xf32>
      %c0_83 = arith.constant 0 : index
      %c0_84 = arith.constant 0 : index
      %152 = vector.load %arg5[%c0_83, %c0_84] : memref<8x128xf32, #tpu.memory_space<vmem>>, vector<8x128xf32>
      %153 = arith.truncf %152 : vector<8x128xf32> to vector<8x128xbf16>
      %cst_85 = arith.constant dense<0.000000e+00> : vector<8x512xf32>
      %154 = tpu.matmul %153, %6, %cst_85 {dimension_numbers = #tpu.dot_dimension_numbers<[1], [0], [0], [1], [0, 0, 1, 1], [], []>} : vector<8x128xbf16>, vector<128x512xbf16>, vector<8x512xf32> -> vector<8x512xf32>
      %155 = arith.addf %151, %154 : vector<8x512xf32>
      %156 = vector.extract_strided_slice %155 {offsets = [0, 0], sizes = [8, 128], strides = [1, 1]} : vector<8x512xf32> to vector<8x128xf32>
      %157 = arith.negf %156 : vector<8x128xf32>
      %158 = math.exp %157 : vector<8x128xf32>
      %cst_86 = arith.constant 1.000000e+00 : f32
      %159 = vector.broadcast %cst_86 : f32 to vector<8x128xf32>
      %160 = arith.addf %159, %158 : vector<8x128xf32>
      %161 = arith.divf %159, %160 : vector<8x128xf32>
      %162 = vector.extract_strided_slice %155 {offsets = [0, 128], sizes = [8, 128], strides = [1, 1]} : vector<8x512xf32> to vector<8x128xf32>
      %163 = arith.negf %162 : vector<8x128xf32>
      %164 = math.exp %163 : vector<8x128xf32>
      %cst_87 = arith.constant 1.000000e+00 : f32
      %165 = vector.broadcast %cst_87 : f32 to vector<8x128xf32>
      %166 = arith.addf %165, %164 : vector<8x128xf32>
      %167 = arith.divf %165, %166 : vector<8x128xf32>
      %168 = vector.extract_strided_slice %155 {offsets = [0, 256], sizes = [8, 128], strides = [1, 1]} : vector<8x512xf32> to vector<8x128xf32>
      %169 = math.tanh %168 : vector<8x128xf32>
      %170 = vector.extract_strided_slice %155 {offsets = [0, 384], sizes = [8, 128], strides = [1, 1]} : vector<8x512xf32> to vector<8x128xf32>
      %171 = arith.negf %170 : vector<8x128xf32>
      %172 = math.exp %171 : vector<8x128xf32>
      %cst_88 = arith.constant 1.000000e+00 : f32
      %173 = vector.broadcast %cst_88 : f32 to vector<8x128xf32>
      %174 = arith.addf %173, %172 : vector<8x128xf32>
      %175 = arith.divf %173, %174 : vector<8x128xf32>
      %c0_89 = arith.constant 0 : index
      %c0_90 = arith.constant 0 : index
      %176 = vector.load %arg6[%c0_89, %c0_90] : memref<8x128xf32, #tpu.memory_space<vmem>>, vector<8x128xf32>
      %177 = arith.mulf %167, %176 : vector<8x128xf32>
      %178 = arith.mulf %161, %169 : vector<8x128xf32>
      %179 = arith.addf %177, %178 : vector<8x128xf32>
      %180 = math.tanh %179 : vector<8x128xf32>
      %181 = arith.mulf %175, %180 : vector<8x128xf32>
      %c0_91 = arith.constant 0 : index
      %c0_92 = arith.constant 0 : index
      %182 = vector.load %arg6[%c0_91, %c0_92] : memref<8x128xf32, #tpu.memory_space<vmem>>, vector<8x128xf32>
      %183 = arith.select %149, %179, %182 : vector<8x128xi1>, vector<8x128xf32>
      %c0_93 = arith.constant 0 : index
      %c0_94 = arith.constant 0 : index
      %184 = vector.load %arg6[%c0_93, %c0_94] : memref<8x128xf32, #tpu.memory_space<vmem>>, vector<8x128xf32>
      tpu.vector_store %arg6[%c0_93, %c0_94], %183 {strides = array<i32>} : memref<8x128xf32, #tpu.memory_space<vmem>>, vector<8x128xf32>,
      %c0_95 = arith.constant 0 : index
      %c0_96 = arith.constant 0 : index
      %185 = vector.load %arg5[%c0_95, %c0_96] : memref<8x128xf32, #tpu.memory_space<vmem>>, vector<8x128xf32>
      %186 = arith.select %149, %181, %185 : vector<8x128xi1>, vector<8x128xf32>
      %c0_97 = arith.constant 0 : index
      %c0_98 = arith.constant 0 : index
      %187 = vector.load %arg5[%c0_97, %c0_98] : memref<8x128xf32, #tpu.memory_space<vmem>>, vector<8x128xf32>
      tpu.vector_store %arg5[%c0_97, %c0_98], %186 {strides = array<i32>} : memref<8x128xf32, #tpu.memory_space<vmem>>, vector<8x128xf32>,
      %cst_99 = arith.constant 0.000000e+00 : f32
      %188 = vector.broadcast %cst_99 : f32 to vector<8x128xf32>
      %189 = arith.select %149, %181, %188 : vector<8x128xi1>, vector<8x128xf32>
      %c4_100 = arith.constant 4 : index
      %c0_101 = arith.constant 0 : index
      %c0_102 = arith.constant 0 : index
      %190 = vector.load %arg4[%c4_100, %c0_101, %c0_102] : memref<8x8x128xf32, #tpu.memory_space<vmem>>, vector<1x8x128xf32>
      %191 = vector.shape_cast %190 : vector<1x8x128xf32> to vector<8x128xf32>
      %192 = vector.shape_cast %189 : vector<8x128xf32> to vector<1x8x128xf32>
      tpu.vector_store %arg4[%c4_100, %c0_101, %c0_102], %192 {strides = array<i32>} : memref<8x8x128xf32, #tpu.memory_space<vmem>>, vector<1x8x128xf32>,
      %c3_i32 = arith.constant 3 : i32
      %193 = vector.broadcast %c3_i32 : i32 to vector<8x128xi32>
      %194 = arith.cmpi sgt, %4, %193 : vector<8x128xi32>
      %c0_103 = arith.constant 0 : index
      %c3 = arith.constant 3 : index
      %c0_104 = arith.constant 0 : index
      %c0_105 = arith.constant 0 : index
      %195 = vector.load %arg1[%c0_103, %c3, %c0_104, %c0_105] : memref<1x8x8x512xf32, #tpu.memory_space<vmem>>, vector<1x1x8x512xf32>
      %196 = vector.shape_cast %195 : vector<1x1x8x512xf32> to vector<8x512xf32>
      %c0_106 = arith.constant 0 : index
      %c0_107 = arith.constant 0 : index
      %197 = vector.load %arg5[%c0_106, %c0_107] : memref<8x128xf32, #tpu.memory_space<vmem>>, vector<8x128xf32>
      %198 = arith.truncf %197 : vector<8x128xf32> to vector<8x128xbf16>
      %cst_108 = arith.constant dense<0.000000e+00> : vector<8x512xf32>
      %199 = tpu.matmul %198, %6, %cst_108 {dimension_numbers = #tpu.dot_dimension_numbers<[1], [0], [0], [1], [0, 0, 1, 1], [], []>} : vector<8x128xbf16>, vector<128x512xbf16>, vector<8x512xf32> -> vector<8x512xf32>
      %200 = arith.addf %196, %199 : vector<8x512xf32>
      %201 = vector.extract_strided_slice %200 {offsets = [0, 0], sizes = [8, 128], strides = [1, 1]} : vector<8x512xf32> to vector<8x128xf32>
      %202 = arith.negf %201 : vector<8x128xf32>
      %203 = math.exp %202 : vector<8x128xf32>
      %cst_109 = arith.constant 1.000000e+00 : f32
      %204 = vector.broadcast %cst_109 : f32 to vector<8x128xf32>
      %205 = arith.addf %204, %203 : vector<8x128xf32>
      %206 = arith.divf %204, %205 : vector<8x128xf32>
      %207 = vector.extract_strided_slice %200 {offsets = [0, 128], sizes = [8, 128], strides = [1, 1]} : vector<8x512xf32> to vector<8x128xf32>
      %208 = arith.negf %207 : vector<8x128xf32>
      %209 = math.exp %208 : vector<8x128xf32>
      %cst_110 = arith.constant 1.000000e+00 : f32
      %210 = vector.broadcast %cst_110 : f32 to vector<8x128xf32>
      %211 = arith.addf %210, %209 : vector<8x128xf32>
      %212 = arith.divf %210, %211 : vector<8x128xf32>
      %213 = vector.extract_strided_slice %200 {offsets = [0, 256], sizes = [8, 128], strides = [1, 1]} : vector<8x512xf32> to vector<8x128xf32>
      %214 = math.tanh %213 : vector<8x128xf32>
      %215 = vector.extract_strided_slice %200 {offsets = [0, 384], sizes = [8, 128], strides = [1, 1]} : vector<8x512xf32> to vector<8x128xf32>
      %216 = arith.negf %215 : vector<8x128xf32>
      %217 = math.exp %216 : vector<8x128xf32>
      %cst_111 = arith.constant 1.000000e+00 : f32
      %218 = vector.broadcast %cst_111 : f32 to vector<8x128xf32>
      %219 = arith.addf %218, %217 : vector<8x128xf32>
      %220 = arith.divf %218, %219 : vector<8x128xf32>
      %c0_112 = arith.constant 0 : index
      %c0_113 = arith.constant 0 : index
      %221 = vector.load %arg6[%c0_112, %c0_113] : memref<8x128xf32, #tpu.memory_space<vmem>>, vector<8x128xf32>
      %222 = arith.mulf %212, %221 : vector<8x128xf32>
      %223 = arith.mulf %206, %214 : vector<8x128xf32>
      %224 = arith.addf %222, %223 : vector<8x128xf32>
      %225 = math.tanh %224 : vector<8x128xf32>
      %226 = arith.mulf %220, %225 : vector<8x128xf32>
      %c0_114 = arith.constant 0 : index
      %c0_115 = arith.constant 0 : index
      %227 = vector.load %arg6[%c0_114, %c0_115] : memref<8x128xf32, #tpu.memory_space<vmem>>, vector<8x128xf32>
      %228 = arith.select %194, %224, %227 : vector<8x128xi1>, vector<8x128xf32>
      %c0_116 = arith.constant 0 : index
      %c0_117 = arith.constant 0 : index
      %229 = vector.load %arg6[%c0_116, %c0_117] : memref<8x128xf32, #tpu.memory_space<vmem>>, vector<8x128xf32>
      tpu.vector_store %arg6[%c0_116, %c0_117], %228 {strides = array<i32>} : memref<8x128xf32, #tpu.memory_space<vmem>>, vector<8x128xf32>,
      %c0_118 = arith.constant 0 : index
      %c0_119 = arith.constant 0 : index
      %230 = vector.load %arg5[%c0_118, %c0_119] : memref<8x128xf32, #tpu.memory_space<vmem>>, vector<8x128xf32>
      %231 = arith.select %194, %226, %230 : vector<8x128xi1>, vector<8x128xf32>
      %c0_120 = arith.constant 0 : index
      %c0_121 = arith.constant 0 : index
      %232 = vector.load %arg5[%c0_120, %c0_121] : memref<8x128xf32, #tpu.memory_space<vmem>>, vector<8x128xf32>
      tpu.vector_store %arg5[%c0_120, %c0_121], %231 {strides = array<i32>} : memref<8x128xf32, #tpu.memory_space<vmem>>, vector<8x128xf32>,
      %cst_122 = arith.constant 0.000000e+00 : f32
      %233 = vector.broadcast %cst_122 : f32 to vector<8x128xf32>
      %234 = arith.select %194, %226, %233 : vector<8x128xi1>, vector<8x128xf32>
      %c3_123 = arith.constant 3 : index
      %c0_124 = arith.constant 0 : index
      %c0_125 = arith.constant 0 : index
      %235 = vector.load %arg4[%c3_123, %c0_124, %c0_125] : memref<8x8x128xf32, #tpu.memory_space<vmem>>, vector<1x8x128xf32>
      %236 = vector.shape_cast %235 : vector<1x8x128xf32> to vector<8x128xf32>
      %237 = vector.shape_cast %234 : vector<8x128xf32> to vector<1x8x128xf32>
      tpu.vector_store %arg4[%c3_123, %c0_124, %c0_125], %237 {strides = array<i32>} : memref<8x8x128xf32, #tpu.memory_space<vmem>>, vector<1x8x128xf32>,
      %c2_i32 = arith.constant 2 : i32
      %238 = vector.broadcast %c2_i32 : i32 to vector<8x128xi32>
      %239 = arith.cmpi sgt, %4, %238 : vector<8x128xi32>
      %c0_126 = arith.constant 0 : index
      %c2 = arith.constant 2 : index
      %c0_127 = arith.constant 0 : index
      %c0_128 = arith.constant 0 : index
      %240 = vector.load %arg1[%c0_126, %c2, %c0_127, %c0_128] : memref<1x8x8x512xf32, #tpu.memory_space<vmem>>, vector<1x1x8x512xf32>
      %241 = vector.shape_cast %240 : vector<1x1x8x512xf32> to vector<8x512xf32>
      %c0_129 = arith.constant 0 : index
      %c0_130 = arith.constant 0 : index
      %242 = vector.load %arg5[%c0_129, %c0_130] : memref<8x128xf32, #tpu.memory_space<vmem>>, vector<8x128xf32>
      %243 = arith.truncf %242 : vector<8x128xf32> to vector<8x128xbf16>
      %cst_131 = arith.constant dense<0.000000e+00> : vector<8x512xf32>
      %244 = tpu.matmul %243, %6, %cst_131 {dimension_numbers = #tpu.dot_dimension_numbers<[1], [0], [0], [1], [0, 0, 1, 1], [], []>} : vector<8x128xbf16>, vector<128x512xbf16>, vector<8x512xf32> -> vector<8x512xf32>
      %245 = arith.addf %241, %244 : vector<8x512xf32>
      %246 = vector.extract_strided_slice %245 {offsets = [0, 0], sizes = [8, 128], strides = [1, 1]} : vector<8x512xf32> to vector<8x128xf32>
      %247 = arith.negf %246 : vector<8x128xf32>
      %248 = math.exp %247 : vector<8x128xf32>
      %cst_132 = arith.constant 1.000000e+00 : f32
      %249 = vector.broadcast %cst_132 : f32 to vector<8x128xf32>
      %250 = arith.addf %249, %248 : vector<8x128xf32>
      %251 = arith.divf %249, %250 : vector<8x128xf32>
      %252 = vector.extract_strided_slice %245 {offsets = [0, 128], sizes = [8, 128], strides = [1, 1]} : vector<8x512xf32> to vector<8x128xf32>
      %253 = arith.negf %252 : vector<8x128xf32>
      %254 = math.exp %253 : vector<8x128xf32>
      %cst_133 = arith.constant 1.000000e+00 : f32
      %255 = vector.broadcast %cst_133 : f32 to vector<8x128xf32>
      %256 = arith.addf %255, %254 : vector<8x128xf32>
      %257 = arith.divf %255, %256 : vector<8x128xf32>
      %258 = vector.extract_strided_slice %245 {offsets = [0, 256], sizes = [8, 128], strides = [1, 1]} : vector<8x512xf32> to vector<8x128xf32>
      %259 = math.tanh %258 : vector<8x128xf32>
      %260 = vector.extract_strided_slice %245 {offsets = [0, 384], sizes = [8, 128], strides = [1, 1]} : vector<8x512xf32> to vector<8x128xf32>
      %261 = arith.negf %260 : vector<8x128xf32>
      %262 = math.exp %261 : vector<8x128xf32>
      %cst_134 = arith.constant 1.000000e+00 : f32
      %263 = vector.broadcast %cst_134 : f32 to vector<8x128xf32>
      %264 = arith.addf %263, %262 : vector<8x128xf32>
      %265 = arith.divf %263, %264 : vector<8x128xf32>
      %c0_135 = arith.constant 0 : index
      %c0_136 = arith.constant 0 : index
      %266 = vector.load %arg6[%c0_135, %c0_136] : memref<8x128xf32, #tpu.memory_space<vmem>>, vector<8x128xf32>
      %267 = arith.mulf %257, %266 : vector<8x128xf32>
      %268 = arith.mulf %251, %259 : vector<8x128xf32>
      %269 = arith.addf %267, %268 : vector<8x128xf32>
      %270 = math.tanh %269 : vector<8x128xf32>
      %271 = arith.mulf %265, %270 : vector<8x128xf32>
      %c0_137 = arith.constant 0 : index
      %c0_138 = arith.constant 0 : index
      %272 = vector.load %arg6[%c0_137, %c0_138] : memref<8x128xf32, #tpu.memory_space<vmem>>, vector<8x128xf32>
      %273 = arith.select %239, %269, %272 : vector<8x128xi1>, vector<8x128xf32>
      %c0_139 = arith.constant 0 : index
      %c0_140 = arith.constant 0 : index
      %274 = vector.load %arg6[%c0_139, %c0_140] : memref<8x128xf32, #tpu.memory_space<vmem>>, vector<8x128xf32>
      tpu.vector_store %arg6[%c0_139, %c0_140], %273 {strides = array<i32>} : memref<8x128xf32, #tpu.memory_space<vmem>>, vector<8x128xf32>,
      %c0_141 = arith.constant 0 : index
      %c0_142 = arith.constant 0 : index
      %275 = vector.load %arg5[%c0_141, %c0_142] : memref<8x128xf32, #tpu.memory_space<vmem>>, vector<8x128xf32>
      %276 = arith.select %239, %271, %275 : vector<8x128xi1>, vector<8x128xf32>
      %c0_143 = arith.constant 0 : index
      %c0_144 = arith.constant 0 : index
      %277 = vector.load %arg5[%c0_143, %c0_144] : memref<8x128xf32, #tpu.memory_space<vmem>>, vector<8x128xf32>
      tpu.vector_store %arg5[%c0_143, %c0_144], %276 {strides = array<i32>} : memref<8x128xf32, #tpu.memory_space<vmem>>, vector<8x128xf32>,
      %cst_145 = arith.constant 0.000000e+00 : f32
      %278 = vector.broadcast %cst_145 : f32 to vector<8x128xf32>
      %279 = arith.select %239, %271, %278 : vector<8x128xi1>, vector<8x128xf32>
      %c2_146 = arith.constant 2 : index
      %c0_147 = arith.constant 0 : index
      %c0_148 = arith.constant 0 : index
      %280 = vector.load %arg4[%c2_146, %c0_147, %c0_148] : memref<8x8x128xf32, #tpu.memory_space<vmem>>, vector<1x8x128xf32>
      %281 = vector.shape_cast %280 : vector<1x8x128xf32> to vector<8x128xf32>
      %282 = vector.shape_cast %279 : vector<8x128xf32> to vector<1x8x128xf32>
      tpu.vector_store %arg4[%c2_146, %c0_147, %c0_148], %282 {strides = array<i32>} : memref<8x8x128xf32, #tpu.memory_space<vmem>>, vector<1x8x128xf32>,
      %c1_i32_149 = arith.constant 1 : i32
      %283 = vector.broadcast %c1_i32_149 : i32 to vector<8x128xi32>
      %284 = arith.cmpi sgt, %4, %283 : vector<8x128xi32>
      %c0_150 = arith.constant 0 : index
      %c1 = arith.constant 1 : index
      %c0_151 = arith.constant 0 : index
      %c0_152 = arith.constant 0 : index
      %285 = vector.load %arg1[%c0_150, %c1, %c0_151, %c0_152] : memref<1x8x8x512xf32, #tpu.memory_space<vmem>>, vector<1x1x8x512xf32>
      %286 = vector.shape_cast %285 : vector<1x1x8x512xf32> to vector<8x512xf32>
      %c0_153 = arith.constant 0 : index
      %c0_154 = arith.constant 0 : index
      %287 = vector.load %arg5[%c0_153, %c0_154] : memref<8x128xf32, #tpu.memory_space<vmem>>, vector<8x128xf32>
      %288 = arith.truncf %287 : vector<8x128xf32> to vector<8x128xbf16>
      %cst_155 = arith.constant dense<0.000000e+00> : vector<8x512xf32>
      %289 = tpu.matmul %288, %6, %cst_155 {dimension_numbers = #tpu.dot_dimension_numbers<[1], [0], [0], [1], [0, 0, 1, 1], [], []>} : vector<8x128xbf16>, vector<128x512xbf16>, vector<8x512xf32> -> vector<8x512xf32>
      %290 = arith.addf %286, %289 : vector<8x512xf32>
      %291 = vector.extract_strided_slice %290 {offsets = [0, 0], sizes = [8, 128], strides = [1, 1]} : vector<8x512xf32> to vector<8x128xf32>
      %292 = arith.negf %291 : vector<8x128xf32>
      %293 = math.exp %292 : vector<8x128xf32>
      %cst_156 = arith.constant 1.000000e+00 : f32
      %294 = vector.broadcast %cst_156 : f32 to vector<8x128xf32>
      %295 = arith.addf %294, %293 : vector<8x128xf32>
      %296 = arith.divf %294, %295 : vector<8x128xf32>
      %297 = vector.extract_strided_slice %290 {offsets = [0, 128], sizes = [8, 128], strides = [1, 1]} : vector<8x512xf32> to vector<8x128xf32>
      %298 = arith.negf %297 : vector<8x128xf32>
      %299 = math.exp %298 : vector<8x128xf32>
      %cst_157 = arith.constant 1.000000e+00 : f32
      %300 = vector.broadcast %cst_157 : f32 to vector<8x128xf32>
      %301 = arith.addf %300, %299 : vector<8x128xf32>
      %302 = arith.divf %300, %301 : vector<8x128xf32>
      %303 = vector.extract_strided_slice %290 {offsets = [0, 256], sizes = [8, 128], strides = [1, 1]} : vector<8x512xf32> to vector<8x128xf32>
      %304 = math.tanh %303 : vector<8x128xf32>
      %305 = vector.extract_strided_slice %290 {offsets = [0, 384], sizes = [8, 128], strides = [1, 1]} : vector<8x512xf32> to vector<8x128xf32>
      %306 = arith.negf %305 : vector<8x128xf32>
      %307 = math.exp %306 : vector<8x128xf32>
      %cst_158 = arith.constant 1.000000e+00 : f32
      %308 = vector.broadcast %cst_158 : f32 to vector<8x128xf32>
      %309 = arith.addf %308, %307 : vector<8x128xf32>
      %310 = arith.divf %308, %309 : vector<8x128xf32>
      %c0_159 = arith.constant 0 : index
      %c0_160 = arith.constant 0 : index
      %311 = vector.load %arg6[%c0_159, %c0_160] : memref<8x128xf32, #tpu.memory_space<vmem>>, vector<8x128xf32>
      %312 = arith.mulf %302, %311 : vector<8x128xf32>
      %313 = arith.mulf %296, %304 : vector<8x128xf32>
      %314 = arith.addf %312, %313 : vector<8x128xf32>
      %315 = math.tanh %314 : vector<8x128xf32>
      %316 = arith.mulf %310, %315 : vector<8x128xf32>
      %c0_161 = arith.constant 0 : index
      %c0_162 = arith.constant 0 : index
      %317 = vector.load %arg6[%c0_161, %c0_162] : memref<8x128xf32, #tpu.memory_space<vmem>>, vector<8x128xf32>
      %318 = arith.select %284, %314, %317 : vector<8x128xi1>, vector<8x128xf32>
      %c0_163 = arith.constant 0 : index
      %c0_164 = arith.constant 0 : index
      %319 = vector.load %arg6[%c0_163, %c0_164] : memref<8x128xf32, #tpu.memory_space<vmem>>, vector<8x128xf32>
      tpu.vector_store %arg6[%c0_163, %c0_164], %318 {strides = array<i32>} : memref<8x128xf32, #tpu.memory_space<vmem>>, vector<8x128xf32>,
      %c0_165 = arith.constant 0 : index
      %c0_166 = arith.constant 0 : index
      %320 = vector.load %arg5[%c0_165, %c0_166] : memref<8x128xf32, #tpu.memory_space<vmem>>, vector<8x128xf32>
      %321 = arith.select %284, %316, %320 : vector<8x128xi1>, vector<8x128xf32>
      %c0_167 = arith.constant 0 : index
      %c0_168 = arith.constant 0 : index
      %322 = vector.load %arg5[%c0_167, %c0_168] : memref<8x128xf32, #tpu.memory_space<vmem>>, vector<8x128xf32>
      tpu.vector_store %arg5[%c0_167, %c0_168], %321 {strides = array<i32>} : memref<8x128xf32, #tpu.memory_space<vmem>>, vector<8x128xf32>,
      %cst_169 = arith.constant 0.000000e+00 : f32
      %323 = vector.broadcast %cst_169 : f32 to vector<8x128xf32>
      %324 = arith.select %284, %316, %323 : vector<8x128xi1>, vector<8x128xf32>
      %c1_170 = arith.constant 1 : index
      %c0_171 = arith.constant 0 : index
      %c0_172 = arith.constant 0 : index
      %325 = vector.load %arg4[%c1_170, %c0_171, %c0_172] : memref<8x8x128xf32, #tpu.memory_space<vmem>>, vector<1x8x128xf32>
      %326 = vector.shape_cast %325 : vector<1x8x128xf32> to vector<8x128xf32>
      %327 = vector.shape_cast %324 : vector<8x128xf32> to vector<1x8x128xf32>
      tpu.vector_store %arg4[%c1_170, %c0_171, %c0_172], %327 {strides = array<i32>} : memref<8x8x128xf32, #tpu.memory_space<vmem>>, vector<1x8x128xf32>,
      %c0_i32_173 = arith.constant 0 : i32
      %328 = vector.broadcast %c0_i32_173 : i32 to vector<8x128xi32>
      %329 = arith.cmpi sgt, %4, %328 : vector<8x128xi32>
      %c0_174 = arith.constant 0 : index
      %c0_175 = arith.constant 0 : index
      %c0_176 = arith.constant 0 : index
      %c0_177 = arith.constant 0 : index
      %330 = vector.load %arg1[%c0_174, %c0_175, %c0_176, %c0_177] : memref<1x8x8x512xf32, #tpu.memory_space<vmem>>, vector<1x1x8x512xf32>
      %331 = vector.shape_cast %330 : vector<1x1x8x512xf32> to vector<8x512xf32>
      %c0_178 = arith.constant 0 : index
      %c0_179 = arith.constant 0 : index
      %332 = vector.load %arg5[%c0_178, %c0_179] : memref<8x128xf32, #tpu.memory_space<vmem>>, vector<8x128xf32>
      %333 = arith.truncf %332 : vector<8x128xf32> to vector<8x128xbf16>
      %cst_180 = arith.constant dense<0.000000e+00> : vector<8x512xf32>
      %334 = tpu.matmul %333, %6, %cst_180 {dimension_numbers = #tpu.dot_dimension_numbers<[1], [0], [0], [1], [0, 0, 1, 1], [], []>} : vector<8x128xbf16>, vector<128x512xbf16>, vector<8x512xf32> -> vector<8x512xf32>
      %335 = arith.addf %331, %334 : vector<8x512xf32>
      %336 = vector.extract_strided_slice %335 {offsets = [0, 0], sizes = [8, 128], strides = [1, 1]} : vector<8x512xf32> to vector<8x128xf32>
      %337 = arith.negf %336 : vector<8x128xf32>
      %338 = math.exp %337 : vector<8x128xf32>
      %cst_181 = arith.constant 1.000000e+00 : f32
      %339 = vector.broadcast %cst_181 : f32 to vector<8x128xf32>
      %340 = arith.addf %339, %338 : vector<8x128xf32>
      %341 = arith.divf %339, %340 : vector<8x128xf32>
      %342 = vector.extract_strided_slice %335 {offsets = [0, 128], sizes = [8, 128], strides = [1, 1]} : vector<8x512xf32> to vector<8x128xf32>
      %343 = arith.negf %342 : vector<8x128xf32>
      %344 = math.exp %343 : vector<8x128xf32>
      %cst_182 = arith.constant 1.000000e+00 : f32
      %345 = vector.broadcast %cst_182 : f32 to vector<8x128xf32>
      %346 = arith.addf %345, %344 : vector<8x128xf32>
      %347 = arith.divf %345, %346 : vector<8x128xf32>
      %348 = vector.extract_strided_slice %335 {offsets = [0, 256], sizes = [8, 128], strides = [1, 1]} : vector<8x512xf32> to vector<8x128xf32>
      %349 = math.tanh %348 : vector<8x128xf32>
      %350 = vector.extract_strided_slice %335 {offsets = [0, 384], sizes = [8, 128], strides = [1, 1]} : vector<8x512xf32> to vector<8x128xf32>
      %351 = arith.negf %350 : vector<8x128xf32>
      %352 = math.exp %351 : vector<8x128xf32>
      %cst_183 = arith.constant 1.000000e+00 : f32
      %353 = vector.broadcast %cst_183 : f32 to vector<8x128xf32>
      %354 = arith.addf %353, %352 : vector<8x128xf32>
      %355 = arith.divf %353, %354 : vector<8x128xf32>
      %c0_184 = arith.constant 0 : index
      %c0_185 = arith.constant 0 : index
      %356 = vector.load %arg6[%c0_184, %c0_185] : memref<8x128xf32, #tpu.memory_space<vmem>>, vector<8x128xf32>
      %357 = arith.mulf %347, %356 : vector<8x128xf32>
      %358 = arith.mulf %341, %349 : vector<8x128xf32>
      %359 = arith.addf %357, %358 : vector<8x128xf32>
      %360 = math.tanh %359 : vector<8x128xf32>
      %361 = arith.mulf %355, %360 : vector<8x128xf32>
      %c0_186 = arith.constant 0 : index
      %c0_187 = arith.constant 0 : index
      %362 = vector.load %arg6[%c0_186, %c0_187] : memref<8x128xf32, #tpu.memory_space<vmem>>, vector<8x128xf32>
      %363 = arith.select %329, %359, %362 : vector<8x128xi1>, vector<8x128xf32>
      %c0_188 = arith.constant 0 : index
      %c0_189 = arith.constant 0 : index
      %364 = vector.load %arg6[%c0_188, %c0_189] : memref<8x128xf32, #tpu.memory_space<vmem>>, vector<8x128xf32>
      tpu.vector_store %arg6[%c0_188, %c0_189], %363 {strides = array<i32>} : memref<8x128xf32, #tpu.memory_space<vmem>>, vector<8x128xf32>,
      %c0_190 = arith.constant 0 : index
      %c0_191 = arith.constant 0 : index
      %365 = vector.load %arg5[%c0_190, %c0_191] : memref<8x128xf32, #tpu.memory_space<vmem>>, vector<8x128xf32>
      %366 = arith.select %329, %361, %365 : vector<8x128xi1>, vector<8x128xf32>
      %c0_192 = arith.constant 0 : index
      %c0_193 = arith.constant 0 : index
      %367 = vector.load %arg5[%c0_192, %c0_193] : memref<8x128xf32, #tpu.memory_space<vmem>>, vector<8x128xf32>
      tpu.vector_store %arg5[%c0_192, %c0_193], %366 {strides = array<i32>} : memref<8x128xf32, #tpu.memory_space<vmem>>, vector<8x128xf32>,
      %cst_194 = arith.constant 0.000000e+00 : f32
      %368 = vector.broadcast %cst_194 : f32 to vector<8x128xf32>
      %369 = arith.select %329, %361, %368 : vector<8x128xi1>, vector<8x128xf32>
      %c0_195 = arith.constant 0 : index
      %c0_196 = arith.constant 0 : index
      %c0_197 = arith.constant 0 : index
      %370 = vector.load %arg4[%c0_195, %c0_196, %c0_197] : memref<8x8x128xf32, #tpu.memory_space<vmem>>, vector<1x8x128xf32>
      %371 = vector.shape_cast %370 : vector<1x8x128xf32> to vector<8x128xf32>
      %372 = vector.shape_cast %369 : vector<8x128xf32> to vector<1x8x128xf32>
      tpu.vector_store %arg4[%c0_195, %c0_196, %c0_197], %372 {strides = array<i32>} : memref<8x8x128xf32, #tpu.memory_space<vmem>>, vector<1x8x128xf32>,
    } else {
    }
    return
  }
  func.func @transform_0(%arg0: i32) -> (i32, i32, i32, i32) {
    %c0_i32 = arith.constant 0 : i32
    %c0_i32_0 = arith.constant 0 : i32
    %c0_i32_1 = arith.constant 0 : i32
    %c0_i32_2 = arith.constant 0 : i32
    return %arg0, %c0_i32, %c0_i32_0, %c0_i32_1 : i32, i32, i32, i32
  }
  func.func @transform_1(%arg0: i32) -> (i32, i32, i32) {
    %c0_i32 = arith.constant 0 : i32
    %c0_i32_0 = arith.constant 0 : i32
    %c0_i32_1 = arith.constant 0 : i32
    return %arg0, %c0_i32, %c0_i32_0 : i32, i32, i32
  }
  func.func @transform_2(%arg0: i32) -> (i32, i32) {
    %c0_i32 = arith.constant 0 : i32
    %c0_i32_0 = arith.constant 0 : i32
    %c0_i32_1 = arith.constant 0 : i32
    return %c0_i32, %c0_i32_0 : i32, i32
  }
  func.func @transform_3(%arg0: i32) -> (i32, i32, i32) {
    %c0_i32 = arith.constant 0 : i32
    %c0_i32_0 = arith.constant 0 : i32
    %c0_i32_1 = arith.constant 0 : i32
    return %c0_i32, %c0_i32_0, %arg0 : i32, i32, i32
  }
}

</mosaic_0001>

<llo_original>
// kernel: neg.1
$region0: #{neg.1}
  #allocation0 [shape = 's32[1]{0}', space=sflag, size = 0x4, scoped, tag = 'scoped memory for neg.1']
  %s0 = inlined_call_operand.vmem [shape: s32[4], index: 0, kind: input, shape index: {}]
  %s1 = inlined_call_operand.vmem [shape: s32[4], index: 1, kind: output, shape index: {}]
  %v2 = vld [vmem:[%s0] sm:$0x1]
  %3 = xla_tuple %v2
  %4 = xla_tuple %3
  %v5 = vsub.s32 0, %v2
  %6 = xla_tuple %v5
  %7 = vst [vmem:[%s1] sm:$0x1] %v5

// kernel: embedding_lstm_forward.3
$region0: #{embedding_lstm_forward.3}
  #allocation0 [shape = 'u32[]', space=smem, size = 0x4, offset = 0x4, fixed_abs, tag = 'smem constant byte address 0x4 - core index']
  #allocation1 [shape = 'u32[144,128]{1,0:T(1,128)}', space=vmem, size = 0x12000, scoped, tag = 'internal scratch']
  #allocation2 [shape = 'f32[8,128]{1,0:T(8,128)}', space=vmem, size = 0x1000, scoped, tag = 'scratch operand']
  #allocation3 [shape = 'f32[8,128]{1,0:T(8,128)}', space=vmem, size = 0x1000, scoped, tag = 'scratch operand']
  %s0 = inlined_call_operand.vmem [shape: f32[2,8,8,512], index: 0, kind: input, shape index: {}]
  %s1 = inlined_call_operand.vmem [shape: bf16[2,128,512], index: 1, kind: input, shape index: {}]
  %s2 = inlined_call_operand.vmem [shape: s32[8,128], index: 2, kind: input, shape index: {}]
  %s3 = inlined_call_operand.vmem [shape: f32[8,8,256], index: 3, kind: output, shape index: {}]
  %s4 = sld [smem:[#allocation0]]
  $region87: #{embedding_lstm_forward.3} parent=0
    _
  %s6 = ssub.s32 1, %s4
  %s7 = scalar_select 0, %s6, %s4
  $region1: #{embedding_lstm_forward.3} parent=0
    #allocation4 [shape = 'u8[65536]{0}', space=vmem, size = 0x10000, scoped, tag = 'output window, operand 0']
    loop: start=0, step=1, limit=4
    $region2: #{embedding_lstm_forward.3} parent=1 // loop_pre_header
      _
    $region3: #{embedding_lstm_forward.3} parent=1 // loop_header
      %s9 = sphi 0, %s13
      %p10 = scmp.ge.s32.totalorder %s9, 4
      %s19 = sphi 0, %s21
      %s22 = sphi 0, %s19
      %s23 = sphi 0, %s22
      %s39 = sphi 0, %s23
      %s45 = sphi 0, %s47
      %s48 = sphi 0, %s45
      %s49 = sphi 0, %s48
      %s65 = sphi 0, %s49
      %s69 = sphi 0, %s69
      %s71 = sphi 0, %s69
      %s72 = sphi 0, %s71
      %s86 = sphi 0, %s72
      %s92 = sphi 0, %s94
      %s95 = sphi 0, %s92
      %s96 = sphi 0, %s95
      %s112 = sphi 0, %s96
    $region4: #{embedding_lstm_forward.3} parent=1 // loop_header_branch
      %12 = sbr.rel (%p10) target = $region8
    $region5: #{embedding_lstm_forward.3} parent=1 // loop_body
      %s14 = ssub.s32 %s9, 1
      %s15 = ssub.s32 %s9, 2
      %s16 = sadd.s32 %s9, 1
      %s17 = ssub.s32 %s9, %s16
      %p18 = scmp.eq.s32.totalorder %s17, 0
      %s20 = sadd.s32 %s19, 1
      %s21 = scalar_select %p18, %s19, %s20
      %p24 = pneg %p18
      %p25 = scmp.eq.s32.totalorder %s9, 1
      %p26 = por %p24, %p25
      %p27 = scmp.ne.s32.totalorder %s19, %s22
      %p28 = scmp.eq.s32.totalorder %s9, 0
      %p29 = por %p27, %p28
      %p30 = scmp.ne.s32.totalorder %s19, %s22
      %p31 = scmp.eq.s32.totalorder %s14, 1
      %p32 = por %p30, %p31
      %p33 = scmp.ne.s32.totalorder %s22, %s23
      %p34 = scmp.eq.s32.totalorder %s14, 0
      %p35 = por %p33, %p34
      %p36 = scmp.ne.s32.totalorder %s22, %s23
      %p37 = scmp.eq.s32.totalorder %s15, 1
      %p38 = por %p36, %p37
      %p40 = scmp.ne.s32.totalorder %s23, %s39
      %p41 = scmp.eq.s32.totalorder %s15, 0
      %p42 = por %p40, %p41
      %s43 = ssub.s32 %s9, %s16
      %p44 = scmp.eq.s32.totalorder %s43, 0
      %s46 = sadd.s32 %s45, 1
      %s47 = scalar_select %p44, %s45, %s46
      %p50 = pneg %p44
      %p51 = scmp.eq.s32.totalorder %s9, 1
      %p52 = por %p50, %p51
      %p53 = scmp.ne.s32.totalorder %s45, %s48
      %p54 = scmp.eq.s32.totalorder %s9, 0
      %p55 = por %p53, %p54
      %p56 = scmp.ne.s32.totalorder %s45, %s48
      %p57 = scmp.eq.s32.totalorder %s14, 1
      %p58 = por %p56, %p57
      %p59 = scmp.ne.s32.totalorder %s48, %s49
      %p60 = scmp.eq.s32.totalorder %s14, 0
      %p61 = por %p59, %p60
      %p62 = scmp.ne.s32.totalorder %s48, %s49
      %p63 = scmp.eq.s32.totalorder %s15, 1
      %p64 = por %p62, %p63
      %p66 = scmp.ne.s32.totalorder %s49, %s65
      %p67 = scmp.eq.s32.totalorder %s15, 0
      %p68 = por %p66, %p67
      %s70 = sadd.s32 %s69, 1
      %p73 = scmp.eq.s32.totalorder %s9, 1
      %p74 = scmp.ne.s32.totalorder %s69, %s71
      %p75 = scmp.eq.s32.totalorder %s9, 0
      %p76 = por %p74, %p75
      %p77 = scmp.ne.s32.totalorder %s69, %s71
      %p78 = scmp.eq.s32.totalorder %s14, 1
      %p79 = por %p77, %p78
      %p80 = scmp.ne.s32.totalorder %s71, %s72
      %p81 = scmp.eq.s32.totalorder %s14, 0
      %p82 = por %p80, %p81
      %p83 = scmp.ne.s32.totalorder %s71, %s72
      %p84 = scmp.eq.s32.totalorder %s15, 1
      %p85 = por %p83, %p84
      %p87 = scmp.ne.s32.totalorder %s72, %s86
      %p88 = scmp.eq.s32.totalorder %s15, 0
      %p89 = por %p87, %p88
      %s90 = ssub.s32 %s9, %s16
      %p91 = scmp.eq.s32.totalorder %s90, 0
      %s93 = sadd.s32 %s92, 1
      %s94 = scalar_select %p91, %s92, %s93
      %p97 = pneg %p91
      %p98 = scmp.eq.s32.totalorder %s9, 1
      %p99 = por %p97, %p98
      %p100 = scmp.ne.s32.totalorder %s92, %s95
      %p101 = scmp.eq.s32.totalorder %s9, 0
      %p102 = por %p100, %p101
      %p103 = scmp.ne.s32.totalorder %s92, %s95
      %p104 = scmp.eq.s32.totalorder %s14, 1
      %p105 = por %p103, %p104
      %p106 = scmp.ne.s32.totalorder %s95, %s96
      %p107 = scmp.eq.s32.totalorder %s14, 0
      %p108 = por %p106, %p107
      %p109 = scmp.ne.s32.totalorder %s95, %s96
      %p110 = scmp.eq.s32.totalorder %s15, 1
      %p111 = por %p109, %p110
      %p113 = scmp.ne.s32.totalorder %s96, %s112
      %p114 = scmp.eq.s32.totalorder %s15, 0
      %p115 = por %p113, %p114
      %p116 = scmp.le.s32.totalorder 1, %s9
      %p117 = scmp.lt.s32.totalorder %s9, 3
      %p118 = pnand %p116, %p117
      %p119 = pneg %p118
      // Predicated region
      $region9: #{embedding_lstm_forward.3} parent=5 // pred_check
        _
      $region10: #{embedding_lstm_forward.3} parent=5 // pred_check_branch
        %121 = sbr.rel (%p118) target = $region12
      $region11: #{embedding_lstm_forward.3} parent=5 // pred_region
        %s122 = ssub.s32 %s9, 1
        // Predicated region
        $region13: #{embedding_lstm_forward.3} parent=11 // pred_check
          %p123 = pneg %p82
        $region14: #{embedding_lstm_forward.3} parent=11 // pred_check_branch
          %125 = sbr.rel (%p123) target = $region16
        $region15: #{embedding_lstm_forward.3} parent=11 // pred_region
          _
        $region16: #{embedding_lstm_forward.3} parent=11 // pred_fallthru
          _
      $region12: #{embedding_lstm_forward.3} parent=5 // pred_fallthru
        _
      %p126 = scmp.lt.s32.totalorder %s9, 2
      // Predicated region
      $region17: #{embedding_lstm_forward.3} parent=5 // pred_check
        %p127 = pneg %p126
      $region18: #{embedding_lstm_forward.3} parent=5 // pred_check_branch
        %129 = sbr.rel (%p127) target = $region20
      $region19: #{embedding_lstm_forward.3} parent=5 // pred_region
        // Predicated region
        $region21: #{embedding_lstm_forward.3} parent=19 // pred_check
          %p130 = pneg %p29
        $region22: #{embedding_lstm_forward.3} parent=19 // pred_check_branch
          %132 = sbr.rel (%p130) target = $region24
        $region23: #{embedding_lstm_forward.3} parent=19 // pred_region
          %p133 = scmp.lt.s32.totalorder %s9, 1
          %s134 = scalar_select %p133, %s9, 1
          %s135 = smul.addr %s134, 32
          %s136 = smul.addr %s135, 8
          %s137 = scalar_lea.vmem %s0, %s136
        $region24: #{embedding_lstm_forward.3} parent=19 // pred_fallthru
          _
        // Predicated region
        $region25: #{embedding_lstm_forward.3} parent=19 // pred_check
          %p138 = pneg %p55
        $region26: #{embedding_lstm_forward.3} parent=19 // pred_check_branch
          %140 = sbr.rel (%p138) target = $region28
        $region27: #{embedding_lstm_forward.3} parent=19 // pred_region
          %p141 = scmp.lt.s32.totalorder %s9, 1
          %s142 = scalar_select %p141, %s9, 1
          %s143 = smul.addr %s142, 64
          %s144 = smul.addr %s143, 4
          %s145 = scalar_lea.vmem %s1, %s144
        $region28: #{embedding_lstm_forward.3} parent=19 // pred_fallthru
          _
      $region20: #{embedding_lstm_forward.3} parent=5 // pred_fallthru
        _
      %p146 = scmp.le.s32.totalorder 1, %s9
      %p147 = scmp.lt.s32.totalorder %s9, 3
      %p148 = pnand %p146, %p147
      %p149 = pneg %p148
      // Predicated region
      $region29: #{embedding_lstm_forward.3} parent=5 // pred_check
        _
      $region30: #{embedding_lstm_forward.3} parent=5 // pred_check_branch
        %151 = sbr.rel (%p148) target = $region32
      $region31: #{embedding_lstm_forward.3} parent=5 // pred_region
        %s152 = ssub.s32 %s9, 1
        %p153 = scmp.lt.s32.totalorder %s14, 1
        %s154 = scalar_select %p153, %s14, 1
        %s155 = smul.addr %s154, 32
        %s156 = smul.addr %s155, 8
        %s157 = scalar_lea.vmem %s0, %s156
        %p158 = pneg %p35
        %p159 = pneg %p32
        %p160 = scmp.lt.s32.totalorder %s14, 1
        %s161 = scalar_select %p160, %s14, 1
        %s162 = smul.addr %s161, 64
        %s163 = smul.addr %s162, 4
        %s164 = scalar_lea.vmem %s1, %s163
        %p165 = pneg %p61
        %p166 = pneg %p58
        %p167 = pneg %p82
        %p168 = pneg %p79
        %p169 = pneg %p108
        %p170 = pneg %p105
        %s171 = sand.u32 %s95, 1
        %s172 = sand.u32 %s95, 1
        %s173 = smul.addr %s172, 64
        %s174 = scalar_lea.vmem [#allocation4], %s173
        %p175 = scmp.lt.s32.totalorder %s14, 1
        %s176 = scalar_select %p175, %s14, 1
        %s177 = smul.addr %s176, 32
        %s178 = smul.addr %s177, 8
        %s179 = scalar_lea.vmem %s0, %s178
        %p180 = scmp.lt.s32.totalorder %s14, 1
        %s181 = scalar_select %p180, %s14, 1
        %s182 = smul.addr %s181, 64
        %s183 = smul.addr %s182, 4
        %s184 = scalar_lea.vmem %s1, %s183
        %186 = vst [vmem:[#allocation2] sm:$0xff] 0.0
        %187 = vst [vmem:[#allocation3] sm:$0xff] 0.0
        %v188 = vld [vmem:[%s2] sm:$0xff]
        %v189 = vld [vmem:[%s184] sm:$0xff]
        %v190 = vld [vmem:[%s184 + $0x8] sm:$0xff]
        %v191 = vld [vmem:[%s184 + $0x10] sm:$0xff]
        %v192 = vld [vmem:[%s184 + $0x18] sm:$0xff]
        %v193 = vld [vmem:[%s184 + $0x20] sm:$0xff]
        %v194 = vld [vmem:[%s184 + $0x28] sm:$0xff]
        %v195 = vld [vmem:[%s184 + $0x30] sm:$0xff]
        %v196 = vld [vmem:[%s184 + $0x38] sm:$0xff]
        %v197 = vld [vmem:[%s184 + $0x40] sm:$0xff]
        %v198 = vld [vmem:[%s184 + $0x48] sm:$0xff]
        %v199 = vld [vmem:[%s184 + $0x50] sm:$0xff]
        %v200 = vld [vmem:[%s184 + $0x58] sm:$0xff]
        %v201 = vld [vmem:[%s184 + $0x60] sm:$0xff]
        %v202 = vld [vmem:[%s184 + $0x68] sm:$0xff]
        %v203 = vld [vmem:[%s184 + $0x70] sm:$0xff]
        %v204 = vld [vmem:[%s184 + $0x78] sm:$0xff]
        %v205 = vld [vmem:[%s184 + $0x80] sm:$0xff]
        %v206 = vld [vmem:[%s184 + $0x88] sm:$0xff]
        %v207 = vld [vmem:[%s184 + $0x90] sm:$0xff]
        %v208 = vld [vmem:[%s184 + $0x98] sm:$0xff]
        %v209 = vld [vmem:[%s184 + $0xa0] sm:$0xff]
        %v210 = vld [vmem:[%s184 + $0xa8] sm:$0xff]
        %v211 = vld [vmem:[%s184 + $0xb0] sm:$0xff]
        %v212 = vld [vmem:[%s184 + $0xb8] sm:$0xff]
        %v213 = vld [vmem:[%s184 + $0xc0] sm:$0xff]
        %v214 = vld [vmem:[%s184 + $0xc8] sm:$0xff]
        %v215 = vld [vmem:[%s184 + $0xd0] sm:$0xff]
        %v216 = vld [vmem:[%s184 + $0xd8] sm:$0xff]
        %v217 = vld [vmem:[%s184 + $0xe0] sm:$0xff]
        %v218 = vld [vmem:[%s184 + $0xe8] sm:$0xff]
        %v219 = vld [vmem:[%s184 + $0xf0] sm:$0xff]
        %v220 = vld [vmem:[%s184 + $0xf8] sm:$0xff]
        %p221 = scmp.eq.s32.totalorder %s14, 0
        // Predicated region
        $region33: #{embedding_lstm_forward.3} parent=31 // pred_check
          %p222 = pneg %p221
        $region34: #{embedding_lstm_forward.3} parent=31 // pred_check_branch
          %224 = sbr.rel (%p222) target = $region36
        $region35: #{embedding_lstm_forward.3} parent=31 // pred_region
          %vm225 = vcmp.gt.s32.totalorder %v188, 0
          %v226 = vld [vmem:[%s179] sm:$0xff]
          %v227 = vld [vmem:[%s179 + $0x8] sm:$0xff]
          %v228 = vld [vmem:[%s179 + $0x10] sm:$0xff]
          %v229 = vld [vmem:[%s179 + $0x18] sm:$0xff]
          %v230 = vld [vmem:[#allocation2] sm:$0xff]
          %v231 = vpack.c.bf16 %v230, %v230
          %v264 = vunpack.c.l.b16 %v189
          %v265 = vunpack.c.h.b16 %v189
          %v266 = vunpack.c.l.b16 %v190
          %v267 = vunpack.c.h.b16 %v190
          %v268 = vunpack.c.l.b16 %v191
          %v269 = vunpack.c.h.b16 %v191
          %v270 = vunpack.c.l.b16 %v192
          %v271 = vunpack.c.h.b16 %v192
          %v272 = vunpack.c.l.b16 %v193
          %v273 = vunpack.c.h.b16 %v193
          %v274 = vunpack.c.l.b16 %v194
          %v275 = vunpack.c.h.b16 %v194
          %v276 = vunpack.c.l.b16 %v195
          %v277 = vunpack.c.h.b16 %v195
          %v278 = vunpack.c.l.b16 %v196
          %v279 = vunpack.c.h.b16 %v196
          %v280 = vunpack.c.l.b16 %v197
          %v281 = vunpack.c.h.b16 %v197
          %v282 = vunpack.c.l.b16 %v198
          %v283 = vunpack.c.h.b16 %v198
          %v284 = vunpack.c.l.b16 %v199
          %v285 = vunpack.c.h.b16 %v199
          %v286 = vunpack.c.l.b16 %v200
          %v287 = vunpack.c.h.b16 %v200
          %v288 = vunpack.c.l.b16 %v201
          %v289 = vunpack.c.h.b16 %v201
          %v290 = vunpack.c.l.b16 %v202
          %v291 = vunpack.c.h.b16 %v202
          %v292 = vunpack.c.l.b16 %v203
          %v293 = vunpack.c.h.b16 %v203
          %v294 = vunpack.c.l.b16 %v204
          %v295 = vunpack.c.h.b16 %v204
          %v296 = vunpack.c.l.b16 %v205
          %v297 = vunpack.c.h.b16 %v205
          %v298 = vunpack.c.l.b16 %v206
          %v299 = vunpack.c.h.b16 %v206
          %v300 = vunpack.c.l.b16 %v207
          %v301 = vunpack.c.h.b16 %v207
          %v302 = vunpack.c.l.b16 %v208
          %v303 = vunpack.c.h.b16 %v208
          %v304 = vunpack.c.l.b16 %v209
          %v305 = vunpack.c.h.b16 %v209
          %v306 = vunpack.c.l.b16 %v210
          %v307 = vunpack.c.h.b16 %v210
          %v308 = vunpack.c.l.b16 %v211
          %v309 = vunpack.c.h.b16 %v211
          %v310 = vunpack.c.l.b16 %v212
          %v311 = vunpack.c.h.b16 %v212
          %v312 = vunpack.c.l.b16 %v213
          %v313 = vunpack.c.h.b16 %v213
          %v314 = vunpack.c.l.b16 %v214
          %v315 = vunpack.c.h.b16 %v214
          %v316 = vunpack.c.l.b16 %v215
          %v317 = vunpack.c.h.b16 %v215
          %v318 = vunpack.c.l.b16 %v216
          %v319 = vunpack.c.h.b16 %v216
          %v320 = vunpack.c.l.b16 %v217
          %v321 = vunpack.c.h.b16 %v217
          %v322 = vunpack.c.l.b16 %v218
          %v323 = vunpack.c.h.b16 %v218
          %v324 = vunpack.c.l.b16 %v219
          %v325 = vunpack.c.h.b16 %v219
          %v326 = vunpack.c.l.b16 %v220
          %v327 = vunpack.c.h.b16 %v220
          %v328 = vpack.c.b16 %v268, %v264
          %v329 = vpack.c.b16 %v269, %v265
          %v330 = vpack.c.b16 %v270, %v266
          %v331 = vpack.c.b16 %v271, %v267
          %v332 = vpack.c.b16 %v276, %v272
          %v333 = vpack.c.b16 %v277, %v273
          %v334 = vpack.c.b16 %v278, %v274
          %v335 = vpack.c.b16 %v279, %v275
          %v336 = vpack.c.b16 %v284, %v280
          %v337 = vpack.c.b16 %v285, %v281
          %v338 = vpack.c.b16 %v286, %v282
          %v339 = vpack.c.b16 %v287, %v283
          %v340 = vpack.c.b16 %v292, %v288
          %v341 = vpack.c.b16 %v293, %v289
          %v342 = vpack.c.b16 %v294, %v290
          %v343 = vpack.c.b16 %v295, %v291
          %v344 = vpack.c.b16 %v300, %v296
          %v345 = vpack.c.b16 %v301, %v297
          %v346 = vpack.c.b16 %v302, %v298
          %v347 = vpack.c.b16 %v303, %v299
          %v348 = vpack.c.b16 %v308, %v304
          %v349 = vpack.c.b16 %v309, %v305
          %v350 = vpack.c.b16 %v310, %v306
          %v351 = vpack.c.b16 %v311, %v307
          %v352 = vpack.c.b16 %v316, %v312
          %v353 = vpack.c.b16 %v317, %v313
          %v354 = vpack.c.b16 %v318, %v314
          %v355 = vpack.c.b16 %v319, %v315
          %v356 = vpack.c.b16 %v324, %v320
          %v357 = vpack.c.b16 %v325, %v321
          %v358 = vpack.c.b16 %v326, %v322
          %v359 = vpack.c.b16 %v327, %v323
          %392 = vmatprep.subr.bf16.mxu0 %v329
          %393 = vmatpush1.bf16.msra.mxu0 %v328
          %394 = vmatprep.subr.bf16.mxu0 %v333
          %395 = vmatpush1.bf16.msra.mxu0 %v332
          %396 = vmatprep.subr.bf16.mxu0 %v337
          %397 = vmatpush1.bf16.msra.mxu0 %v336
          %398 = vmatprep.subr.bf16.mxu0 %v341
          %399 = vmatpush1.bf16.msra.mxu0 %v340
          %400 = vmatprep.subr.bf16.mxu0 %v345
          %401 = vmatpush1.bf16.msra.mxu0 %v344
          %402 = vmatprep.subr.bf16.mxu0 %v349
          %403 = vmatpush1.bf16.msra.mxu0 %v348
          %404 = vmatprep.subr.bf16.mxu0 %v353
          %405 = vmatpush1.bf16.msra.mxu0 %v352
          %406 = vmatprep.subr.bf16.mxu0 %v357
          %407 = vmatpush1.bf16.msra.mxu0 %v356
          %408 = vmatprep.subr.bf16.mxu0 0
          %409 = vmatpush1.bf16.msra.mxu0 0
          %410 = vmatprep.subr.bf16.mxu0 0
          %411 = vmatpush1.bf16.msra.mxu0 0
          %412 = vmatprep.subr.bf16.mxu0 0
          %413 = vmatpush1.bf16.msra.mxu0 0
          %414 = vmatprep.subr.bf16.mxu0 0
          %415 = vmatpush1.bf16.msra.mxu0 0
          %416 = vmatprep.subr.bf16.mxu0 0
          %417 = vmatpush1.bf16.msra.mxu0 0
          %418 = vmatprep.subr.bf16.mxu0 0
          %419 = vmatpush1.bf16.msra.mxu0 0
          %420 = vmatprep.subr.bf16.mxu0 0
          %421 = vmatpush1.bf16.msra.mxu0 0
          %422 = vmatprep.subr.bf16.mxu0 0
          %423 = vmatpush1.bf16.msra.mxu0 0
          %424 = vmatprep.mubr.bf16.mxu0 0
          %425 = vmatmul.mubr.bf16.gmra.mrb[0].mxu0 %v231
          %v426 = vpop.f32.mrb[0].mxu0
          %v427 = vadd.f32 0.0, %v426
          %v428 = vpop.f32.mrb[0].mxu0
          %v429 = vadd.f32 0.0, %v428
          %v430 = vpop.f32.mrb[0].mxu0
          %v431 = vpop.f32.mrb[0].mxu0
          %432 = vdwg.mxu0
          %433 = vmatprep.subr.bf16.mxu0 %v331
          %434 = vmatpush1.bf16.msra.mxu0 %v330
          %435 = vmatprep.subr.bf16.mxu0 %v335
          %436 = vmatpush1.bf16.msra.mxu0 %v334
          %437 = vmatprep.subr.bf16.mxu0 %v339
          %438 = vmatpush1.bf16.msra.mxu0 %v338
          %439 = vmatprep.subr.bf16.mxu0 %v343
          %440 = vmatpush1.bf16.msra.mxu0 %v342
          %441 = vmatprep.subr.bf16.mxu0 %v347
          %442 = vmatpush1.bf16.msra.mxu0 %v346
          %443 = vmatprep.subr.bf16.mxu0 %v351
          %444 = vmatpush1.bf16.msra.mxu0 %v350
          %445 = vmatprep.subr.bf16.mxu0 %v355
          %446 = vmatpush1.bf16.msra.mxu0 %v354
          %447 = vmatprep.subr.bf16.mxu0 %v359
          %448 = vmatpush1.bf16.msra.mxu0 %v358
          %449 = vmatprep.subr.bf16.mxu0 0
          %450 = vmatpush1.bf16.msra.mxu0 0
          %451 = vmatprep.subr.bf16.mxu0 0
          %452 = vmatpush1.bf16.msra.mxu0 0
          %453 = vmatprep.subr.bf16.mxu0 0
          %454 = vmatpush1.bf16.msra.mxu0 0
          %455 = vmatprep.subr.bf16.mxu0 0
          %456 = vmatpush1.bf16.msra.mxu0 0
          %457 = vmatprep.subr.bf16.mxu0 0
          %458 = vmatpush1.bf16.msra.mxu0 0
          %459 = vmatprep.subr.bf16.mxu0 0
          %460 = vmatpush1.bf16.msra.mxu0 0
          %461 = vmatprep.subr.bf16.mxu0 0
          %462 = vmatpush1.bf16.msra.mxu0 0
          %463 = vmatprep.subr.bf16.mxu0 0
          %464 = vmatpush1.bf16.msra.mxu0 0
          %465 = vmatprep.mubr.bf16.mxu0 0
          %466 = vmatmul.mubr.bf16.gmra.mrb[0].mxu0 %v231
          %v467 = vpop.f32.mrb[0].mxu0
          %v468 = vadd.f32 0.0, %v467
          %v469 = vpop.f32.mrb[0].mxu0
          %v470 = vadd.f32 0.0, %v469
          %v471 = vpop.f32.mrb[0].mxu0
          %v472 = vpop.f32.mrb[0].mxu0
          %473 = vdwg.mxu0
          %v474 = vadd.f32 %v226, %v427
          %v475 = vadd.f32 %v227, %v429
          %v476 = vadd.f32 %v228, %v468
          %v477 = vadd.f32 %v229, %v470
          %v478 = vxor.u32 %v474, 2147483648
          %v479 = vmul.f32 %v478, 1.442695
          %v480 = vpow.pop %v479
          %v481 = vadd.f32 %v480, 1.0
          %v482 = vrcp.pop %v481
          %v483 = vmul.f32 1.0, %v482
          %v484 = vxor.u32 %v475, 2147483648
          %v485 = vmul.f32 %v484, 1.442695
          %v486 = vpow.pop %v485
          %v487 = vadd.f32 %v486, 1.0
          %v488 = vrcp.pop %v487
          %v489 = vmul.f32 1.0, %v488
          %v490 = vtanh.pop %v476
          %v491 = vxor.u32 %v477, 2147483648
          %v492 = vmul.f32 %v491, 1.442695
          %v493 = vpow.pop %v492
          %v494 = vadd.f32 %v493, 1.0
          %v495 = vrcp.pop %v494
          %v496 = vmul.f32 1.0, %v495
          %v497 = vld [vmem:[#allocation3] sm:$0xff]
          %v498 = vmul.f32 %v489, %v497
          %v499 = vmul.f32 %v483, %v490
          %v500 = vadd.f32 %v498, %v499
          %v501 = vtanh.pop %v500
          %v502 = vmul.f32 %v496, %v501
          %v503 = vsel %vm225, %v500, %v497
          %504 = vst [vmem:[#allocation3] sm:$0xff] %v503
          %v505 = vld [vmem:[#allocation2] sm:$0xff]
          %v506 = vsel %vm225, %v502, %v505
          %507 = vst [vmem:[#allocation2] sm:$0xff] %v506
          %v508 = vsel %vm225, %v502, 0.0
          %509 = vst [vmem:[%s174] sm:$0xff] %v508
          %vm510 = vcmp.gt.s32.totalorder %v188, 1
          %s511 = scalar_lea.vmem %s179, 32
          %v512 = vld [vmem:[%s511] sm:$0xff]
          %v513 = vld [vmem:[%s511 + $0x8] sm:$0xff]
          %v514 = vld [vmem:[%s511 + $0x10] sm:$0xff]
          %v515 = vld [vmem:[%s511 + $0x18] sm:$0xff]
          %v516 = vld [vmem:[#allocation2] sm:$0xff]
          %v517 = vpack.c.bf16 %v516, %v516
          %518 = vmatprep.subr.bf16.mxu0 %v329
          %519 = vmatpush1.bf16.msra.mxu0 %v328
          %520 = vmatprep.subr.bf16.mxu0 %v333
          %521 = vmatpush1.bf16.msra.mxu0 %v332
          %522 = vmatprep.subr.bf16.mxu0 %v337
          %523 = vmatpush1.bf16.msra.mxu0 %v336
          %524 = vmatprep.subr.bf16.mxu0 %v341
          %525 = vmatpush1.bf16.msra.mxu0 %v340
          %526 = vmatprep.subr.bf16.mxu0 %v345
          %527 = vmatpush1.bf16.msra.mxu0 %v344
          %528 = vmatprep.subr.bf16.mxu0 %v349
          %529 = vmatpush1.bf16.msra.mxu0 %v348
          %530 = vmatprep.subr.bf16.mxu0 %v353
          %531 = vmatpush1.bf16.msra.mxu0 %v352
          %532 = vmatprep.subr.bf16.mxu0 %v357
          %533 = vmatpush1.bf16.msra.mxu0 %v356
          %534 = vmatprep.subr.bf16.mxu0 0
          %535 = vmatpush1.bf16.msra.mxu0 0
          %536 = vmatprep.subr.bf16.mxu0 0
          %537 = vmatpush1.bf16.msra.mxu0 0
          %538 = vmatprep.subr.bf16.mxu0 0
          %539 = vmatpush1.bf16.msra.mxu0 0
          %540 = vmatprep.subr.bf16.mxu0 0
          %541 = vmatpush1.bf16.msra.mxu0 0
          %542 = vmatprep.subr.bf16.mxu0 0
          %543 = vmatpush1.bf16.msra.mxu0 0
          %544 = vmatprep.subr.bf16.mxu0 0
          %545 = vmatpush1.bf16.msra.mxu0 0
          %546 = vmatprep.subr.bf16.mxu0 0
          %547 = vmatpush1.bf16.msra.mxu0 0
          %548 = vmatprep.subr.bf16.mxu0 0
          %549 = vmatpush1.bf16.msra.mxu0 0
          %550 = vmatprep.mubr.bf16.mxu0 0
          %551 = vmatmul.mubr.bf16.gmra.mrb[0].mxu0 %v517
          %v552 = vpop.f32.mrb[0].mxu0
          %v553 = vadd.f32 0.0, %v552
          %v554 = vpop.f32.mrb[0].mxu0
          %v555 = vadd.f32 0.0, %v554
          %v556 = vpop.f32.mrb[0].mxu0
          %v557 = vpop.f32.mrb[0].mxu0
          %558 = vdwg.mxu0
          %559 = vmatprep.subr.bf16.mxu0 %v331
          %560 = vmatpush1.bf16.msra.mxu0 %v330
          %561 = vmatprep.subr.bf16.mxu0 %v335
          %562 = vmatpush1.bf16.msra.mxu0 %v334
          %563 = vmatprep.subr.bf16.mxu0 %v339
          %564 = vmatpush1.bf16.msra.mxu0 %v338
          %565 = vmatprep.subr.bf16.mxu0 %v343
          %566 = vmatpush1.bf16.msra.mxu0 %v342
          %567 = vmatprep.subr.bf16.mxu0 %v347
          %568 = vmatpush1.bf16.msra.mxu0 %v346
          %569 = vmatprep.subr.bf16.mxu0 %v351
          %570 = vmatpush1.bf16.msra.mxu0 %v350
          %571 = vmatprep.subr.bf16.mxu0 %v355
          %572 = vmatpush1.bf16.msra.mxu0 %v354
          %573 = vmatprep.subr.bf16.mxu0 %v359
          %574 = vmatpush1.bf16.msra.mxu0 %v358
          %575 = vmatprep.subr.bf16.mxu0 0
          %576 = vmatpush1.bf16.msra.mxu0 0
          %577 = vmatprep.subr.bf16.mxu0 0
          %578 = vmatpush1.bf16.msra.mxu0 0
          %579 = vmatprep.subr.bf16.mxu0 0
          %580 = vmatpush1.bf16.msra.mxu0 0
          %581 = vmatprep.subr.bf16.mxu0 0
          %582 = vmatpush1.bf16.msra.mxu0 0
          %583 = vmatprep.subr.bf16.mxu0 0
          %584 = vmatpush1.bf16.msra.mxu0 0
          %585 = vmatprep.subr.bf16.mxu0 0
          %586 = vmatpush1.bf16.msra.mxu0 0
          %587 = vmatprep.subr.bf16.mxu0 0
          %588 = vmatpush1.bf16.msra.mxu0 0
          %589 = vmatprep.subr.bf16.mxu0 0
          %590 = vmatpush1.bf16.msra.mxu0 0
          %591 = vmatprep.mubr.bf16.mxu0 0
          %592 = vmatmul.mubr.bf16.gmra.mrb[0].mxu0 %v517
          %v593 = vpop.f32.mrb[0].mxu0
          %v594 = vadd.f32 0.0, %v593
          %v595 = vpop.f32.mrb[0].mxu0
          %v596 = vadd.f32 0.0, %v595
          %v597 = vpop.f32.mrb[0].mxu0
          %v598 = vpop.f32.mrb[0].mxu0
          %599 = vdwg.mxu0
          %v600 = vadd.f32 %v512, %v553
          %v601 = vadd.f32 %v513, %v555
          %v602 = vadd.f32 %v514, %v594
          %v603 = vadd.f32 %v515, %v596
          %v604 = vxor.u32 %v600, 2147483648
          %v605 = vmul.f32 %v604, 1.442695
          %v606 = vpow.pop %v605
          %v607 = vadd.f32 %v606, 1.0
          %v608 = vrcp.pop %v607
          %v609 = vmul.f32 1.0, %v608
          %v610 = vxor.u32 %v601, 2147483648
          %v611 = vmul.f32 %v610, 1.442695
          %v612 = vpow.pop %v611
          %v613 = vadd.f32 %v612, 1.0
          %v614 = vrcp.pop %v613
          %v615 = vmul.f32 1.0, %v614
          %v616 = vtanh.pop %v602
          %v617 = vxor.u32 %v603, 2147483648
          %v618 = vmul.f32 %v617, 1.442695
          %v619 = vpow.pop %v618
          %v620 = vadd.f32 %v619, 1.0
          %v621 = vrcp.pop %v620
          %v622 = vmul.f32 1.0, %v621
          %v623 = vld [vmem:[#allocation3] sm:$0xff]
          %v624 = vmul.f32 %v615, %v623
          %v625 = vmul.f32 %v609, %v616
          %v626 = vadd.f32 %v624, %v625
          %v627 = vtanh.pop %v626
          %v628 = vmul.f32 %v622, %v627
          %v629 = vsel %vm510, %v626, %v623
          %630 = vst [vmem:[#allocation3] sm:$0xff] %v629
          %v631 = vld [vmem:[#allocation2] sm:$0xff]
          %v632 = vsel %vm510, %v628, %v631
          %633 = vst [vmem:[#allocation2] sm:$0xff] %v632
          %v634 = vsel %vm510, %v628, 0.0
          %s635 = scalar_lea.vmem %s174, 8 [#allocation4]
          %636 = vst [vmem:[%s635] sm:$0xff] %v634
          %vm637 = vcmp.gt.s32.totalorder %v188, 2
          %s638 = scalar_lea.vmem %s179, 64
          %v639 = vld [vmem:[%s638] sm:$0xff]
          %v640 = vld [vmem:[%s638 + $0x8] sm:$0xff]
          %v641 = vld [vmem:[%s638 + $0x10] sm:$0xff]
          %v642 = vld [vmem:[%s638 + $0x18] sm:$0xff]
          %v643 = vld [vmem:[#allocation2] sm:$0xff]
          %v644 = vpack.c.bf16 %v643, %v643
          %645 = vmatprep.subr.bf16.mxu0 %v329
          %646 = vmatpush1.bf16.msra.mxu0 %v328
          %647 = vmatprep.subr.bf16.mxu0 %v333
          %648 = vmatpush1.bf16.msra.mxu0 %v332
          %649 = vmatprep.subr.bf16.mxu0 %v337
          %650 = vmatpush1.bf16.msra.mxu0 %v336
          %651 = vmatprep.subr.bf16.mxu0 %v341
          %652 = vmatpush1.bf16.msra.mxu0 %v340
          %653 = vmatprep.subr.bf16.mxu0 %v345
          %654 = vmatpush1.bf16.msra.mxu0 %v344
          %655 = vmatprep.subr.bf16.mxu0 %v349
          %656 = vmatpush1.bf16.msra.mxu0 %v348
          %657 = vmatprep.subr.bf16.mxu0 %v353
          %658 = vmatpush1.bf16.msra.mxu0 %v352
          %659 = vmatprep.subr.bf16.mxu0 %v357
          %660 = vmatpush1.bf16.msra.mxu0 %v356
          %661 = vmatprep.subr.bf16.mxu0 0
          %662 = vmatpush1.bf16.msra.mxu0 0
          %663 = vmatprep.subr.bf16.mxu0 0
          %664 = vmatpush1.bf16.msra.mxu0 0
          %665 = vmatprep.subr.bf16.mxu0 0
          %666 = vmatpush1.bf16.msra.mxu0 0
          %667 = vmatprep.subr.bf16.mxu0 0
          %668 = vmatpush1.bf16.msra.mxu0 0
          %669 = vmatprep.subr.bf16.mxu0 0
          %670 = vmatpush1.bf16.msra.mxu0 0
          %671 = vmatprep.subr.bf16.mxu0 0
          %672 = vmatpush1.bf16.msra.mxu0 0
          %673 = vmatprep.subr.bf16.mxu0 0
          %674 = vmatpush1.bf16.msra.mxu0 0
          %675 = vmatprep.subr.bf16.mxu0 0
          %676 = vmatpush1.bf16.msra.mxu0 0
          %677 = vmatprep.mubr.bf16.mxu0 0
          %678 = vmatmul.mubr.bf16.gmra.mrb[0].mxu0 %v644
          %v679 = vpop.f32.mrb[0].mxu0
          %v680 = vadd.f32 0.0, %v679
          %v681 = vpop.f32.mrb[0].mxu0
          %v682 = vadd.f32 0.0, %v681
          %v683 = vpop.f32.mrb[0].mxu0
          %v684 = vpop.f32.mrb[0].mxu0
          %685 = vdwg.mxu0
          %686 = vmatprep.subr.bf16.mxu0 %v331
          %687 = vmatpush1.bf16.msra.mxu0 %v330
          %688 = vmatprep.subr.bf16.mxu0 %v335
          %689 = vmatpush1.bf16.msra.mxu0 %v334
          %690 = vmatprep.subr.bf16.mxu0 %v339
          %691 = vmatpush1.bf16.msra.mxu0 %v338
          %692 = vmatprep.subr.bf16.mxu0 %v343
          %693 = vmatpush1.bf16.msra.mxu0 %v342
          %694 = vmatprep.subr.bf16.mxu0 %v347
          %695 = vmatpush1.bf16.msra.mxu0 %v346
          %696 = vmatprep.subr.bf16.mxu0 %v351
          %697 = vmatpush1.bf16.msra.mxu0 %v350
          %698 = vmatprep.subr.bf16.mxu0 %v355
          %699 = vmatpush1.bf16.msra.mxu0 %v354
          %700 = vmatprep.subr.bf16.mxu0 %v359
          %701 = vmatpush1.bf16.msra.mxu0 %v358
          %702 = vmatprep.subr.bf16.mxu0 0
          %703 = vmatpush1.bf16.msra.mxu0 0
          %704 = vmatprep.subr.bf16.mxu0 0
          %705 = vmatpush1.bf16.msra.mxu0 0
          %706 = vmatprep.subr.bf16.mxu0 0
          %707 = vmatpush1.bf16.msra.mxu0 0
          %708 = vmatprep.subr.bf16.mxu0 0
          %709 = vmatpush1.bf16.msra.mxu0 0
          %710 = vmatprep.subr.bf16.mxu0 0
          %711 = vmatpush1.bf16.msra.mxu0 0
          %712 = vmatprep.subr.bf16.mxu0 0
          %713 = vmatpush1.bf16.msra.mxu0 0
          %714 = vmatprep.subr.bf16.mxu0 0
          %715 = vmatpush1.bf16.msra.mxu0 0
          %716 = vmatprep.subr.bf16.mxu0 0
          %717 = vmatpush1.bf16.msra.mxu0 0
          %718 = vmatprep.mubr.bf16.mxu0 0
          %719 = vmatmul.mubr.bf16.gmra.mrb[0].mxu0 %v644
          %v720 = vpop.f32.mrb[0].mxu0
          %v721 = vadd.f32 0.0, %v720
          %v722 = vpop.f32.mrb[0].mxu0
          %v723 = vadd.f32 0.0, %v722
          %v724 = vpop.f32.mrb[0].mxu0
          %v725 = vpop.f32.mrb[0].mxu0
          %726 = vdwg.mxu0
          %v727 = vadd.f32 %v639, %v680
          %v728 = vadd.f32 %v640, %v682
          %v729 = vadd.f32 %v641, %v721
          %v730 = vadd.f32 %v642, %v723
          %v731 = vxor.u32 %v727, 2147483648
          %v732 = vmul.f32 %v731, 1.442695
          %v733 = vpow.pop %v732
          %v734 = vadd.f32 %v733, 1.0
          %v735 = vrcp.pop %v734
          %v736 = vmul.f32 1.0, %v735
          %v737 = vxor.u32 %v728, 2147483648
          %v738 = vmul.f32 %v737, 1.442695
          %v739 = vpow.pop %v738
          %v740 = vadd.f32 %v739, 1.0
          %v741 = vrcp.pop %v740
          %v742 = vmul.f32 1.0, %v741
          %v743 = vtanh.pop %v729
          %v744 = vxor.u32 %v730, 2147483648
          %v745 = vmul.f32 %v744, 1.442695
          %v746 = vpow.pop %v745
          %v747 = vadd.f32 %v746, 1.0
          %v748 = vrcp.pop %v747
          %v749 = vmul.f32 1.0, %v748
          %v750 = vld [vmem:[#allocation3] sm:$0xff]
          %v751 = vmul.f32 %v742, %v750
          %v752 = vmul.f32 %v736, %v743
          %v753 = vadd.f32 %v751, %v752
          %v754 = vtanh.pop %v753
          %v755 = vmul.f32 %v749, %v754
          %v756 = vsel %vm637, %v753, %v750
          %757 = vst [vmem:[#allocation3] sm:$0xff] %v756
          %v758 = vld [vmem:[#allocation2] sm:$0xff]
          %v759 = vsel %vm637, %v755, %v758
          %760 = vst [vmem:[#allocation2] sm:$0xff] %v759
          %v761 = vsel %vm637, %v755, 0.0
          %s762 = scalar_lea.vmem %s174, 16 [#allocation4]
          %763 = vst [vmem:[%s762] sm:$0xff] %v761
          %vm764 = vcmp.gt.s32.totalorder %v188, 3
          %s765 = scalar_lea.vmem %s179, 96
          %v766 = vld [vmem:[%s765] sm:$0xff]
          %v767 = vld [vmem:[%s765 + $0x8] sm:$0xff]
          %v768 = vld [vmem:[%s765 + $0x10] sm:$0xff]
          %v769 = vld [vmem:[%s765 + $0x18] sm:$0xff]
          %v770 = vld [vmem:[#allocation2] sm:$0xff]
          %v771 = vpack.c.bf16 %v770, %v770
          %772 = vmatprep.subr.bf16.mxu0 %v329
          %773 = vmatpush1.bf16.msra.mxu0 %v328
          %774 = vmatprep.subr.bf16.mxu0 %v333
          %775 = vmatpush1.bf16.msra.mxu0 %v332
          %776 = vmatprep.subr.bf16.mxu0 %v337
          %777 = vmatpush1.bf16.msra.mxu0 %v336
          %778 = vmatprep.subr.bf16.mxu0 %v341
          %779 = vmatpush1.bf16.msra.mxu0 %v340
          %780 = vmatprep.subr.bf16.mxu0 %v345
          %781 = vmatpush1.bf16.msra.mxu0 %v344
          %782 = vmatprep.subr.bf16.mxu0 %v349
          %783 = vmatpush1.bf16.msra.mxu0 %v348
          %784 = vmatprep.subr.bf16.mxu0 %v353
          %785 = vmatpush1.bf16.msra.mxu0 %v352
          %786 = vmatprep.subr.bf16.mxu0 %v357
          %787 = vmatpush1.bf16.msra.mxu0 %v356
          %788 = vmatprep.subr.bf16.mxu0 0
          %789 = vmatpush1.bf16.msra.mxu0 0
          %790 = vmatprep.subr.bf16.mxu0 0
          %791 = vmatpush1.bf16.msra.mxu0 0
          %792 = vmatprep.subr.bf16.mxu0 0
          %793 = vmatpush1.bf16.msra.mxu0 0
          %794 = vmatprep.subr.bf16.mxu0 0
          %795 = vmatpush1.bf16.msra.mxu0 0
          %796 = vmatprep.subr.bf16.mxu0 0
          %797 = vmatpush1.bf16.msra.mxu0 0
          %798 = vmatprep.subr.bf16.mxu0 0
          %799 = vmatpush1.bf16.msra.mxu0 0
          %800 = vmatprep.subr.bf16.mxu0 0
          %801 = vmatpush1.bf16.msra.mxu0 0
          %802 = vmatprep.subr.bf16.mxu0 0
          %803 = vmatpush1.bf16.msra.mxu0 0
          %804 = vmatprep.mubr.bf16.mxu0 0
          %805 = vmatmul.mubr.bf16.gmra.mrb[0].mxu0 %v771
          %v806 = vpop.f32.mrb[0].mxu0
          %v807 = vadd.f32 0.0, %v806
          %v808 = vpop.f32.mrb[0].mxu0
          %v809 = vadd.f32 0.0, %v808
          %v810 = vpop.f32.mrb[0].mxu0
          %v811 = vpop.f32.mrb[0].mxu0
          %812 = vdwg.mxu0
          %813 = vmatprep.subr.bf16.mxu0 %v331
          %814 = vmatpush1.bf16.msra.mxu0 %v330
          %815 = vmatprep.subr.bf16.mxu0 %v335
          %816 = vmatpush1.bf16.msra.mxu0 %v334
          %817 = vmatprep.subr.bf16.mxu0 %v339
          %818 = vmatpush1.bf16.msra.mxu0 %v338
          %819 = vmatprep.subr.bf16.mxu0 %v343
          %820 = vmatpush1.bf16.msra.mxu0 %v342
          %821 = vmatprep.subr.bf16.mxu0 %v347
          %822 = vmatpush1.bf16.msra.mxu0 %v346
          %823 = vmatprep.subr.bf16.mxu0 %v351
          %824 = vmatpush1.bf16.msra.mxu0 %v350
          %825 = vmatprep.subr.bf16.mxu0 %v355
          %826 = vmatpush1.bf16.msra.mxu0 %v354
          %827 = vmatprep.subr.bf16.mxu0 %v359
          %828 = vmatpush1.bf16.msra.mxu0 %v358
          %829 = vmatprep.subr.bf16.mxu0 0
          %830 = vmatpush1.bf16.msra.mxu0 0
          %831 = vmatprep.subr.bf16.mxu0 0
          %832 = vmatpush1.bf16.msra.mxu0 0
          %833 = vmatprep.subr.bf16.mxu0 0
          %834 = vmatpush1.bf16.msra.mxu0 0
          %835 = vmatprep.subr.bf16.mxu0 0
          %836 = vmatpush1.bf16.msra.mxu0 0
          %837 = vmatprep.subr.bf16.mxu0 0
          %838 = vmatpush1.bf16.msra.mxu0 0
          %839 = vmatprep.subr.bf16.mxu0 0
          %840 = vmatpush1.bf16.msra.mxu0 0
          %841 = vmatprep.subr.bf16.mxu0 0
          %842 = vmatpush1.bf16.msra.mxu0 0
          %843 = vmatprep.subr.bf16.mxu0 0
          %844 = vmatpush1.bf16.msra.mxu0 0
          %845 = vmatprep.mubr.bf16.mxu0 0
          %846 = vmatmul.mubr.bf16.gmra.mrb[0].mxu0 %v771
          %v847 = vpop.f32.mrb[0].mxu0
          %v848 = vadd.f32 0.0, %v847
          %v849 = vpop.f32.mrb[0].mxu0
          %v850 = vadd.f32 0.0, %v849
          %v851 = vpop.f32.mrb[0].mxu0
          %v852 = vpop.f32.mrb[0].mxu0
          %853 = vdwg.mxu0
          %v854 = vadd.f32 %v766, %v807
          %v855 = vadd.f32 %v767, %v809
          %v856 = vadd.f32 %v768, %v848
          %v857 = vadd.f32 %v769, %v850
          %v858 = vxor.u32 %v854, 2147483648
          %v859 = vmul.f32 %v858, 1.442695
          %v860 = vpow.pop %v859
          %v861 = vadd.f32 %v860, 1.0
          %v862 = vrcp.pop %v861
          %v863 = vmul.f32 1.0, %v862
          %v864 = vxor.u32 %v855, 2147483648
          %v865 = vmul.f32 %v864, 1.442695
          %v866 = vpow.pop %v865
          %v867 = vadd.f32 %v866, 1.0
          %v868 = vrcp.pop %v867
          %v869 = vmul.f32 1.0, %v868
          %v870 = vtanh.pop %v856
          %v871 = vxor.u32 %v857, 2147483648
          %v872 = vmul.f32 %v871, 1.442695
          %v873 = vpow.pop %v872
          %v874 = vadd.f32 %v873, 1.0
          %v875 = vrcp.pop %v874
          %v876 = vmul.f32 1.0, %v875
          %v877 = vld [vmem:[#allocation3] sm:$0xff]
          %v878 = vmul.f32 %v869, %v877
          %v879 = vmul.f32 %v863, %v870
          %v880 = vadd.f32 %v878, %v879
          %v881 = vtanh.pop %v880
          %v882 = vmul.f32 %v876, %v881
          %v883 = vsel %vm764, %v880, %v877
          %884 = vst [vmem:[#allocation3] sm:$0xff] %v883
          %v885 = vld [vmem:[#allocation2] sm:$0xff]
          %v886 = vsel %vm764, %v882, %v885
          %887 = vst [vmem:[#allocation2] sm:$0xff] %v886
          %v888 = vsel %vm764, %v882, 0.0
          %s889 = scalar_lea.vmem %s174, 24 [#allocation4]
          %890 = vst [vmem:[%s889] sm:$0xff] %v888
          %vm891 = vcmp.gt.s32.totalorder %v188, 4
          %s892 = scalar_lea.vmem %s179, 128
          %v893 = vld [vmem:[%s892] sm:$0xff]
          %v894 = vld [vmem:[%s892 + $0x8] sm:$0xff]
          %v895 = vld [vmem:[%s892 + $0x10] sm:$0xff]
          %v896 = vld [vmem:[%s892 + $0x18] sm:$0xff]
          %v897 = vld [vmem:[#allocation2] sm:$0xff]
          %v898 = vpack.c.bf16 %v897, %v897
          %899 = vmatprep.subr.bf16.mxu0 %v329
          %900 = vmatpush1.bf16.msra.mxu0 %v328
          %901 = vmatprep.subr.bf16.mxu0 %v333
          %902 = vmatpush1.bf16.msra.mxu0 %v332
          %903 = vmatprep.subr.bf16.mxu0 %v337
          %904 = vmatpush1.bf16.msra.mxu0 %v336
          %905 = vmatprep.subr.bf16.mxu0 %v341
          %906 = vmatpush1.bf16.msra.mxu0 %v340
          %907 = vmatprep.subr.bf16.mxu0 %v345
          %908 = vmatpush1.bf16.msra.mxu0 %v344
          %909 = vmatprep.subr.bf16.mxu0 %v349
          %910 = vmatpush1.bf16.msra.mxu0 %v348
          %911 = vmatprep.subr.bf16.mxu0 %v353
          %912 = vmatpush1.bf16.msra.mxu0 %v352
          %913 = vmatprep.subr.bf16.mxu0 %v357
          %914 = vmatpush1.bf16.msra.mxu0 %v356
          %915 = vmatprep.subr.bf16.mxu0 0
          %916 = vmatpush1.bf16.msra.mxu0 0
          %917 = vmatprep.subr.bf16.mxu0 0
          %918 = vmatpush1.bf16.msra.mxu0 0
          %919 = vmatprep.subr.bf16.mxu0 0
          %920 = vmatpush1.bf16.msra.mxu0 0
          %921 = vmatprep.subr.bf16.mxu0 0
          %922 = vmatpush1.bf16.msra.mxu0 0
          %923 = vmatprep.subr.bf16.mxu0 0
          %924 = vmatpush1.bf16.msra.mxu0 0
          %925 = vmatprep.subr.bf16.mxu0 0
          %926 = vmatpush1.bf16.msra.mxu0 0
          %927 = vmatprep.subr.bf16.mxu0 0
          %928 = vmatpush1.bf16.msra.mxu0 0
          %929 = vmatprep.subr.bf16.mxu0 0
          %930 = vmatpush1.bf16.msra.mxu0 0
          %931 = vmatprep.mubr.bf16.mxu0 0
          %932 = vmatmul.mubr.bf16.gmra.mrb[0].mxu0 %v898
          %v933 = vpop.f32.mrb[0].mxu0
          %v934 = vadd.f32 0.0, %v933
          %v935 = vpop.f32.mrb[0].mxu0
          %v936 = vadd.f32 0.0, %v935
          %v937 = vpop.f32.mrb[0].mxu0
          %v938 = vpop.f32.mrb[0].mxu0
          %939 = vdwg.mxu0
          %940 = vmatprep.subr.bf16.mxu0 %v331
          %941 = vmatpush1.bf16.msra.mxu0 %v330
          %942 = vmatprep.subr.bf16.mxu0 %v335
          %943 = vmatpush1.bf16.msra.mxu0 %v334
          %944 = vmatprep.subr.bf16.mxu0 %v339
          %945 = vmatpush1.bf16.msra.mxu0 %v338
          %946 = vmatprep.subr.bf16.mxu0 %v343
          %947 = vmatpush1.bf16.msra.mxu0 %v342
          %948 = vmatprep.subr.bf16.mxu0 %v347
          %949 = vmatpush1.bf16.msra.mxu0 %v346
          %950 = vmatprep.subr.bf16.mxu0 %v351
          %951 = vmatpush1.bf16.msra.mxu0 %v350
          %952 = vmatprep.subr.bf16.mxu0 %v355
          %953 = vmatpush1.bf16.msra.mxu0 %v354
          %954 = vmatprep.subr.bf16.mxu0 %v359
          %955 = vmatpush1.bf16.msra.mxu0 %v358
          %956 = vmatprep.subr.bf16.mxu0 0
          %957 = vmatpush1.bf16.msra.mxu0 0
          %958 = vmatprep.subr.bf16.mxu0 0
          %959 = vmatpush1.bf16.msra.mxu0 0
          %960 = vmatprep.subr.bf16.mxu0 0
          %961 = vmatpush1.bf16.msra.mxu0 0
          %962 = vmatprep.subr.bf16.mxu0 0
          %963 = vmatpush1.bf16.msra.mxu0 0
          %964 = vmatprep.subr.bf16.mxu0 0
          %965 = vmatpush1.bf16.msra.mxu0 0
          %966 = vmatprep.subr.bf16.mxu0 0
          %967 = vmatpush1.bf16.msra.mxu0 0
          %968 = vmatprep.subr.bf16.mxu0 0
          %969 = vmatpush1.bf16.msra.mxu0 0
          %970 = vmatprep.subr.bf16.mxu0 0
          %971 = vmatpush1.bf16.msra.mxu0 0
          %972 = vmatprep.mubr.bf16.mxu0 0
          %973 = vmatmul.mubr.bf16.gmra.mrb[0].mxu0 %v898
          %v974 = vpop.f32.mrb[0].mxu0
          %v975 = vadd.f32 0.0, %v974
          %v976 = vpop.f32.mrb[0].mxu0
          %v977 = vadd.f32 0.0, %v976
          %v978 = vpop.f32.mrb[0].mxu0
          %v979 = vpop.f32.mrb[0].mxu0
          %980 = vdwg.mxu0
          %v981 = vadd.f32 %v893, %v934
          %v982 = vadd.f32 %v894, %v936
          %v983 = vadd.f32 %v895, %v975
          %v984 = vadd.f32 %v896, %v977
          %v985 = vxor.u32 %v981, 2147483648
          %v986 = vmul.f32 %v985, 1.442695
          %v987 = vpow.pop %v986
          %v988 = vadd.f32 %v987, 1.0
          %v989 = vrcp.pop %v988
          %v990 = vmul.f32 1.0, %v989
          %v991 = vxor.u32 %v982, 2147483648
          %v992 = vmul.f32 %v991, 1.442695
          %v993 = vpow.pop %v992
          %v994 = vadd.f32 %v993, 1.0
          %v995 = vrcp.pop %v994
          %v996 = vmul.f32 1.0, %v995
          %v997 = vtanh.pop %v983
          %v998 = vxor.u32 %v984, 2147483648
          %v999 = vmul.f32 %v998, 1.442695
          %v1000 = vpow.pop %v999
          %v1001 = vadd.f32 %v1000, 1.0
          %v1002 = vrcp.pop %v1001
          %v1003 = vmul.f32 1.0, %v1002
          %v1004 = vld [vmem:[#allocation3] sm:$0xff]
          %v1005 = vmul.f32 %v996, %v1004
          %v1006 = vmul.f32 %v990, %v997
          %v1007 = vadd.f32 %v1005, %v1006
          %v1008 = vtanh.pop %v1007
          %v1009 = vmul.f32 %v1003, %v1008
          %v1010 = vsel %vm891, %v1007, %v1004
          %1011 = vst [vmem:[#allocation3] sm:$0xff] %v1010
          %v1012 = vld [vmem:[#allocation2] sm:$0xff]
          %v1013 = vsel %vm891, %v1009, %v1012
          %1014 = vst [vmem:[#allocation2] sm:$0xff] %v1013
          %v1015 = vsel %vm891, %v1009, 0.0
          %s1016 = scalar_lea.vmem %s174, 32 [#allocation4]
          %1017 = vst [vmem:[%s1016] sm:$0xff] %v1015
          %vm1018 = vcmp.gt.s32.totalorder %v188, 5
          %s1019 = scalar_lea.vmem %s179, 160
          %v1020 = vld [vmem:[%s1019] sm:$0xff]
          %v1021 = vld [vmem:[%s1019 + $0x8] sm:$0xff]
          %v1022 = vld [vmem:[%s1019 + $0x10] sm:$0xff]
          %v1023 = vld [vmem:[%s1019 + $0x18] sm:$0xff]
          %v1024 = vld [vmem:[#allocation2] sm:$0xff]
          %v1025 = vpack.c.bf16 %v1024, %v1024
          %1026 = vmatprep.subr.bf16.mxu0 %v329
          %1027 = vmatpush1.bf16.msra.mxu0 %v328
          %1028 = vmatprep.subr.bf16.mxu0 %v333
          %1029 = vmatpush1.bf16.msra.mxu0 %v332
          %1030 = vmatprep.subr.bf16.mxu0 %v337
          %1031 = vmatpush1.bf16.msra.mxu0 %v336
          %1032 = vmatprep.subr.bf16.mxu0 %v341
          %1033 = vmatpush1.bf16.msra.mxu0 %v340
          %1034 = vmatprep.subr.bf16.mxu0 %v345
          %1035 = vmatpush1.bf16.msra.mxu0 %v344
          %1036 = vmatprep.subr.bf16.mxu0 %v349
          %1037 = vmatpush1.bf16.msra.mxu0 %v348
          %1038 = vmatprep.subr.bf16.mxu0 %v353
          %1039 = vmatpush1.bf16.msra.mxu0 %v352
          %1040 = vmatprep.subr.bf16.mxu0 %v357
          %1041 = vmatpush1.bf16.msra.mxu0 %v356
          %1042 = vmatprep.subr.bf16.mxu0 0
          %1043 = vmatpush1.bf16.msra.mxu0 0
          %1044 = vmatprep.subr.bf16.mxu0 0
          %1045 = vmatpush1.bf16.msra.mxu0 0
          %1046 = vmatprep.subr.bf16.mxu0 0
          %1047 = vmatpush1.bf16.msra.mxu0 0
          %1048 = vmatprep.subr.bf16.mxu0 0
          %1049 = vmatpush1.bf16.msra.mxu0 0
          %1050 = vmatprep.subr.bf16.mxu0 0
          %1051 = vmatpush1.bf16.msra.mxu0 0
          %1052 = vmatprep.subr.bf16.mxu0 0
          %1053 = vmatpush1.bf16.msra.mxu0 0
          %1054 = vmatprep.subr.bf16.mxu0 0
          %1055 = vmatpush1.bf16.msra.mxu0 0
          %1056 = vmatprep.subr.bf16.mxu0 0
          %1057 = vmatpush1.bf16.msra.mxu0 0
          %1058 = vmatprep.mubr.bf16.mxu0 0
          %1059 = vmatmul.mubr.bf16.gmra.mrb[0].mxu0 %v1025
          %v1060 = vpop.f32.mrb[0].mxu0
          %v1061 = vadd.f32 0.0, %v1060
          %v1062 = vpop.f32.mrb[0].mxu0
          %v1063 = vadd.f32 0.0, %v1062
          %v1064 = vpop.f32.mrb[0].mxu0
          %v1065 = vpop.f32.mrb[0].mxu0
          %1066 = vdwg.mxu0
          %1067 = vmatprep.subr.bf16.mxu0 %v331
          %1068 = vmatpush1.bf16.msra.mxu0 %v330
          %1069 = vmatprep.subr.bf16.mxu0 %v335
          %1070 = vmatpush1.bf16.msra.mxu0 %v334
          %1071 = vmatprep.subr.bf16.mxu0 %v339
          %1072 = vmatpush1.bf16.msra.mxu0 %v338
          %1073 = vmatprep.subr.bf16.mxu0 %v343
          %1074 = vmatpush1.bf16.msra.mxu0 %v342
          %1075 = vmatprep.subr.bf16.mxu0 %v347
          %1076 = vmatpush1.bf16.msra.mxu0 %v346
          %1077 = vmatprep.subr.bf16.mxu0 %v351
          %1078 = vmatpush1.bf16.msra.mxu0 %v350
          %1079 = vmatprep.subr.bf16.mxu0 %v355
          %1080 = vmatpush1.bf16.msra.mxu0 %v354
          %1081 = vmatprep.subr.bf16.mxu0 %v359
          %1082 = vmatpush1.bf16.msra.mxu0 %v358
          %1083 = vmatprep.subr.bf16.mxu0 0
          %1084 = vmatpush1.bf16.msra.mxu0 0
          %1085 = vmatprep.subr.bf16.mxu0 0
          %1086 = vmatpush1.bf16.msra.mxu0 0
          %1087 = vmatprep.subr.bf16.mxu0 0
          %1088 = vmatpush1.bf16.msra.mxu0 0
          %1089 = vmatprep.subr.bf16.mxu0 0
          %1090 = vmatpush1.bf16.msra.mxu0 0
          %1091 = vmatprep.subr.bf16.mxu0 0
          %1092 = vmatpush1.bf16.msra.mxu0 0
          %1093 = vmatprep.subr.bf16.mxu0 0
          %1094 = vmatpush1.bf16.msra.mxu0 0
          %1095 = vmatprep.subr.bf16.mxu0 0
          %1096 = vmatpush1.bf16.msra.mxu0 0
          %1097 = vmatprep.subr.bf16.mxu0 0
          %1098 = vmatpush1.bf16.msra.mxu0 0
          %1099 = vmatprep.mubr.bf16.mxu0 0
          %1100 = vmatmul.mubr.bf16.gmra.mrb[0].mxu0 %v1025
          %v1101 = vpop.f32.mrb[0].mxu0
          %v1102 = vadd.f32 0.0, %v1101
          %v1103 = vpop.f32.mrb[0].mxu0
          %v1104 = vadd.f32 0.0, %v1103
          %v1105 = vpop.f32.mrb[0].mxu0
          %v1106 = vpop.f32.mrb[0].mxu0
          %1107 = vdwg.mxu0
          %v1108 = vadd.f32 %v1020, %v1061
          %v1109 = vadd.f32 %v1021, %v1063
          %v1110 = vadd.f32 %v1022, %v1102
          %v1111 = vadd.f32 %v1023, %v1104
          %v1112 = vxor.u32 %v1108, 2147483648
          %v1113 = vmul.f32 %v1112, 1.442695
          %v1114 = vpow.pop %v1113
          %v1115 = vadd.f32 %v1114, 1.0
          %v1116 = vrcp.pop %v1115
          %v1117 = vmul.f32 1.0, %v1116
          %v1118 = vxor.u32 %v1109, 2147483648
          %v1119 = vmul.f32 %v1118, 1.442695
          %v1120 = vpow.pop %v1119
          %v1121 = vadd.f32 %v1120, 1.0
          %v1122 = vrcp.pop %v1121
          %v1123 = vmul.f32 1.0, %v1122
          %v1124 = vtanh.pop %v1110
          %v1125 = vxor.u32 %v1111, 2147483648
          %v1126 = vmul.f32 %v1125, 1.442695
          %v1127 = vpow.pop %v1126
          %v1128 = vadd.f32 %v1127, 1.0
          %v1129 = vrcp.pop %v1128
          %v1130 = vmul.f32 1.0, %v1129
          %v1131 = vld [vmem:[#allocation3] sm:$0xff]
          %v1132 = vmul.f32 %v1123, %v1131
          %v1133 = vmul.f32 %v1117, %v1124
          %v1134 = vadd.f32 %v1132, %v1133
          %v1135 = vtanh.pop %v1134
          %v1136 = vmul.f32 %v1130, %v1135
          %v1137 = vsel %vm1018, %v1134, %v1131
          %1138 = vst [vmem:[#allocation3] sm:$0xff] %v1137
          %v1139 = vld [vmem:[#allocation2] sm:$0xff]
          %v1140 = vsel %vm1018, %v1136, %v1139
          %1141 = vst [vmem:[#allocation2] sm:$0xff] %v1140
          %v1142 = vsel %vm1018, %v1136, 0.0
          %s1143 = scalar_lea.vmem %s174, 40 [#allocation4]
          %1144 = vst [vmem:[%s1143] sm:$0xff] %v1142
          %vm1145 = vcmp.gt.s32.totalorder %v188, 6
          %s1146 = scalar_lea.vmem %s179, 192
          %v1147 = vld [vmem:[%s1146] sm:$0xff]
          %v1148 = vld [vmem:[%s1146 + $0x8] sm:$0xff]
          %v1149 = vld [vmem:[%s1146 + $0x10] sm:$0xff]
          %v1150 = vld [vmem:[%s1146 + $0x18] sm:$0xff]
          %v1151 = vld [vmem:[#allocation2] sm:$0xff]
          %v1152 = vpack.c.bf16 %v1151, %v1151
          %1153 = vmatprep.subr.bf16.mxu0 %v329
          %1154 = vmatpush1.bf16.msra.mxu0 %v328
          %1155 = vmatprep.subr.bf16.mxu0 %v333
          %1156 = vmatpush1.bf16.msra.mxu0 %v332
          %1157 = vmatprep.subr.bf16.mxu0 %v337
          %1158 = vmatpush1.bf16.msra.mxu0 %v336
          %1159 = vmatprep.subr.bf16.mxu0 %v341
          %1160 = vmatpush1.bf16.msra.mxu0 %v340
          %1161 = vmatprep.subr.bf16.mxu0 %v345
          %1162 = vmatpush1.bf16.msra.mxu0 %v344
          %1163 = vmatprep.subr.bf16.mxu0 %v349
          %1164 = vmatpush1.bf16.msra.mxu0 %v348
          %1165 = vmatprep.subr.bf16.mxu0 %v353
          %1166 = vmatpush1.bf16.msra.mxu0 %v352
          %1167 = vmatprep.subr.bf16.mxu0 %v357
          %1168 = vmatpush1.bf16.msra.mxu0 %v356
          %1169 = vmatprep.subr.bf16.mxu0 0
          %1170 = vmatpush1.bf16.msra.mxu0 0
          %1171 = vmatprep.subr.bf16.mxu0 0
          %1172 = vmatpush1.bf16.msra.mxu0 0
          %1173 = vmatprep.subr.bf16.mxu0 0
          %1174 = vmatpush1.bf16.msra.mxu0 0
          %1175 = vmatprep.subr.bf16.mxu0 0
          %1176 = vmatpush1.bf16.msra.mxu0 0
          %1177 = vmatprep.subr.bf16.mxu0 0
          %1178 = vmatpush1.bf16.msra.mxu0 0
          %1179 = vmatprep.subr.bf16.mxu0 0
          %1180 = vmatpush1.bf16.msra.mxu0 0
          %1181 = vmatprep.subr.bf16.mxu0 0
          %1182 = vmatpush1.bf16.msra.mxu0 0
          %1183 = vmatprep.subr.bf16.mxu0 0
          %1184 = vmatpush1.bf16.msra.mxu0 0
          %1185 = vmatprep.mubr.bf16.mxu0 0
          %1186 = vmatmul.mubr.bf16.gmra.mrb[0].mxu0 %v1152
          %v1187 = vpop.f32.mrb[0].mxu0
          %v1188 = vadd.f32 0.0, %v1187
          %v1189 = vpop.f32.mrb[0].mxu0
          %v1190 = vadd.f32 0.0, %v1189
          %v1191 = vpop.f32.mrb[0].mxu0
          %v1192 = vpop.f32.mrb[0].mxu0
          %1193 = vdwg.mxu0
          %1194 = vmatprep.subr.bf16.mxu0 %v331
          %1195 = vmatpush1.bf16.msra.mxu0 %v330
          %1196 = vmatprep.subr.bf16.mxu0 %v335
          %1197 = vmatpush1.bf16.msra.mxu0 %v334
          %1198 = vmatprep.subr.bf16.mxu0 %v339
          %1199 = vmatpush1.bf16.msra.mxu0 %v338
          %1200 = vmatprep.subr.bf16.mxu0 %v343
          %1201 = vmatpush1.bf16.msra.mxu0 %v342
          %1202 = vmatprep.subr.bf16.mxu0 %v347
          %1203 = vmatpush1.bf16.msra.mxu0 %v346
          %1204 = vmatprep.subr.bf16.mxu0 %v351
          %1205 = vmatpush1.bf16.msra.mxu0 %v350
          %1206 = vmatprep.subr.bf16.mxu0 %v355
          %1207 = vmatpush1.bf16.msra.mxu0 %v354
          %1208 = vmatprep.subr.bf16.mxu0 %v359
          %1209 = vmatpush1.bf16.msra.mxu0 %v358
          %1210 = vmatprep.subr.bf16.mxu0 0
          %1211 = vmatpush1.bf16.msra.mxu0 0
          %1212 = vmatprep.subr.bf16.mxu0 0
          %1213 = vmatpush1.bf16.msra.mxu0 0
          %1214 = vmatprep.subr.bf16.mxu0 0
          %1215 = vmatpush1.bf16.msra.mxu0 0
          %1216 = vmatprep.subr.bf16.mxu0 0
          %1217 = vmatpush1.bf16.msra.mxu0 0
          %1218 = vmatprep.subr.bf16.mxu0 0
          %1219 = vmatpush1.bf16.msra.mxu0 0
          %1220 = vmatprep.subr.bf16.mxu0 0
          %1221 = vmatpush1.bf16.msra.mxu0 0
          %1222 = vmatprep.subr.bf16.mxu0 0
          %1223 = vmatpush1.bf16.msra.mxu0 0
          %1224 = vmatprep.subr.bf16.mxu0 0
          %1225 = vmatpush1.bf16.msra.mxu0 0
          %1226 = vmatprep.mubr.bf16.mxu0 0
          %1227 = vmatmul.mubr.bf16.gmra.mrb[0].mxu0 %v1152
          %v1228 = vpop.f32.mrb[0].mxu0
          %v1229 = vadd.f32 0.0, %v1228
          %v1230 = vpop.f32.mrb[0].mxu0
          %v1231 = vadd.f32 0.0, %v1230
          %v1232 = vpop.f32.mrb[0].mxu0
          %v1233 = vpop.f32.mrb[0].mxu0
          %1234 = vdwg.mxu0
          %v1235 = vadd.f32 %v1147, %v1188
          %v1236 = vadd.f32 %v1148, %v1190
          %v1237 = vadd.f32 %v1149, %v1229
          %v1238 = vadd.f32 %v1150, %v1231
          %v1239 = vxor.u32 %v1235, 2147483648
          %v1240 = vmul.f32 %v1239, 1.442695
          %v1241 = vpow.pop %v1240
          %v1242 = vadd.f32 %v1241, 1.0
          %v1243 = vrcp.pop %v1242
          %v1244 = vmul.f32 1.0, %v1243
          %v1245 = vxor.u32 %v1236, 2147483648
          %v1246 = vmul.f32 %v1245, 1.442695
          %v1247 = vpow.pop %v1246
          %v1248 = vadd.f32 %v1247, 1.0
          %v1249 = vrcp.pop %v1248
          %v1250 = vmul.f32 1.0, %v1249
          %v1251 = vtanh.pop %v1237
          %v1252 = vxor.u32 %v1238, 2147483648
          %v1253 = vmul.f32 %v1252, 1.442695
          %v1254 = vpow.pop %v1253
          %v1255 = vadd.f32 %v1254, 1.0
          %v1256 = vrcp.pop %v1255
          %v1257 = vmul.f32 1.0, %v1256
          %v1258 = vld [vmem:[#allocation3] sm:$0xff]
          %v1259 = vmul.f32 %v1250, %v1258
          %v1260 = vmul.f32 %v1244, %v1251
          %v1261 = vadd.f32 %v1259, %v1260
          %v1262 = vtanh.pop %v1261
          %v1263 = vmul.f32 %v1257, %v1262
          %v1264 = vsel %vm1145, %v1261, %v1258
          %1265 = vst [vmem:[#allocation3] sm:$0xff] %v1264
          %v1266 = vld [vmem:[#allocation2] sm:$0xff]
          %v1267 = vsel %vm1145, %v1263, %v1266
          %1268 = vst [vmem:[#allocation2] sm:$0xff] %v1267
          %v1269 = vsel %vm1145, %v1263, 0.0
          %s1270 = scalar_lea.vmem %s174, 48 [#allocation4]
          %1271 = vst [vmem:[%s1270] sm:$0xff] %v1269
          %vm1272 = vcmp.gt.s32.totalorder %v188, 7
          %s1273 = scalar_lea.vmem %s179, 224
          %v1274 = vld [vmem:[%s1273] sm:$0xff]
          %v1275 = vld [vmem:[%s1273 + $0x8] sm:$0xff]
          %v1276 = vld [vmem:[%s1273 + $0x10] sm:$0xff]
          %v1277 = vld [vmem:[%s1273 + $0x18] sm:$0xff]
          %v1278 = vld [vmem:[#allocation2] sm:$0xff]
          %v1279 = vpack.c.bf16 %v1278, %v1278
          %1280 = vmatprep.subr.bf16.mxu0 %v329
          %1281 = vmatpush1.bf16.msra.mxu0 %v328
          %1282 = vmatprep.subr.bf16.mxu0 %v333
          %1283 = vmatpush1.bf16.msra.mxu0 %v332
          %1284 = vmatprep.subr.bf16.mxu0 %v337
          %1285 = vmatpush1.bf16.msra.mxu0 %v336
          %1286 = vmatprep.subr.bf16.mxu0 %v341
          %1287 = vmatpush1.bf16.msra.mxu0 %v340
          %1288 = vmatprep.subr.bf16.mxu0 %v345
          %1289 = vmatpush1.bf16.msra.mxu0 %v344
          %1290 = vmatprep.subr.bf16.mxu0 %v349
          %1291 = vmatpush1.bf16.msra.mxu0 %v348
          %1292 = vmatprep.subr.bf16.mxu0 %v353
          %1293 = vmatpush1.bf16.msra.mxu0 %v352
          %1294 = vmatprep.subr.bf16.mxu0 %v357
          %1295 = vmatpush1.bf16.msra.mxu0 %v356
          %1296 = vmatprep.subr.bf16.mxu0 0
          %1297 = vmatpush1.bf16.msra.mxu0 0
          %1298 = vmatprep.subr.bf16.mxu0 0
          %1299 = vmatpush1.bf16.msra.mxu0 0
          %1300 = vmatprep.subr.bf16.mxu0 0
          %1301 = vmatpush1.bf16.msra.mxu0 0
          %1302 = vmatprep.subr.bf16.mxu0 0
          %1303 = vmatpush1.bf16.msra.mxu0 0
          %1304 = vmatprep.subr.bf16.mxu0 0
          %1305 = vmatpush1.bf16.msra.mxu0 0
          %1306 = vmatprep.subr.bf16.mxu0 0
          %1307 = vmatpush1.bf16.msra.mxu0 0
          %1308 = vmatprep.subr.bf16.mxu0 0
          %1309 = vmatpush1.bf16.msra.mxu0 0
          %1310 = vmatprep.subr.bf16.mxu0 0
          %1311 = vmatpush1.bf16.msra.mxu0 0
          %1312 = vmatprep.mubr.bf16.mxu0 0
          %1313 = vmatmul.mubr.bf16.gmra.mrb[0].mxu0 %v1279
          %v1314 = vpop.f32.mrb[0].mxu0
          %v1315 = vadd.f32 0.0, %v1314
          %v1316 = vpop.f32.mrb[0].mxu0
          %v1317 = vadd.f32 0.0, %v1316
          %v1318 = vpop.f32.mrb[0].mxu0
          %v1319 = vpop.f32.mrb[0].mxu0
          %1320 = vdwg.mxu0
          %1321 = vmatprep.subr.bf16.mxu0 %v331
          %1322 = vmatpush1.bf16.msra.mxu0 %v330
          %1323 = vmatprep.subr.bf16.mxu0 %v335
          %1324 = vmatpush1.bf16.msra.mxu0 %v334
          %1325 = vmatprep.subr.bf16.mxu0 %v339
          %1326 = vmatpush1.bf16.msra.mxu0 %v338
          %1327 = vmatprep.subr.bf16.mxu0 %v343
          %1328 = vmatpush1.bf16.msra.mxu0 %v342
          %1329 = vmatprep.subr.bf16.mxu0 %v347
          %1330 = vmatpush1.bf16.msra.mxu0 %v346
          %1331 = vmatprep.subr.bf16.mxu0 %v351
          %1332 = vmatpush1.bf16.msra.mxu0 %v350
          %1333 = vmatprep.subr.bf16.mxu0 %v355
          %1334 = vmatpush1.bf16.msra.mxu0 %v354
          %1335 = vmatprep.subr.bf16.mxu0 %v359
          %1336 = vmatpush1.bf16.msra.mxu0 %v358
          %1337 = vmatprep.subr.bf16.mxu0 0
          %1338 = vmatpush1.bf16.msra.mxu0 0
          %1339 = vmatprep.subr.bf16.mxu0 0
          %1340 = vmatpush1.bf16.msra.mxu0 0
          %1341 = vmatprep.subr.bf16.mxu0 0
          %1342 = vmatpush1.bf16.msra.mxu0 0
          %1343 = vmatprep.subr.bf16.mxu0 0
          %1344 = vmatpush1.bf16.msra.mxu0 0
          %1345 = vmatprep.subr.bf16.mxu0 0
          %1346 = vmatpush1.bf16.msra.mxu0 0
          %1347 = vmatprep.subr.bf16.mxu0 0
          %1348 = vmatpush1.bf16.msra.mxu0 0
          %1349 = vmatprep.subr.bf16.mxu0 0
          %1350 = vmatpush1.bf16.msra.mxu0 0
          %1351 = vmatprep.subr.bf16.mxu0 0
          %1352 = vmatpush1.bf16.msra.mxu0 0
          %1353 = vmatprep.mubr.bf16.mxu0 0
          %1354 = vmatmul.mubr.bf16.gmra.mrb[0].mxu0 %v1279
          %v1355 = vpop.f32.mrb[0].mxu0
          %v1356 = vadd.f32 0.0, %v1355
          %v1357 = vpop.f32.mrb[0].mxu0
          %v1358 = vadd.f32 0.0, %v1357
          %v1359 = vpop.f32.mrb[0].mxu0
          %v1360 = vpop.f32.mrb[0].mxu0
          %1361 = vdwg.mxu0
          %v1362 = vadd.f32 %v1274, %v1315
          %v1363 = vadd.f32 %v1275, %v1317
          %v1364 = vadd.f32 %v1276, %v1356
          %v1365 = vadd.f32 %v1277, %v1358
          %v1366 = vxor.u32 %v1362, 2147483648
          %v1367 = vmul.f32 %v1366, 1.442695
          %v1368 = vpow.pop %v1367
          %v1369 = vadd.f32 %v1368, 1.0
          %v1370 = vrcp.pop %v1369
          %v1371 = vmul.f32 1.0, %v1370
          %v1372 = vxor.u32 %v1363, 2147483648
          %v1373 = vmul.f32 %v1372, 1.442695
          %v1374 = vpow.pop %v1373
          %v1375 = vadd.f32 %v1374, 1.0
          %v1376 = vrcp.pop %v1375
          %v1377 = vmul.f32 1.0, %v1376
          %v1378 = vtanh.pop %v1364
          %v1379 = vxor.u32 %v1365, 2147483648
          %v1380 = vmul.f32 %v1379, 1.442695
          %v1381 = vpow.pop %v1380
          %v1382 = vadd.f32 %v1381, 1.0
          %v1383 = vrcp.pop %v1382
          %v1384 = vmul.f32 1.0, %v1383
          %v1385 = vld [vmem:[#allocation3] sm:$0xff]
          %v1386 = vmul.f32 %v1377, %v1385
          %v1387 = vmul.f32 %v1371, %v1378
          %v1388 = vadd.f32 %v1386, %v1387
          %v1389 = vtanh.pop %v1388
          %v1390 = vmul.f32 %v1384, %v1389
          %v1391 = vsel %vm1272, %v1388, %v1385
          %1392 = vst [vmem:[#allocation3] sm:$0xff] %v1391
          %v1393 = vld [vmem:[#allocation2] sm:$0xff]
          %v1394 = vsel %vm1272, %v1390, %v1393
          %1395 = vst [vmem:[#allocation2] sm:$0xff] %v1394
          %v1396 = vsel %vm1272, %v1390, 0.0
          %s1397 = scalar_lea.vmem %s174, 56 [#allocation4]
          %1398 = vst [vmem:[%s1397] sm:$0xff] %v1396
        $region36: #{embedding_lstm_forward.3} parent=31 // pred_fallthru
          _
        %p1399 = scmp.eq.s32.totalorder %s14, 1
        // Predicated region
        $region37: #{embedding_lstm_forward.3} parent=31 // pred_check
          %p1400 = pneg %p1399
        $region38: #{embedding_lstm_forward.3} parent=31 // pred_check_branch
          %1402 = sbr.rel (%p1400) target = $region40
        $region39: #{embedding_lstm_forward.3} parent=31 // pred_region
          %vm1403 = vcmp.gt.s32.totalorder %v188, 7
          %s1404 = scalar_lea.vmem %s179, 224
          %v1405 = vld [vmem:[%s1404] sm:$0xff]
          %v1406 = vld [vmem:[%s1404 + $0x8] sm:$0xff]
          %v1407 = vld [vmem:[%s1404 + $0x10] sm:$0xff]
          %v1408 = vld [vmem:[%s1404 + $0x18] sm:$0xff]
          %v1409 = vld [vmem:[#allocation2] sm:$0xff]
          %v1410 = vpack.c.bf16 %v1409, %v1409
          %v1443 = vunpack.c.l.b16 %v189
          %v1444 = vunpack.c.h.b16 %v189
          %v1445 = vunpack.c.l.b16 %v190
          %v1446 = vunpack.c.h.b16 %v190
          %v1447 = vunpack.c.l.b16 %v191
          %v1448 = vunpack.c.h.b16 %v191
          %v1449 = vunpack.c.l.b16 %v192
          %v1450 = vunpack.c.h.b16 %v192
          %v1451 = vunpack.c.l.b16 %v193
          %v1452 = vunpack.c.h.b16 %v193
          %v1453 = vunpack.c.l.b16 %v194
          %v1454 = vunpack.c.h.b16 %v194
          %v1455 = vunpack.c.l.b16 %v195
          %v1456 = vunpack.c.h.b16 %v195
          %v1457 = vunpack.c.l.b16 %v196
          %v1458 = vunpack.c.h.b16 %v196
          %v1459 = vunpack.c.l.b16 %v197
          %v1460 = vunpack.c.h.b16 %v197
          %v1461 = vunpack.c.l.b16 %v198
          %v1462 = vunpack.c.h.b16 %v198
          %v1463 = vunpack.c.l.b16 %v199
          %v1464 = vunpack.c.h.b16 %v199
          %v1465 = vunpack.c.l.b16 %v200
          %v1466 = vunpack.c.h.b16 %v200
          %v1467 = vunpack.c.l.b16 %v201
          %v1468 = vunpack.c.h.b16 %v201
          %v1469 = vunpack.c.l.b16 %v202
          %v1470 = vunpack.c.h.b16 %v202
          %v1471 = vunpack.c.l.b16 %v203
          %v1472 = vunpack.c.h.b16 %v203
          %v1473 = vunpack.c.l.b16 %v204
          %v1474 = vunpack.c.h.b16 %v204
          %v1475 = vunpack.c.l.b16 %v205
          %v1476 = vunpack.c.h.b16 %v205
          %v1477 = vunpack.c.l.b16 %v206
          %v1478 = vunpack.c.h.b16 %v206
          %v1479 = vunpack.c.l.b16 %v207
          %v1480 = vunpack.c.h.b16 %v207
          %v1481 = vunpack.c.l.b16 %v208
          %v1482 = vunpack.c.h.b16 %v208
          %v1483 = vunpack.c.l.b16 %v209
          %v1484 = vunpack.c.h.b16 %v209
          %v1485 = vunpack.c.l.b16 %v210
          %v1486 = vunpack.c.h.b16 %v210
          %v1487 = vunpack.c.l.b16 %v211
          %v1488 = vunpack.c.h.b16 %v211
          %v1489 = vunpack.c.l.b16 %v212
          %v1490 = vunpack.c.h.b16 %v212
          %v1491 = vunpack.c.l.b16 %v213
          %v1492 = vunpack.c.h.b16 %v213
          %v1493 = vunpack.c.l.b16 %v214
          %v1494 = vunpack.c.h.b16 %v214
          %v1495 = vunpack.c.l.b16 %v215
          %v1496 = vunpack.c.h.b16 %v215
          %v1497 = vunpack.c.l.b16 %v216
          %v1498 = vunpack.c.h.b16 %v216
          %v1499 = vunpack.c.l.b16 %v217
          %v1500 = vunpack.c.h.b16 %v217
          %v1501 = vunpack.c.l.b16 %v218
          %v1502 = vunpack.c.h.b16 %v218
          %v1503 = vunpack.c.l.b16 %v219
          %v1504 = vunpack.c.h.b16 %v219
          %v1505 = vunpack.c.l.b16 %v220
          %v1506 = vunpack.c.h.b16 %v220
          %v1507 = vpack.c.b16 %v1447, %v1443
          %v1508 = vpack.c.b16 %v1448, %v1444
          %v1509 = vpack.c.b16 %v1449, %v1445
          %v1510 = vpack.c.b16 %v1450, %v1446
          %v1511 = vpack.c.b16 %v1455, %v1451
          %v1512 = vpack.c.b16 %v1456, %v1452
          %v1513 = vpack.c.b16 %v1457, %v1453
          %v1514 = vpack.c.b16 %v1458, %v1454
          %v1515 = vpack.c.b16 %v1463, %v1459
          %v1516 = vpack.c.b16 %v1464, %v1460
          %v1517 = vpack.c.b16 %v1465, %v1461
          %v1518 = vpack.c.b16 %v1466, %v1462
          %v1519 = vpack.c.b16 %v1471, %v1467
          %v1520 = vpack.c.b16 %v1472, %v1468
          %v1521 = vpack.c.b16 %v1473, %v1469
          %v1522 = vpack.c.b16 %v1474, %v1470
          %v1523 = vpack.c.b16 %v1479, %v1475
          %v1524 = vpack.c.b16 %v1480, %v1476
          %v1525 = vpack.c.b16 %v1481, %v1477
          %v1526 = vpack.c.b16 %v1482, %v1478
          %v1527 = vpack.c.b16 %v1487, %v1483
          %v1528 = vpack.c.b16 %v1488, %v1484
          %v1529 = vpack.c.b16 %v1489, %v1485
          %v1530 = vpack.c.b16 %v1490, %v1486
          %v1531 = vpack.c.b16 %v1495, %v1491
          %v1532 = vpack.c.b16 %v1496, %v1492
          %v1533 = vpack.c.b16 %v1497, %v1493
          %v1534 = vpack.c.b16 %v1498, %v1494
          %v1535 = vpack.c.b16 %v1503, %v1499
          %v1536 = vpack.c.b16 %v1504, %v1500
          %v1537 = vpack.c.b16 %v1505, %v1501
          %v1538 = vpack.c.b16 %v1506, %v1502
          %1571 = vmatprep.subr.bf16.mxu0 %v1508
          %1572 = vmatpush1.bf16.msra.mxu0 %v1507
          %1573 = vmatprep.subr.bf16.mxu0 %v1512
          %1574 = vmatpush1.bf16.msra.mxu0 %v1511
          %1575 = vmatprep.subr.bf16.mxu0 %v1516
          %1576 = vmatpush1.bf16.msra.mxu0 %v1515
          %1577 = vmatprep.subr.bf16.mxu0 %v1520
          %1578 = vmatpush1.bf16.msra.mxu0 %v1519
          %1579 = vmatprep.subr.bf16.mxu0 %v1524
          %1580 = vmatpush1.bf16.msra.mxu0 %v1523
          %1581 = vmatprep.subr.bf16.mxu0 %v1528
          %1582 = vmatpush1.bf16.msra.mxu0 %v1527
          %1583 = vmatprep.subr.bf16.mxu0 %v1532
          %1584 = vmatpush1.bf16.msra.mxu0 %v1531
          %1585 = vmatprep.subr.bf16.mxu0 %v1536
          %1586 = vmatpush1.bf16.msra.mxu0 %v1535
          %1587 = vmatprep.subr.bf16.mxu0 0
          %1588 = vmatpush1.bf16.msra.mxu0 0
          %1589 = vmatprep.subr.bf16.mxu0 0
          %1590 = vmatpush1.bf16.msra.mxu0 0
          %1591 = vmatprep.subr.bf16.mxu0 0
          %1592 = vmatpush1.bf16.msra.mxu0 0
          %1593 = vmatprep.subr.bf16.mxu0 0
          %1594 = vmatpush1.bf16.msra.mxu0 0
          %1595 = vmatprep.subr.bf16.mxu0 0
          %1596 = vmatpush1.bf16.msra.mxu0 0
          %1597 = vmatprep.subr.bf16.mxu0 0
          %1598 = vmatpush1.bf16.msra.mxu0 0
          %1599 = vmatprep.subr.bf16.mxu0 0
          %1600 = vmatpush1.bf16.msra.mxu0 0
          %1601 = vmatprep.subr.bf16.mxu0 0
          %1602 = vmatpush1.bf16.msra.mxu0 0
          %1603 = vmatprep.mubr.bf16.mxu0 0
          %1604 = vmatmul.mubr.bf16.gmra.mrb[0].mxu0 %v1410
          %v1605 = vpop.f32.mrb[0].mxu0
          %v1606 = vadd.f32 0.0, %v1605
          %v1607 = vpop.f32.mrb[0].mxu0
          %v1608 = vadd.f32 0.0, %v1607
          %v1609 = vpop.f32.mrb[0].mxu0
          %v1610 = vpop.f32.mrb[0].mxu0
          %1611 = vdwg.mxu0
          %1612 = vmatprep.subr.bf16.mxu0 %v1510
          %1613 = vmatpush1.bf16.msra.mxu0 %v1509
          %1614 = vmatprep.subr.bf16.mxu0 %v1514
          %1615 = vmatpush1.bf16.msra.mxu0 %v1513
          %1616 = vmatprep.subr.bf16.mxu0 %v1518
          %1617 = vmatpush1.bf16.msra.mxu0 %v1517
          %1618 = vmatprep.subr.bf16.mxu0 %v1522
          %1619 = vmatpush1.bf16.msra.mxu0 %v1521
          %1620 = vmatprep.subr.bf16.mxu0 %v1526
          %1621 = vmatpush1.bf16.msra.mxu0 %v1525
          %1622 = vmatprep.subr.bf16.mxu0 %v1530
          %1623 = vmatpush1.bf16.msra.mxu0 %v1529
          %1624 = vmatprep.subr.bf16.mxu0 %v1534
          %1625 = vmatpush1.bf16.msra.mxu0 %v1533
          %1626 = vmatprep.subr.bf16.mxu0 %v1538
          %1627 = vmatpush1.bf16.msra.mxu0 %v1537
          %1628 = vmatprep.subr.bf16.mxu0 0
          %1629 = vmatpush1.bf16.msra.mxu0 0
          %1630 = vmatprep.subr.bf16.mxu0 0
          %1631 = vmatpush1.bf16.msra.mxu0 0
          %1632 = vmatprep.subr.bf16.mxu0 0
          %1633 = vmatpush1.bf16.msra.mxu0 0
          %1634 = vmatprep.subr.bf16.mxu0 0
          %1635 = vmatpush1.bf16.msra.mxu0 0
          %1636 = vmatprep.subr.bf16.mxu0 0
          %1637 = vmatpush1.bf16.msra.mxu0 0
          %1638 = vmatprep.subr.bf16.mxu0 0
          %1639 = vmatpush1.bf16.msra.mxu0 0
          %1640 = vmatprep.subr.bf16.mxu0 0
          %1641 = vmatpush1.bf16.msra.mxu0 0
          %1642 = vmatprep.subr.bf16.mxu0 0
          %1643 = vmatpush1.bf16.msra.mxu0 0
          %1644 = vmatprep.mubr.bf16.mxu0 0
          %1645 = vmatmul.mubr.bf16.gmra.mrb[0].mxu0 %v1410
          %v1646 = vpop.f32.mrb[0].mxu0
          %v1647 = vadd.f32 0.0, %v1646
          %v1648 = vpop.f32.mrb[0].mxu0
          %v1649 = vadd.f32 0.0, %v1648
          %v1650 = vpop.f32.mrb[0].mxu0
          %v1651 = vpop.f32.mrb[0].mxu0
          %1652 = vdwg.mxu0
          %v1653 = vadd.f32 %v1405, %v1606
          %v1654 = vadd.f32 %v1406, %v1608
          %v1655 = vadd.f32 %v1407, %v1647
          %v1656 = vadd.f32 %v1408, %v1649
          %v1657 = vxor.u32 %v1653, 2147483648
          %v1658 = vmul.f32 %v1657, 1.442695
          %v1659 = vpow.pop %v1658
          %v1660 = vadd.f32 %v1659, 1.0
          %v1661 = vrcp.pop %v1660
          %v1662 = vmul.f32 1.0, %v1661
          %v1663 = vxor.u32 %v1654, 2147483648
          %v1664 = vmul.f32 %v1663, 1.442695
          %v1665 = vpow.pop %v1664
          %v1666 = vadd.f32 %v1665, 1.0
          %v1667 = vrcp.pop %v1666
          %v1668 = vmul.f32 1.0, %v1667
          %v1669 = vtanh.pop %v1655
          %v1670 = vxor.u32 %v1656, 2147483648
          %v1671 = vmul.f32 %v1670, 1.442695
          %v1672 = vpow.pop %v1671
          %v1673 = vadd.f32 %v1672, 1.0
          %v1674 = vrcp.pop %v1673
          %v1675 = vmul.f32 1.0, %v1674
          %v1676 = vld [vmem:[#allocation3] sm:$0xff]
          %v1677 = vmul.f32 %v1668, %v1676
          %v1678 = vmul.f32 %v1662, %v1669
          %v1679 = vadd.f32 %v1677, %v1678
          %v1680 = vtanh.pop %v1679
          %v1681 = vmul.f32 %v1675, %v1680
          %v1682 = vsel %vm1403, %v1679, %v1676
          %1683 = vst [vmem:[#allocation3] sm:$0xff] %v1682
          %v1684 = vld [vmem:[#allocation2] sm:$0xff]
          %v1685 = vsel %vm1403, %v1681, %v1684
          %1686 = vst [vmem:[#allocation2] sm:$0xff] %v1685
          %v1687 = vsel %vm1403, %v1681, 0.0
          %s1688 = scalar_lea.vmem %s174, 56 [#allocation4]
          %1689 = vst [vmem:[%s1688] sm:$0xff] %v1687
          %vm1690 = vcmp.gt.s32.totalorder %v188, 6
          %s1691 = scalar_lea.vmem %s179, 192
          %v1692 = vld [vmem:[%s1691] sm:$0xff]
          %v1693 = vld [vmem:[%s1691 + $0x8] sm:$0xff]
          %v1694 = vld [vmem:[%s1691 + $0x10] sm:$0xff]
          %v1695 = vld [vmem:[%s1691 + $0x18] sm:$0xff]
          %v1696 = vld [vmem:[#allocation2] sm:$0xff]
          %v1697 = vpack.c.bf16 %v1696, %v1696
          %1698 = vmatprep.subr.bf16.mxu0 %v1508
          %1699 = vmatpush1.bf16.msra.mxu0 %v1507
          %1700 = vmatprep.subr.bf16.mxu0 %v1512
          %1701 = vmatpush1.bf16.msra.mxu0 %v1511
          %1702 = vmatprep.subr.bf16.mxu0 %v1516
          %1703 = vmatpush1.bf16.msra.mxu0 %v1515
          %1704 = vmatprep.subr.bf16.mxu0 %v1520
          %1705 = vmatpush1.bf16.msra.mxu0 %v1519
          %1706 = vmatprep.subr.bf16.mxu0 %v1524
          %1707 = vmatpush1.bf16.msra.mxu0 %v1523
          %1708 = vmatprep.subr.bf16.mxu0 %v1528
          %1709 = vmatpush1.bf16.msra.mxu0 %v1527
          %1710 = vmatprep.subr.bf16.mxu0 %v1532
          %1711 = vmatpush1.bf16.msra.mxu0 %v1531
          %1712 = vmatprep.subr.bf16.mxu0 %v1536
          %1713 = vmatpush1.bf16.msra.mxu0 %v1535
          %1714 = vmatprep.subr.bf16.mxu0 0
          %1715 = vmatpush1.bf16.msra.mxu0 0
          %1716 = vmatprep.subr.bf16.mxu0 0
          %1717 = vmatpush1.bf16.msra.mxu0 0
          %1718 = vmatprep.subr.bf16.mxu0 0
          %1719 = vmatpush1.bf16.msra.mxu0 0
          %1720 = vmatprep.subr.bf16.mxu0 0
          %1721 = vmatpush1.bf16.msra.mxu0 0
          %1722 = vmatprep.subr.bf16.mxu0 0
          %1723 = vmatpush1.bf16.msra.mxu0 0
          %1724 = vmatprep.subr.bf16.mxu0 0
          %1725 = vmatpush1.bf16.msra.mxu0 0
          %1726 = vmatprep.subr.bf16.mxu0 0
          %1727 = vmatpush1.bf16.msra.mxu0 0
          %1728 = vmatprep.subr.bf16.mxu0 0
          %1729 = vmatpush1.bf16.msra.mxu0 0
          %1730 = vmatprep.mubr.bf16.mxu0 0
          %1731 = vmatmul.mubr.bf16.gmra.mrb[0].mxu0 %v1697
          %v1732 = vpop.f32.mrb[0].mxu0
          %v1733 = vadd.f32 0.0, %v1732
          %v1734 = vpop.f32.mrb[0].mxu0
          %v1735 = vadd.f32 0.0, %v1734
          %v1736 = vpop.f32.mrb[0].mxu0
          %v1737 = vpop.f32.mrb[0].mxu0
          %1738 = vdwg.mxu0
          %1739 = vmatprep.subr.bf16.mxu0 %v1510
          %1740 = vmatpush1.bf16.msra.mxu0 %v1509
          %1741 = vmatprep.subr.bf16.mxu0 %v1514
          %1742 = vmatpush1.bf16.msra.mxu0 %v1513
          %1743 = vmatprep.subr.bf16.mxu0 %v1518
          %1744 = vmatpush1.bf16.msra.mxu0 %v1517
          %1745 = vmatprep.subr.bf16.mxu0 %v1522
          %1746 = vmatpush1.bf16.msra.mxu0 %v1521
          %1747 = vmatprep.subr.bf16.mxu0 %v1526
          %1748 = vmatpush1.bf16.msra.mxu0 %v1525
          %1749 = vmatprep.subr.bf16.mxu0 %v1530
          %1750 = vmatpush1.bf16.msra.mxu0 %v1529
          %1751 = vmatprep.subr.bf16.mxu0 %v1534
          %1752 = vmatpush1.bf16.msra.mxu0 %v1533
          %1753 = vmatprep.subr.bf16.mxu0 %v1538
          %1754 = vmatpush1.bf16.msra.mxu0 %v1537
          %1755 = vmatprep.subr.bf16.mxu0 0
          %1756 = vmatpush1.bf16.msra.mxu0 0
          %1757 = vmatprep.subr.bf16.mxu0 0
          %1758 = vmatpush1.bf16.msra.mxu0 0
          %1759 = vmatprep.subr.bf16.mxu0 0
          %1760 = vmatpush1.bf16.msra.mxu0 0
          %1761 = vmatprep.subr.bf16.mxu0 0
          %1762 = vmatpush1.bf16.msra.mxu0 0
          %1763 = vmatprep.subr.bf16.mxu0 0
          %1764 = vmatpush1.bf16.msra.mxu0 0
          %1765 = vmatprep.subr.bf16.mxu0 0
          %1766 = vmatpush1.bf16.msra.mxu0 0
          %1767 = vmatprep.subr.bf16.mxu0 0
          %1768 = vmatpush1.bf16.msra.mxu0 0
          %1769 = vmatprep.subr.bf16.mxu0 0
          %1770 = vmatpush1.bf16.msra.mxu0 0
          %1771 = vmatprep.mubr.bf16.mxu0 0
          %1772 = vmatmul.mubr.bf16.gmra.mrb[0].mxu0 %v1697
          %v1773 = vpop.f32.mrb[0].mxu0
          %v1774 = vadd.f32 0.0, %v1773
          %v1775 = vpop.f32.mrb[0].mxu0
          %v1776 = vadd.f32 0.0, %v1775
          %v1777 = vpop.f32.mrb[0].mxu0
          %v1778 = vpop.f32.mrb[0].mxu0
          %1779 = vdwg.mxu0
          %v1780 = vadd.f32 %v1692, %v1733
          %v1781 = vadd.f32 %v1693, %v1735
          %v1782 = vadd.f32 %v1694, %v1774
          %v1783 = vadd.f32 %v1695, %v1776
          %v1784 = vxor.u32 %v1780, 2147483648
          %v1785 = vmul.f32 %v1784, 1.442695
          %v1786 = vpow.pop %v1785
          %v1787 = vadd.f32 %v1786, 1.0
          %v1788 = vrcp.pop %v1787
          %v1789 = vmul.f32 1.0, %v1788
          %v1790 = vxor.u32 %v1781, 2147483648
          %v1791 = vmul.f32 %v1790, 1.442695
          %v1792 = vpow.pop %v1791
          %v1793 = vadd.f32 %v1792, 1.0
          %v1794 = vrcp.pop %v1793
          %v1795 = vmul.f32 1.0, %v1794
          %v1796 = vtanh.pop %v1782
          %v1797 = vxor.u32 %v1783, 2147483648
          %v1798 = vmul.f32 %v1797, 1.442695
          %v1799 = vpow.pop %v1798
          %v1800 = vadd.f32 %v1799, 1.0
          %v1801 = vrcp.pop %v1800
          %v1802 = vmul.f32 1.0, %v1801
          %v1803 = vld [vmem:[#allocation3] sm:$0xff]
          %v1804 = vmul.f32 %v1795, %v1803
          %v1805 = vmul.f32 %v1789, %v1796
          %v1806 = vadd.f32 %v1804, %v1805
          %v1807 = vtanh.pop %v1806
          %v1808 = vmul.f32 %v1802, %v1807
          %v1809 = vsel %vm1690, %v1806, %v1803
          %1810 = vst [vmem:[#allocation3] sm:$0xff] %v1809
          %v1811 = vld [vmem:[#allocation2] sm:$0xff]
          %v1812 = vsel %vm1690, %v1808, %v1811
          %1813 = vst [vmem:[#allocation2] sm:$0xff] %v1812
          %v1814 = vsel %vm1690, %v1808, 0.0
          %s1815 = scalar_lea.vmem %s174, 48 [#allocation4]
          %1816 = vst [vmem:[%s1815] sm:$0xff] %v1814
          %vm1817 = vcmp.gt.s32.totalorder %v188, 5
          %s1818 = scalar_lea.vmem %s179, 160
          %v1819 = vld [vmem:[%s1818] sm:$0xff]
          %v1820 = vld [vmem:[%s1818 + $0x8] sm:$0xff]
          %v1821 = vld [vmem:[%s1818 + $0x10] sm:$0xff]
          %v1822 = vld [vmem:[%s1818 + $0x18] sm:$0xff]
          %v1823 = vld [vmem:[#allocation2] sm:$0xff]
          %v1824 = vpack.c.bf16 %v1823, %v1823
          %1825 = vmatprep.subr.bf16.mxu0 %v1508
          %1826 = vmatpush1.bf16.msra.mxu0 %v1507
          %1827 = vmatprep.subr.bf16.mxu0 %v1512
          %1828 = vmatpush1.bf16.msra.mxu0 %v1511
          %1829 = vmatprep.subr.bf16.mxu0 %v1516
          %1830 = vmatpush1.bf16.msra.mxu0 %v1515
          %1831 = vmatprep.subr.bf16.mxu0 %v1520
          %1832 = vmatpush1.bf16.msra.mxu0 %v1519
          %1833 = vmatprep.subr.bf16.mxu0 %v1524
          %1834 = vmatpush1.bf16.msra.mxu0 %v1523
          %1835 = vmatprep.subr.bf16.mxu0 %v1528
          %1836 = vmatpush1.bf16.msra.mxu0 %v1527
          %1837 = vmatprep.subr.bf16.mxu0 %v1532
          %1838 = vmatpush1.bf16.msra.mxu0 %v1531
          %1839 = vmatprep.subr.bf16.mxu0 %v1536
          %1840 = vmatpush1.bf16.msra.mxu0 %v1535
          %1841 = vmatprep.subr.bf16.mxu0 0
          %1842 = vmatpush1.bf16.msra.mxu0 0
          %1843 = vmatprep.subr.bf16.mxu0 0
          %1844 = vmatpush1.bf16.msra.mxu0 0
          %1845 = vmatprep.subr.bf16.mxu0 0
          %1846 = vmatpush1.bf16.msra.mxu0 0
          %1847 = vmatprep.subr.bf16.mxu0 0
          %1848 = vmatpush1.bf16.msra.mxu0 0
          %1849 = vmatprep.subr.bf16.mxu0 0
          %1850 = vmatpush1.bf16.msra.mxu0 0
          %1851 = vmatprep.subr.bf16.mxu0 0
          %1852 = vmatpush1.bf16.msra.mxu0 0
          %1853 = vmatprep.subr.bf16.mxu0 0
          %1854 = vmatpush1.bf16.msra.mxu0 0
          %1855 = vmatprep.subr.bf16.mxu0 0
          %1856 = vmatpush1.bf16.msra.mxu0 0
          %1857 = vmatprep.mubr.bf16.mxu0 0
          %1858 = vmatmul.mubr.bf16.gmra.mrb[0].mxu0 %v1824
          %v1859 = vpop.f32.mrb[0].mxu0
          %v1860 = vadd.f32 0.0, %v1859
          %v1861 = vpop.f32.mrb[0].mxu0
          %v1862 = vadd.f32 0.0, %v1861
          %v1863 = vpop.f32.mrb[0].mxu0
          %v1864 = vpop.f32.mrb[0].mxu0
          %1865 = vdwg.mxu0
          %1866 = vmatprep.subr.bf16.mxu0 %v1510
          %1867 = vmatpush1.bf16.msra.mxu0 %v1509
          %1868 = vmatprep.subr.bf16.mxu0 %v1514
          %1869 = vmatpush1.bf16.msra.mxu0 %v1513
          %1870 = vmatprep.subr.bf16.mxu0 %v1518
          %1871 = vmatpush1.bf16.msra.mxu0 %v1517
          %1872 = vmatprep.subr.bf16.mxu0 %v1522
          %1873 = vmatpush1.bf16.msra.mxu0 %v1521
          %1874 = vmatprep.subr.bf16.mxu0 %v1526
          %1875 = vmatpush1.bf16.msra.mxu0 %v1525
          %1876 = vmatprep.subr.bf16.mxu0 %v1530
          %1877 = vmatpush1.bf16.msra.mxu0 %v1529
          %1878 = vmatprep.subr.bf16.mxu0 %v1534
          %1879 = vmatpush1.bf16.msra.mxu0 %v1533
          %1880 = vmatprep.subr.bf16.mxu0 %v1538
          %1881 = vmatpush1.bf16.msra.mxu0 %v1537
          %1882 = vmatprep.subr.bf16.mxu0 0
          %1883 = vmatpush1.bf16.msra.mxu0 0
          %1884 = vmatprep.subr.bf16.mxu0 0
          %1885 = vmatpush1.bf16.msra.mxu0 0
          %1886 = vmatprep.subr.bf16.mxu0 0
          %1887 = vmatpush1.bf16.msra.mxu0 0
          %1888 = vmatprep.subr.bf16.mxu0 0
          %1889 = vmatpush1.bf16.msra.mxu0 0
          %1890 = vmatprep.subr.bf16.mxu0 0
          %1891 = vmatpush1.bf16.msra.mxu0 0
          %1892 = vmatprep.subr.bf16.mxu0 0
          %1893 = vmatpush1.bf16.msra.mxu0 0
          %1894 = vmatprep.subr.bf16.mxu0 0
          %1895 = vmatpush1.bf16.msra.mxu0 0
          %1896 = vmatprep.subr.bf16.mxu0 0
          %1897 = vmatpush1.bf16.msra.mxu0 0
          %1898 = vmatprep.mubr.bf16.mxu0 0
          %1899 = vmatmul.mubr.bf16.gmra.mrb[0].mxu0 %v1824
          %v1900 = vpop.f32.mrb[0].mxu0
          %v1901 = vadd.f32 0.0, %v1900
          %v1902 = vpop.f32.mrb[0].mxu0
          %v1903 = vadd.f32 0.0, %v1902
          %v1904 = vpop.f32.mrb[0].mxu0
          %v1905 = vpop.f32.mrb[0].mxu0
          %1906 = vdwg.mxu0
          %v1907 = vadd.f32 %v1819, %v1860
          %v1908 = vadd.f32 %v1820, %v1862
          %v1909 = vadd.f32 %v1821, %v1901
          %v1910 = vadd.f32 %v1822, %v1903
          %v1911 = vxor.u32 %v1907, 2147483648
          %v1912 = vmul.f32 %v1911, 1.442695
          %v1913 = vpow.pop %v1912
          %v1914 = vadd.f32 %v1913, 1.0
          %v1915 = vrcp.pop %v1914
          %v1916 = vmul.f32 1.0, %v1915
          %v1917 = vxor.u32 %v1908, 2147483648
          %v1918 = vmul.f32 %v1917, 1.442695
          %v1919 = vpow.pop %v1918
          %v1920 = vadd.f32 %v1919, 1.0
          %v1921 = vrcp.pop %v1920
          %v1922 = vmul.f32 1.0, %v1921
          %v1923 = vtanh.pop %v1909
          %v1924 = vxor.u32 %v1910, 2147483648
          %v1925 = vmul.f32 %v1924, 1.442695
          %v1926 = vpow.pop %v1925
          %v1927 = vadd.f32 %v1926, 1.0
          %v1928 = vrcp.pop %v1927
          %v1929 = vmul.f32 1.0, %v1928
          %v1930 = vld [vmem:[#allocation3] sm:$0xff]
          %v1931 = vmul.f32 %v1922, %v1930
          %v1932 = vmul.f32 %v1916, %v1923
          %v1933 = vadd.f32 %v1931, %v1932
          %v1934 = vtanh.pop %v1933
          %v1935 = vmul.f32 %v1929, %v1934
          %v1936 = vsel %vm1817, %v1933, %v1930
          %1937 = vst [vmem:[#allocation3] sm:$0xff] %v1936
          %v1938 = vld [vmem:[#allocation2] sm:$0xff]
          %v1939 = vsel %vm1817, %v1935, %v1938
          %1940 = vst [vmem:[#allocation2] sm:$0xff] %v1939
          %v1941 = vsel %vm1817, %v1935, 0.0
          %s1942 = scalar_lea.vmem %s174, 40 [#allocation4]
          %1943 = vst [vmem:[%s1942] sm:$0xff] %v1941
          %vm1944 = vcmp.gt.s32.totalorder %v188, 4
          %s1945 = scalar_lea.vmem %s179, 128
          %v1946 = vld [vmem:[%s1945] sm:$0xff]
          %v1947 = vld [vmem:[%s1945 + $0x8] sm:$0xff]
          %v1948 = vld [vmem:[%s1945 + $0x10] sm:$0xff]
          %v1949 = vld [vmem:[%s1945 + $0x18] sm:$0xff]
          %v1950 = vld [vmem:[#allocation2] sm:$0xff]
          %v1951 = vpack.c.bf16 %v1950, %v1950
          %1952 = vmatprep.subr.bf16.mxu0 %v1508
          %1953 = vmatpush1.bf16.msra.mxu0 %v1507
          %1954 = vmatprep.subr.bf16.mxu0 %v1512
          %1955 = vmatpush1.bf16.msra.mxu0 %v1511
          %1956 = vmatprep.subr.bf16.mxu0 %v1516
          %1957 = vmatpush1.bf16.msra.mxu0 %v1515
          %1958 = vmatprep.subr.bf16.mxu0 %v1520
          %1959 = vmatpush1.bf16.msra.mxu0 %v1519
          %1960 = vmatprep.subr.bf16.mxu0 %v1524
          %1961 = vmatpush1.bf16.msra.mxu0 %v1523
          %1962 = vmatprep.subr.bf16.mxu0 %v1528
          %1963 = vmatpush1.bf16.msra.mxu0 %v1527
          %1964 = vmatprep.subr.bf16.mxu0 %v1532
          %1965 = vmatpush1.bf16.msra.mxu0 %v1531
          %1966 = vmatprep.subr.bf16.mxu0 %v1536
          %1967 = vmatpush1.bf16.msra.mxu0 %v1535
          %1968 = vmatprep.subr.bf16.mxu0 0
          %1969 = vmatpush1.bf16.msra.mxu0 0
          %1970 = vmatprep.subr.bf16.mxu0 0
          %1971 = vmatpush1.bf16.msra.mxu0 0
          %1972 = vmatprep.subr.bf16.mxu0 0
          %1973 = vmatpush1.bf16.msra.mxu0 0
          %1974 = vmatprep.subr.bf16.mxu0 0
          %1975 = vmatpush1.bf16.msra.mxu0 0
          %1976 = vmatprep.subr.bf16.mxu0 0
          %1977 = vmatpush1.bf16.msra.mxu0 0
          %1978 = vmatprep.subr.bf16.mxu0 0
          %1979 = vmatpush1.bf16.msra.mxu0 0
          %1980 = vmatprep.subr.bf16.mxu0 0
          %1981 = vmatpush1.bf16.msra.mxu0 0
          %1982 = vmatprep.subr.bf16.mxu0 0
          %1983 = vmatpush1.bf16.msra.mxu0 0
          %1984 = vmatprep.mubr.bf16.mxu0 0
          %1985 = vmatmul.mubr.bf16.gmra.mrb[0].mxu0 %v1951
          %v1986 = vpop.f32.mrb[0].mxu0
          %v1987 = vadd.f32 0.0, %v1986
          %v1988 = vpop.f32.mrb[0].mxu0
          %v1989 = vadd.f32 0.0, %v1988
          %v1990 = vpop.f32.mrb[0].mxu0
          %v1991 = vpop.f32.mrb[0].mxu0
          %1992 = vdwg.mxu0
          %1993 = vmatprep.subr.bf16.mxu0 %v1510
          %1994 = vmatpush1.bf16.msra.mxu0 %v1509
          %1995 = vmatprep.subr.bf16.mxu0 %v1514
          %1996 = vmatpush1.bf16.msra.mxu0 %v1513
          %1997 = vmatprep.subr.bf16.mxu0 %v1518
          %1998 = vmatpush1.bf16.msra.mxu0 %v1517
          %1999 = vmatprep.subr.bf16.mxu0 %v1522
          %2000 = vmatpush1.bf16.msra.mxu0 %v1521
          %2001 = vmatprep.subr.bf16.mxu0 %v1526
          %2002 = vmatpush1.bf16.msra.mxu0 %v1525
          %2003 = vmatprep.subr.bf16.mxu0 %v1530
          %2004 = vmatpush1.bf16.msra.mxu0 %v1529
          %2005 = vmatprep.subr.bf16.mxu0 %v1534
          %2006 = vmatpush1.bf16.msra.mxu0 %v1533
          %2007 = vmatprep.subr.bf16.mxu0 %v1538
          %2008 = vmatpush1.bf16.msra.mxu0 %v1537
          %2009 = vmatprep.subr.bf16.mxu0 0
          %2010 = vmatpush1.bf16.msra.mxu0 0
          %2011 = vmatprep.subr.bf16.mxu0 0
          %2012 = vmatpush1.bf16.msra.mxu0 0
          %2013 = vmatprep.subr.bf16.mxu0 0
          %2014 = vmatpush1.bf16.msra.mxu0 0
          %2015 = vmatprep.subr.bf16.mxu0 0
          %2016 = vmatpush1.bf16.msra.mxu0 0
          %2017 = vmatprep.subr.bf16.mxu0 0
          %2018 = vmatpush1.bf16.msra.mxu0 0
          %2019 = vmatprep.subr.bf16.mxu0 0
          %2020 = vmatpush1.bf16.msra.mxu0 0
          %2021 = vmatprep.subr.bf16.mxu0 0
          %2022 = vmatpush1.bf16.msra.mxu0 0
          %2023 = vmatprep.subr.bf16.mxu0 0
          %2024 = vmatpush1.bf16.msra.mxu0 0
          %2025 = vmatprep.mubr.bf16.mxu0 0
          %2026 = vmatmul.mubr.bf16.gmra.mrb[0].mxu0 %v1951
          %v2027 = vpop.f32.mrb[0].mxu0
          %v2028 = vadd.f32 0.0, %v2027
          %v2029 = vpop.f32.mrb[0].mxu0
          %v2030 = vadd.f32 0.0, %v2029
          %v2031 = vpop.f32.mrb[0].mxu0
          %v2032 = vpop.f32.mrb[0].mxu0
          %2033 = vdwg.mxu0
          %v2034 = vadd.f32 %v1946, %v1987
          %v2035 = vadd.f32 %v1947, %v1989
          %v2036 = vadd.f32 %v1948, %v2028
          %v2037 = vadd.f32 %v1949, %v2030
          %v2038 = vxor.u32 %v2034, 2147483648
          %v2039 = vmul.f32 %v2038, 1.442695
          %v2040 = vpow.pop %v2039
          %v2041 = vadd.f32 %v2040, 1.0
          %v2042 = vrcp.pop %v2041
          %v2043 = vmul.f32 1.0, %v2042
          %v2044 = vxor.u32 %v2035, 2147483648
          %v2045 = vmul.f32 %v2044, 1.442695
          %v2046 = vpow.pop %v2045
          %v2047 = vadd.f32 %v2046, 1.0
          %v2048 = vrcp.pop %v2047
          %v2049 = vmul.f32 1.0, %v2048
          %v2050 = vtanh.pop %v2036
          %v2051 = vxor.u32 %v2037, 2147483648
          %v2052 = vmul.f32 %v2051, 1.442695
          %v2053 = vpow.pop %v2052
          %v2054 = vadd.f32 %v2053, 1.0
          %v2055 = vrcp.pop %v2054
          %v2056 = vmul.f32 1.0, %v2055
          %v2057 = vld [vmem:[#allocation3] sm:$0xff]
          %v2058 = vmul.f32 %v2049, %v2057
          %v2059 = vmul.f32 %v2043, %v2050
          %v2060 = vadd.f32 %v2058, %v2059
          %v2061 = vtanh.pop %v2060
          %v2062 = vmul.f32 %v2056, %v2061
          %v2063 = vsel %vm1944, %v2060, %v2057
          %2064 = vst [vmem:[#allocation3] sm:$0xff] %v2063
          %v2065 = vld [vmem:[#allocation2] sm:$0xff]
          %v2066 = vsel %vm1944, %v2062, %v2065
          %2067 = vst [vmem:[#allocation2] sm:$0xff] %v2066
          %v2068 = vsel %vm1944, %v2062, 0.0
          %s2069 = scalar_lea.vmem %s174, 32 [#allocation4]
          %2070 = vst [vmem:[%s2069] sm:$0xff] %v2068
          %vm2071 = vcmp.gt.s32.totalorder %v188, 3
          %s2072 = scalar_lea.vmem %s179, 96
          %v2073 = vld [vmem:[%s2072] sm:$0xff]
          %v2074 = vld [vmem:[%s2072 + $0x8] sm:$0xff]
          %v2075 = vld [vmem:[%s2072 + $0x10] sm:$0xff]
          %v2076 = vld [vmem:[%s2072 + $0x18] sm:$0xff]
          %v2077 = vld [vmem:[#allocation2] sm:$0xff]
          %v2078 = vpack.c.bf16 %v2077, %v2077
          %2079 = vmatprep.subr.bf16.mxu0 %v1508
          %2080 = vmatpush1.bf16.msra.mxu0 %v1507
          %2081 = vmatprep.subr.bf16.mxu0 %v1512
          %2082 = vmatpush1.bf16.msra.mxu0 %v1511
          %2083 = vmatprep.subr.bf16.mxu0 %v1516
          %2084 = vmatpush1.bf16.msra.mxu0 %v1515
          %2085 = vmatprep.subr.bf16.mxu0 %v1520
          %2086 = vmatpush1.bf16.msra.mxu0 %v1519
          %2087 = vmatprep.subr.bf16.mxu0 %v1524
          %2088 = vmatpush1.bf16.msra.mxu0 %v1523
          %2089 = vmatprep.subr.bf16.mxu0 %v1528
          %2090 = vmatpush1.bf16.msra.mxu0 %v1527
          %2091 = vmatprep.subr.bf16.mxu0 %v1532
          %2092 = vmatpush1.bf16.msra.mxu0 %v1531
          %2093 = vmatprep.subr.bf16.mxu0 %v1536
          %2094 = vmatpush1.bf16.msra.mxu0 %v1535
          %2095 = vmatprep.subr.bf16.mxu0 0
          %2096 = vmatpush1.bf16.msra.mxu0 0
          %2097 = vmatprep.subr.bf16.mxu0 0
          %2098 = vmatpush1.bf16.msra.mxu0 0
          %2099 = vmatprep.subr.bf16.mxu0 0
          %2100 = vmatpush1.bf16.msra.mxu0 0
          %2101 = vmatprep.subr.bf16.mxu0 0
          %2102 = vmatpush1.bf16.msra.mxu0 0
          %2103 = vmatprep.subr.bf16.mxu0 0
          %2104 = vmatpush1.bf16.msra.mxu0 0
          %2105 = vmatprep.subr.bf16.mxu0 0
          %2106 = vmatpush1.bf16.msra.mxu0 0
          %2107 = vmatprep.subr.bf16.mxu0 0
          %2108 = vmatpush1.bf16.msra.mxu0 0
          %2109 = vmatprep.subr.bf16.mxu0 0
          %2110 = vmatpush1.bf16.msra.mxu0 0
          %2111 = vmatprep.mubr.bf16.mxu0 0
          %2112 = vmatmul.mubr.bf16.gmra.mrb[0].mxu0 %v2078
          %v2113 = vpop.f32.mrb[0].mxu0
          %v2114 = vadd.f32 0.0, %v2113
          %v2115 = vpop.f32.mrb[0].mxu0
          %v2116 = vadd.f32 0.0, %v2115
          %v2117 = vpop.f32.mrb[0].mxu0
          %v2118 = vpop.f32.mrb[0].mxu0
          %2119 = vdwg.mxu0
          %2120 = vmatprep.subr.bf16.mxu0 %v1510
          %2121 = vmatpush1.bf16.msra.mxu0 %v1509
          %2122 = vmatprep.subr.bf16.mxu0 %v1514
          %2123 = vmatpush1.bf16.msra.mxu0 %v1513
          %2124 = vmatprep.subr.bf16.mxu0 %v1518
          %2125 = vmatpush1.bf16.msra.mxu0 %v1517
          %2126 = vmatprep.subr.bf16.mxu0 %v1522
          %2127 = vmatpush1.bf16.msra.mxu0 %v1521
          %2128 = vmatprep.subr.bf16.mxu0 %v1526
          %2129 = vmatpush1.bf16.msra.mxu0 %v1525
          %2130 = vmatprep.subr.bf16.mxu0 %v1530
          %2131 = vmatpush1.bf16.msra.mxu0 %v1529
          %2132 = vmatprep.subr.bf16.mxu0 %v1534
          %2133 = vmatpush1.bf16.msra.mxu0 %v1533
          %2134 = vmatprep.subr.bf16.mxu0 %v1538
          %2135 = vmatpush1.bf16.msra.mxu0 %v1537
          %2136 = vmatprep.subr.bf16.mxu0 0
          %2137 = vmatpush1.bf16.msra.mxu0 0
          %2138 = vmatprep.subr.bf16.mxu0 0
          %2139 = vmatpush1.bf16.msra.mxu0 0
          %2140 = vmatprep.subr.bf16.mxu0 0
          %2141 = vmatpush1.bf16.msra.mxu0 0
          %2142 = vmatprep.subr.bf16.mxu0 0
          %2143 = vmatpush1.bf16.msra.mxu0 0
          %2144 = vmatprep.subr.bf16.mxu0 0
          %2145 = vmatpush1.bf16.msra.mxu0 0
          %2146 = vmatprep.subr.bf16.mxu0 0
          %2147 = vmatpush1.bf16.msra.mxu0 0
          %2148 = vmatprep.subr.bf16.mxu0 0
          %2149 = vmatpush1.bf16.msra.mxu0 0
          %2150 = vmatprep.subr.bf16.mxu0 0
          %2151 = vmatpush1.bf16.msra.mxu0 0
          %2152 = vmatprep.mubr.bf16.mxu0 0
          %2153 = vmatmul.mubr.bf16.gmra.mrb[0].mxu0 %v2078
          %v2154 = vpop.f32.mrb[0].mxu0
          %v2155 = vadd.f32 0.0, %v2154
          %v2156 = vpop.f32.mrb[0].mxu0
          %v2157 = vadd.f32 0.0, %v2156
          %v2158 = vpop.f32.mrb[0].mxu0
          %v2159 = vpop.f32.mrb[0].mxu0
          %2160 = vdwg.mxu0
          %v2161 = vadd.f32 %v2073, %v2114
          %v2162 = vadd.f32 %v2074, %v2116
          %v2163 = vadd.f32 %v2075, %v2155
          %v2164 = vadd.f32 %v2076, %v2157
          %v2165 = vxor.u32 %v2161, 2147483648
          %v2166 = vmul.f32 %v2165, 1.442695
          %v2167 = vpow.pop %v2166
          %v2168 = vadd.f32 %v2167, 1.0
          %v2169 = vrcp.pop %v2168
          %v2170 = vmul.f32 1.0, %v2169
          %v2171 = vxor.u32 %v2162, 2147483648
          %v2172 = vmul.f32 %v2171, 1.442695
          %v2173 = vpow.pop %v2172
          %v2174 = vadd.f32 %v2173, 1.0
          %v2175 = vrcp.pop %v2174
          %v2176 = vmul.f32 1.0, %v2175
          %v2177 = vtanh.pop %v2163
          %v2178 = vxor.u32 %v2164, 2147483648
          %v2179 = vmul.f32 %v2178, 1.442695
          %v2180 = vpow.pop %v2179
          %v2181 = vadd.f32 %v2180, 1.0
          %v2182 = vrcp.pop %v2181
          %v2183 = vmul.f32 1.0, %v2182
          %v2184 = vld [vmem:[#allocation3] sm:$0xff]
          %v2185 = vmul.f32 %v2176, %v2184
          %v2186 = vmul.f32 %v2170, %v2177
          %v2187 = vadd.f32 %v2185, %v2186
          %v2188 = vtanh.pop %v2187
          %v2189 = vmul.f32 %v2183, %v2188
          %v2190 = vsel %vm2071, %v2187, %v2184
          %2191 = vst [vmem:[#allocation3] sm:$0xff] %v2190
          %v2192 = vld [vmem:[#allocation2] sm:$0xff]
          %v2193 = vsel %vm2071, %v2189, %v2192
          %2194 = vst [vmem:[#allocation2] sm:$0xff] %v2193
          %v2195 = vsel %vm2071, %v2189, 0.0
          %s2196 = scalar_lea.vmem %s174, 24 [#allocation4]
          %2197 = vst [vmem:[%s2196] sm:$0xff] %v2195
          %vm2198 = vcmp.gt.s32.totalorder %v188, 2
          %s2199 = scalar_lea.vmem %s179, 64
          %v2200 = vld [vmem:[%s2199] sm:$0xff]
          %v2201 = vld [vmem:[%s2199 + $0x8] sm:$0xff]
          %v2202 = vld [vmem:[%s2199 + $0x10] sm:$0xff]
          %v2203 = vld [vmem:[%s2199 + $0x18] sm:$0xff]
          %v2204 = vld [vmem:[#allocation2] sm:$0xff]
          %v2205 = vpack.c.bf16 %v2204, %v2204
          %2206 = vmatprep.subr.bf16.mxu0 %v1508
          %2207 = vmatpush1.bf16.msra.mxu0 %v1507
          %2208 = vmatprep.subr.bf16.mxu0 %v1512
          %2209 = vmatpush1.bf16.msra.mxu0 %v1511
          %2210 = vmatprep.subr.bf16.mxu0 %v1516
          %2211 = vmatpush1.bf16.msra.mxu0 %v1515
          %2212 = vmatprep.subr.bf16.mxu0 %v1520
          %2213 = vmatpush1.bf16.msra.mxu0 %v1519
          %2214 = vmatprep.subr.bf16.mxu0 %v1524
          %2215 = vmatpush1.bf16.msra.mxu0 %v1523
          %2216 = vmatprep.subr.bf16.mxu0 %v1528
          %2217 = vmatpush1.bf16.msra.mxu0 %v1527
          %2218 = vmatprep.subr.bf16.mxu0 %v1532
          %2219 = vmatpush1.bf16.msra.mxu0 %v1531
          %2220 = vmatprep.subr.bf16.mxu0 %v1536
          %2221 = vmatpush1.bf16.msra.mxu0 %v1535
          %2222 = vmatprep.subr.bf16.mxu0 0
          %2223 = vmatpush1.bf16.msra.mxu0 0
          %2224 = vmatprep.subr.bf16.mxu0 0
          %2225 = vmatpush1.bf16.msra.mxu0 0
          %2226 = vmatprep.subr.bf16.mxu0 0
          %2227 = vmatpush1.bf16.msra.mxu0 0
          %2228 = vmatprep.subr.bf16.mxu0 0
          %2229 = vmatpush1.bf16.msra.mxu0 0
          %2230 = vmatprep.subr.bf16.mxu0 0
          %2231 = vmatpush1.bf16.msra.mxu0 0
          %2232 = vmatprep.subr.bf16.mxu0 0
          %2233 = vmatpush1.bf16.msra.mxu0 0
          %2234 = vmatprep.subr.bf16.mxu0 0
          %2235 = vmatpush1.bf16.msra.mxu0 0
          %2236 = vmatprep.subr.bf16.mxu0 0
          %2237 = vmatpush1.bf16.msra.mxu0 0
          %2238 = vmatprep.mubr.bf16.mxu0 0
          %2239 = vmatmul.mubr.bf16.gmra.mrb[0].mxu0 %v2205
          %v2240 = vpop.f32.mrb[0].mxu0
          %v2241 = vadd.f32 0.0, %v2240
          %v2242 = vpop.f32.mrb[0].mxu0
          %v2243 = vadd.f32 0.0, %v2242
          %v2244 = vpop.f32.mrb[0].mxu0
          %v2245 = vpop.f32.mrb[0].mxu0
          %2246 = vdwg.mxu0
          %2247 = vmatprep.subr.bf16.mxu0 %v1510
          %2248 = vmatpush1.bf16.msra.mxu0 %v1509
          %2249 = vmatprep.subr.bf16.mxu0 %v1514
          %2250 = vmatpush1.bf16.msra.mxu0 %v1513
          %2251 = vmatprep.subr.bf16.mxu0 %v1518
          %2252 = vmatpush1.bf16.msra.mxu0 %v1517
          %2253 = vmatprep.subr.bf16.mxu0 %v1522
          %2254 = vmatpush1.bf16.msra.mxu0 %v1521
          %2255 = vmatprep.subr.bf16.mxu0 %v1526
          %2256 = vmatpush1.bf16.msra.mxu0 %v1525
          %2257 = vmatprep.subr.bf16.mxu0 %v1530
          %2258 = vmatpush1.bf16.msra.mxu0 %v1529
          %2259 = vmatprep.subr.bf16.mxu0 %v1534
          %2260 = vmatpush1.bf16.msra.mxu0 %v1533
          %2261 = vmatprep.subr.bf16.mxu0 %v1538
          %2262 = vmatpush1.bf16.msra.mxu0 %v1537
          %2263 = vmatprep.subr.bf16.mxu0 0
          %2264 = vmatpush1.bf16.msra.mxu0 0
          %2265 = vmatprep.subr.bf16.mxu0 0
          %2266 = vmatpush1.bf16.msra.mxu0 0
          %2267 = vmatprep.subr.bf16.mxu0 0
          %2268 = vmatpush1.bf16.msra.mxu0 0
          %2269 = vmatprep.subr.bf16.mxu0 0
          %2270 = vmatpush1.bf16.msra.mxu0 0
          %2271 = vmatprep.subr.bf16.mxu0 0
          %2272 = vmatpush1.bf16.msra.mxu0 0
          %2273 = vmatprep.subr.bf16.mxu0 0
          %2274 = vmatpush1.bf16.msra.mxu0 0
          %2275 = vmatprep.subr.bf16.mxu0 0
          %2276 = vmatpush1.bf16.msra.mxu0 0
          %2277 = vmatprep.subr.bf16.mxu0 0
          %2278 = vmatpush1.bf16.msra.mxu0 0
          %2279 = vmatprep.mubr.bf16.mxu0 0
          %2280 = vmatmul.mubr.bf16.gmra.mrb[0].mxu0 %v2205
          %v2281 = vpop.f32.mrb[0].mxu0
          %v2282 = vadd.f32 0.0, %v2281
          %v2283 = vpop.f32.mrb[0].mxu0
          %v2284 = vadd.f32 0.0, %v2283
          %v2285 = vpop.f32.mrb[0].mxu0
          %v2286 = vpop.f32.mrb[0].mxu0
          %2287 = vdwg.mxu0
          %v2288 = vadd.f32 %v2200, %v2241
          %v2289 = vadd.f32 %v2201, %v2243
          %v2290 = vadd.f32 %v2202, %v2282
          %v2291 = vadd.f32 %v2203, %v2284
          %v2292 = vxor.u32 %v2288, 2147483648
          %v2293 = vmul.f32 %v2292, 1.442695
          %v2294 = vpow.pop %v2293
          %v2295 = vadd.f32 %v2294, 1.0
          %v2296 = vrcp.pop %v2295
          %v2297 = vmul.f32 1.0, %v2296
          %v2298 = vxor.u32 %v2289, 2147483648
          %v2299 = vmul.f32 %v2298, 1.442695
          %v2300 = vpow.pop %v2299
          %v2301 = vadd.f32 %v2300, 1.0
          %v2302 = vrcp.pop %v2301
          %v2303 = vmul.f32 1.0, %v2302
          %v2304 = vtanh.pop %v2290
          %v2305 = vxor.u32 %v2291, 2147483648
          %v2306 = vmul.f32 %v2305, 1.442695
          %v2307 = vpow.pop %v2306
          %v2308 = vadd.f32 %v2307, 1.0
          %v2309 = vrcp.pop %v2308
          %v2310 = vmul.f32 1.0, %v2309
          %v2311 = vld [vmem:[#allocation3] sm:$0xff]
          %v2312 = vmul.f32 %v2303, %v2311
          %v2313 = vmul.f32 %v2297, %v2304
          %v2314 = vadd.f32 %v2312, %v2313
          %v2315 = vtanh.pop %v2314
          %v2316 = vmul.f32 %v2310, %v2315
          %v2317 = vsel %vm2198, %v2314, %v2311
          %2318 = vst [vmem:[#allocation3] sm:$0xff] %v2317
          %v2319 = vld [vmem:[#allocation2] sm:$0xff]
          %v2320 = vsel %vm2198, %v2316, %v2319
          %2321 = vst [vmem:[#allocation2] sm:$0xff] %v2320
          %v2322 = vsel %vm2198, %v2316, 0.0
          %s2323 = scalar_lea.vmem %s174, 16 [#allocation4]
          %2324 = vst [vmem:[%s2323] sm:$0xff] %v2322
          %vm2325 = vcmp.gt.s32.totalorder %v188, 1
          %s2326 = scalar_lea.vmem %s179, 32
          %v2327 = vld [vmem:[%s2326] sm:$0xff]
          %v2328 = vld [vmem:[%s2326 + $0x8] sm:$0xff]
          %v2329 = vld [vmem:[%s2326 + $0x10] sm:$0xff]
          %v2330 = vld [vmem:[%s2326 + $0x18] sm:$0xff]
          %v2331 = vld [vmem:[#allocation2] sm:$0xff]
          %v2332 = vpack.c.bf16 %v2331, %v2331
          %2333 = vmatprep.subr.bf16.mxu0 %v1508
          %2334 = vmatpush1.bf16.msra.mxu0 %v1507
          %2335 = vmatprep.subr.bf16.mxu0 %v1512
          %2336 = vmatpush1.bf16.msra.mxu0 %v1511
          %2337 = vmatprep.subr.bf16.mxu0 %v1516
          %2338 = vmatpush1.bf16.msra.mxu0 %v1515
          %2339 = vmatprep.subr.bf16.mxu0 %v1520
          %2340 = vmatpush1.bf16.msra.mxu0 %v1519
          %2341 = vmatprep.subr.bf16.mxu0 %v1524
          %2342 = vmatpush1.bf16.msra.mxu0 %v1523
          %2343 = vmatprep.subr.bf16.mxu0 %v1528
          %2344 = vmatpush1.bf16.msra.mxu0 %v1527
          %2345 = vmatprep.subr.bf16.mxu0 %v1532
          %2346 = vmatpush1.bf16.msra.mxu0 %v1531
          %2347 = vmatprep.subr.bf16.mxu0 %v1536
          %2348 = vmatpush1.bf16.msra.mxu0 %v1535
          %2349 = vmatprep.subr.bf16.mxu0 0
          %2350 = vmatpush1.bf16.msra.mxu0 0
          %2351 = vmatprep.subr.bf16.mxu0 0
          %2352 = vmatpush1.bf16.msra.mxu0 0
          %2353 = vmatprep.subr.bf16.mxu0 0
          %2354 = vmatpush1.bf16.msra.mxu0 0
          %2355 = vmatprep.subr.bf16.mxu0 0
          %2356 = vmatpush1.bf16.msra.mxu0 0
          %2357 = vmatprep.subr.bf16.mxu0 0
          %2358 = vmatpush1.bf16.msra.mxu0 0
          %2359 = vmatprep.subr.bf16.mxu0 0
          %2360 = vmatpush1.bf16.msra.mxu0 0
          %2361 = vmatprep.subr.bf16.mxu0 0
          %2362 = vmatpush1.bf16.msra.mxu0 0
          %2363 = vmatprep.subr.bf16.mxu0 0
          %2364 = vmatpush1.bf16.msra.mxu0 0
          %2365 = vmatprep.mubr.bf16.mxu0 0
          %2366 = vmatmul.mubr.bf16.gmra.mrb[0].mxu0 %v2332
          %v2367 = vpop.f32.mrb[0].mxu0
          %v2368 = vadd.f32 0.0, %v2367
          %v2369 = vpop.f32.mrb[0].mxu0
          %v2370 = vadd.f32 0.0, %v2369
          %v2371 = vpop.f32.mrb[0].mxu0
          %v2372 = vpop.f32.mrb[0].mxu0
          %2373 = vdwg.mxu0
          %2374 = vmatprep.subr.bf16.mxu0 %v1510
          %2375 = vmatpush1.bf16.msra.mxu0 %v1509
          %2376 = vmatprep.subr.bf16.mxu0 %v1514
          %2377 = vmatpush1.bf16.msra.mxu0 %v1513
          %2378 = vmatprep.subr.bf16.mxu0 %v1518
          %2379 = vmatpush1.bf16.msra.mxu0 %v1517
          %2380 = vmatprep.subr.bf16.mxu0 %v1522
          %2381 = vmatpush1.bf16.msra.mxu0 %v1521
          %2382 = vmatprep.subr.bf16.mxu0 %v1526
          %2383 = vmatpush1.bf16.msra.mxu0 %v1525
          %2384 = vmatprep.subr.bf16.mxu0 %v1530
          %2385 = vmatpush1.bf16.msra.mxu0 %v1529
          %2386 = vmatprep.subr.bf16.mxu0 %v1534
          %2387 = vmatpush1.bf16.msra.mxu0 %v1533
          %2388 = vmatprep.subr.bf16.mxu0 %v1538
          %2389 = vmatpush1.bf16.msra.mxu0 %v1537
          %2390 = vmatprep.subr.bf16.mxu0 0
          %2391 = vmatpush1.bf16.msra.mxu0 0
          %2392 = vmatprep.subr.bf16.mxu0 0
          %2393 = vmatpush1.bf16.msra.mxu0 0
          %2394 = vmatprep.subr.bf16.mxu0 0
          %2395 = vmatpush1.bf16.msra.mxu0 0
          %2396 = vmatprep.subr.bf16.mxu0 0
          %2397 = vmatpush1.bf16.msra.mxu0 0
          %2398 = vmatprep.subr.bf16.mxu0 0
          %2399 = vmatpush1.bf16.msra.mxu0 0
          %2400 = vmatprep.subr.bf16.mxu0 0
          %2401 = vmatpush1.bf16.msra.mxu0 0
          %2402 = vmatprep.subr.bf16.mxu0 0
          %2403 = vmatpush1.bf16.msra.mxu0 0
          %2404 = vmatprep.subr.bf16.mxu0 0
          %2405 = vmatpush1.bf16.msra.mxu0 0
          %2406 = vmatprep.mubr.bf16.mxu0 0
          %2407 = vmatmul.mubr.bf16.gmra.mrb[0].mxu0 %v2332
          %v2408 = vpop.f32.mrb[0].mxu0
          %v2409 = vadd.f32 0.0, %v2408
          %v2410 = vpop.f32.mrb[0].mxu0
          %v2411 = vadd.f32 0.0, %v2410
          %v2412 = vpop.f32.mrb[0].mxu0
          %v2413 = vpop.f32.mrb[0].mxu0
          %2414 = vdwg.mxu0
          %v2415 = vadd.f32 %v2327, %v2368
          %v2416 = vadd.f32 %v2328, %v2370
          %v2417 = vadd.f32 %v2329, %v2409
          %v2418 = vadd.f32 %v2330, %v2411
          %v2419 = vxor.u32 %v2415, 2147483648
          %v2420 = vmul.f32 %v2419, 1.442695
          %v2421 = vpow.pop %v2420
          %v2422 = vadd.f32 %v2421, 1.0
          %v2423 = vrcp.pop %v2422
          %v2424 = vmul.f32 1.0, %v2423
          %v2425 = vxor.u32 %v2416, 2147483648
          %v2426 = vmul.f32 %v2425, 1.442695
          %v2427 = vpow.pop %v2426
          %v2428 = vadd.f32 %v2427, 1.0
          %v2429 = vrcp.pop %v2428
          %v2430 = vmul.f32 1.0, %v2429
          %v2431 = vtanh.pop %v2417
          %v2432 = vxor.u32 %v2418, 2147483648
          %v2433 = vmul.f32 %v2432, 1.442695
          %v2434 = vpow.pop %v2433
          %v2435 = vadd.f32 %v2434, 1.0
          %v2436 = vrcp.pop %v2435
          %v2437 = vmul.f32 1.0, %v2436
          %v2438 = vld [vmem:[#allocation3] sm:$0xff]
          %v2439 = vmul.f32 %v2430, %v2438
          %v2440 = vmul.f32 %v2424, %v2431
          %v2441 = vadd.f32 %v2439, %v2440
          %v2442 = vtanh.pop %v2441
          %v2443 = vmul.f32 %v2437, %v2442
          %v2444 = vsel %vm2325, %v2441, %v2438
          %2445 = vst [vmem:[#allocation3] sm:$0xff] %v2444
          %v2446 = vld [vmem:[#allocation2] sm:$0xff]
          %v2447 = vsel %vm2325, %v2443, %v2446
          %2448 = vst [vmem:[#allocation2] sm:$0xff] %v2447
          %v2449 = vsel %vm2325, %v2443, 0.0
          %s2450 = scalar_lea.vmem %s174, 8 [#allocation4]
          %2451 = vst [vmem:[%s2450] sm:$0xff] %v2449
          %vm2452 = vcmp.gt.s32.totalorder %v188, 0
          %v2453 = vld [vmem:[%s179] sm:$0xff]
          %v2454 = vld [vmem:[%s179 + $0x8] sm:$0xff]
          %v2455 = vld [vmem:[%s179 + $0x10] sm:$0xff]
          %v2456 = vld [vmem:[%s179 + $0x18] sm:$0xff]
          %v2457 = vld [vmem:[#allocation2] sm:$0xff]
          %v2458 = vpack.c.bf16 %v2457, %v2457
          %2459 = vmatprep.subr.bf16.mxu0 %v1508
          %2460 = vmatpush1.bf16.msra.mxu0 %v1507
          %2461 = vmatprep.subr.bf16.mxu0 %v1512
          %2462 = vmatpush1.bf16.msra.mxu0 %v1511
          %2463 = vmatprep.subr.bf16.mxu0 %v1516
          %2464 = vmatpush1.bf16.msra.mxu0 %v1515
          %2465 = vmatprep.subr.bf16.mxu0 %v1520
          %2466 = vmatpush1.bf16.msra.mxu0 %v1519
          %2467 = vmatprep.subr.bf16.mxu0 %v1524
          %2468 = vmatpush1.bf16.msra.mxu0 %v1523
          %2469 = vmatprep.subr.bf16.mxu0 %v1528
          %2470 = vmatpush1.bf16.msra.mxu0 %v1527
          %2471 = vmatprep.subr.bf16.mxu0 %v1532
          %2472 = vmatpush1.bf16.msra.mxu0 %v1531
          %2473 = vmatprep.subr.bf16.mxu0 %v1536
          %2474 = vmatpush1.bf16.msra.mxu0 %v1535
          %2475 = vmatprep.subr.bf16.mxu0 0
          %2476 = vmatpush1.bf16.msra.mxu0 0
          %2477 = vmatprep.subr.bf16.mxu0 0
          %2478 = vmatpush1.bf16.msra.mxu0 0
          %2479 = vmatprep.subr.bf16.mxu0 0
          %2480 = vmatpush1.bf16.msra.mxu0 0
          %2481 = vmatprep.subr.bf16.mxu0 0
          %2482 = vmatpush1.bf16.msra.mxu0 0
          %2483 = vmatprep.subr.bf16.mxu0 0
          %2484 = vmatpush1.bf16.msra.mxu0 0
          %2485 = vmatprep.subr.bf16.mxu0 0
          %2486 = vmatpush1.bf16.msra.mxu0 0
          %2487 = vmatprep.subr.bf16.mxu0 0
          %2488 = vmatpush1.bf16.msra.mxu0 0
          %2489 = vmatprep.subr.bf16.mxu0 0
          %2490 = vmatpush1.bf16.msra.mxu0 0
          %2491 = vmatprep.mubr.bf16.mxu0 0
          %2492 = vmatmul.mubr.bf16.gmra.mrb[0].mxu0 %v2458
          %v2493 = vpop.f32.mrb[0].mxu0
          %v2494 = vadd.f32 0.0, %v2493
          %v2495 = vpop.f32.mrb[0].mxu0
          %v2496 = vadd.f32 0.0, %v2495
          %v2497 = vpop.f32.mrb[0].mxu0
          %v2498 = vpop.f32.mrb[0].mxu0
          %2499 = vdwg.mxu0
          %2500 = vmatprep.subr.bf16.mxu0 %v1510
          %2501 = vmatpush1.bf16.msra.mxu0 %v1509
          %2502 = vmatprep.subr.bf16.mxu0 %v1514
          %2503 = vmatpush1.bf16.msra.mxu0 %v1513
          %2504 = vmatprep.subr.bf16.mxu0 %v1518
          %2505 = vmatpush1.bf16.msra.mxu0 %v1517
          %2506 = vmatprep.subr.bf16.mxu0 %v1522
          %2507 = vmatpush1.bf16.msra.mxu0 %v1521
          %2508 = vmatprep.subr.bf16.mxu0 %v1526
          %2509 = vmatpush1.bf16.msra.mxu0 %v1525
          %2510 = vmatprep.subr.bf16.mxu0 %v1530
          %2511 = vmatpush1.bf16.msra.mxu0 %v1529
          %2512 = vmatprep.subr.bf16.mxu0 %v1534
          %2513 = vmatpush1.bf16.msra.mxu0 %v1533
          %2514 = vmatprep.subr.bf16.mxu0 %v1538
          %2515 = vmatpush1.bf16.msra.mxu0 %v1537
          %2516 = vmatprep.subr.bf16.mxu0 0
          %2517 = vmatpush1.bf16.msra.mxu0 0
          %2518 = vmatprep.subr.bf16.mxu0 0
          %2519 = vmatpush1.bf16.msra.mxu0 0
          %2520 = vmatprep.subr.bf16.mxu0 0
          %2521 = vmatpush1.bf16.msra.mxu0 0
          %2522 = vmatprep.subr.bf16.mxu0 0
          %2523 = vmatpush1.bf16.msra.mxu0 0
          %2524 = vmatprep.subr.bf16.mxu0 0
          %2525 = vmatpush1.bf16.msra.mxu0 0
          %2526 = vmatprep.subr.bf16.mxu0 0
          %2527 = vmatpush1.bf16.msra.mxu0 0
          %2528 = vmatprep.subr.bf16.mxu0 0
          %2529 = vmatpush1.bf16.msra.mxu0 0
          %2530 = vmatprep.subr.bf16.mxu0 0
          %2531 = vmatpush1.bf16.msra.mxu0 0
          %2532 = vmatprep.mubr.bf16.mxu0 0
          %2533 = vmatmul.mubr.bf16.gmra.mrb[0].mxu0 %v2458
          %v2534 = vpop.f32.mrb[0].mxu0
          %v2535 = vadd.f32 0.0, %v2534
          %v2536 = vpop.f32.mrb[0].mxu0
          %v2537 = vadd.f32 0.0, %v2536
          %v2538 = vpop.f32.mrb[0].mxu0
          %v2539 = vpop.f32.mrb[0].mxu0
          %2540 = vdwg.mxu0
          %v2541 = vadd.f32 %v2453, %v2494
          %v2542 = vadd.f32 %v2454, %v2496
          %v2543 = vadd.f32 %v2455, %v2535
          %v2544 = vadd.f32 %v2456, %v2537
          %v2545 = vxor.u32 %v2541, 2147483648
          %v2546 = vmul.f32 %v2545, 1.442695
          %v2547 = vpow.pop %v2546
          %v2548 = vadd.f32 %v2547, 1.0
          %v2549 = vrcp.pop %v2548
          %v2550 = vmul.f32 1.0, %v2549
          %v2551 = vxor.u32 %v2542, 2147483648
          %v2552 = vmul.f32 %v2551, 1.442695
          %v2553 = vpow.pop %v2552
          %v2554 = vadd.f32 %v2553, 1.0
          %v2555 = vrcp.pop %v2554
          %v2556 = vmul.f32 1.0, %v2555
          %v2557 = vtanh.pop %v2543
          %v2558 = vxor.u32 %v2544, 2147483648
          %v2559 = vmul.f32 %v2558, 1.442695
          %v2560 = vpow.pop %v2559
          %v2561 = vadd.f32 %v2560, 1.0
          %v2562 = vrcp.pop %v2561
          %v2563 = vmul.f32 1.0, %v2562
          %v2564 = vld [vmem:[#allocation3] sm:$0xff]
          %v2565 = vmul.f32 %v2556, %v2564
          %v2566 = vmul.f32 %v2550, %v2557
          %v2567 = vadd.f32 %v2565, %v2566
          %v2568 = vtanh.pop %v2567
          %v2569 = vmul.f32 %v2563, %v2568
          %v2570 = vsel %vm2452, %v2567, %v2564
          %2571 = vst [vmem:[#allocation3] sm:$0xff] %v2570
          %v2572 = vld [vmem:[#allocation2] sm:$0xff]
          %v2573 = vsel %vm2452, %v2569, %v2572
          %2574 = vst [vmem:[#allocation2] sm:$0xff] %v2573
          %v2575 = vsel %vm2452, %v2569, 0.0
          %2576 = vst [vmem:[%s174] sm:$0xff] %v2575
        $region40: #{embedding_lstm_forward.3} parent=31 // pred_fallthru
          _
        %s2577 = sand.u32 %s95, 1
        %s2578 = sand.u32 %s95, 1
        %s2579 = smul.addr %s2578, 64
        %s2580 = scalar_lea.vmem [#allocation4], %s2579
        // Predicated region
        $region41: #{embedding_lstm_forward.3} parent=31 // pred_check
          %p2581 = pneg %p105
        $region42: #{embedding_lstm_forward.3} parent=31 // pred_check_branch
          %2583 = sbr.rel (%p2581) target = $region44
        $region43: #{embedding_lstm_forward.3} parent=31 // pred_region
          %s2584 = smul.addr %s14, 8
          %s2585 = scalar_lea.vmem %s3, %s2584
          // Predicated region
          $region45: #{embedding_lstm_forward.3} parent=43 // pred_check
            _
          $region46: #{embedding_lstm_forward.3} parent=43 // pred_check_branch
            %2587 = sbr.rel (0) target = $region48
          $region47: #{embedding_lstm_forward.3} parent=43 // pred_region
            // Predicated region
            $region49: #{embedding_lstm_forward.3} parent=47 // pred_check
              _
            $region50: #{embedding_lstm_forward.3} parent=47 // pred_check_branch
              %2589 = sbr.rel (0) target = $region52
            $region51: #{embedding_lstm_forward.3} parent=47 // pred_region
              // Predicated region
              $region64: #{embedding_lstm_forward.3} parent=51 // pred_check
                _
              $region65: #{embedding_lstm_forward.3} parent=51 // pred_check_branch
                %2618 = sbr.rel (0) target = $region67
              $region66: #{embedding_lstm_forward.3} parent=51 // pred_region
                loop: start=0, step=1, limit=1
                $region68: #{embedding_lstm_forward.3} parent=66 // loop_pre_header
                  _
                $region69: #{embedding_lstm_forward.3} parent=66 // loop_header
                  %s2620 = sphi 0, %s2624
                  %p2621 = scmp.ge.s32.totalorder %s2620, 1
                  %s2625 = sphi %s2580, %s2580
                  %s2626 = sphi %s2585, %s2585
                $region70: #{embedding_lstm_forward.3} parent=66 // loop_header_branch
                  %2623 = sbr.rel (%p2621) target = $region74
                $region71: #{embedding_lstm_forward.3} parent=66 // loop_body
                  %v2627 = vld [vmem:[%s2625] sm:$0xff]
                  %2628 = vst [vmem:[%s2626] sm:$0xff] %v2627
                  %v2629 = vld [vmem:[%s2625 + $0x8] sm:$0xff]
                  %2630 = vst [vmem:[%s2626 + $0x10] sm:$0xff] %v2629
                  %v2631 = vld [vmem:[%s2625 + $0x10] sm:$0xff]
                  %2632 = vst [vmem:[%s2626 + $0x20] sm:$0xff] %v2631
                  %v2633 = vld [vmem:[%s2625 + $0x18] sm:$0xff]
                  %2634 = vst [vmem:[%s2626 + $0x30] sm:$0xff] %v2633
                  %v2635 = vld [vmem:[%s2625 + $0x20] sm:$0xff]
                  %2636 = vst [vmem:[%s2626 + $0x40] sm:$0xff] %v2635
                  %v2637 = vld [vmem:[%s2625 + $0x28] sm:$0xff]
                  %2638 = vst [vmem:[%s2626 + $0x50] sm:$0xff] %v2637
                  %v2639 = vld [vmem:[%s2625 + $0x30] sm:$0xff]
                  %2640 = vst [vmem:[%s2626 + $0x60] sm:$0xff] %v2639
                  %v2641 = vld [vmem:[%s2625 + $0x38] sm:$0xff]
                  %2642 = vst [vmem:[%s2626 + $0x70] sm:$0xff] %v2641
                $region72: #{embedding_lstm_forward.3} parent=66 // loop_footer
                  %s2624 = sadd.s32 1, %s2620
                $region73: #{embedding_lstm_forward.3} parent=66 // loop_footer_branch
                  %2619 = sbr.rel target = $region69
                $region74: #{embedding_lstm_forward.3} parent=66 // loop_exit
                  _
              $region67: #{embedding_lstm_forward.3} parent=51 // pred_fallthru
                _
              // Predicated region
              $region75: #{embedding_lstm_forward.3} parent=51 // pred_check
                _
              $region76: #{embedding_lstm_forward.3} parent=51 // pred_check_branch
                %2644 = sbr.rel target = $region78
              $region77: #{embedding_lstm_forward.3} parent=51 // pred_region
                _
              $region78: #{embedding_lstm_forward.3} parent=51 // pred_fallthru
                _
            $region52: #{embedding_lstm_forward.3} parent=47 // pred_fallthru
              _
            // Predicated region
            $region53: #{embedding_lstm_forward.3} parent=47 // pred_check
              _
            $region54: #{embedding_lstm_forward.3} parent=47 // pred_check_branch
              %2591 = sbr.rel target = $region56
            $region55: #{embedding_lstm_forward.3} parent=47 // pred_region
              loop: start=0, step=1, limit=1
              $region57: #{embedding_lstm_forward.3} parent=55 // loop_pre_header
                _
              $region58: #{embedding_lstm_forward.3} parent=55 // loop_header
                %s2594 = sphi 0, %s2598
                %p2595 = scmp.ge.s32.totalorder %s2594, 1
                %s2599 = sphi %s2580, %s2580
                %s2600 = sphi %s2585, %s2585
              $region59: #{embedding_lstm_forward.3} parent=55 // loop_header_branch
                %2597 = sbr.rel (%p2595) target = $region63
              $region60: #{embedding_lstm_forward.3} parent=55 // loop_body
                %v2601 = vld [vmem:[%s2599] sm:$0xff]
                %2602 = vst [vmem:[%s2600] sm:$0xff] %v2601
                %v2603 = vld [vmem:[%s2599 + $0x8] sm:$0xff]
                %2604 = vst [vmem:[%s2600 + $0x10] sm:$0xff] %v2603
                %v2605 = vld [vmem:[%s2599 + $0x10] sm:$0xff]
                %2606 = vst [vmem:[%s2600 + $0x20] sm:$0xff] %v2605
                %v2607 = vld [vmem:[%s2599 + $0x18] sm:$0xff]
                %2608 = vst [vmem:[%s2600 + $0x30] sm:$0xff] %v2607
                %v2609 = vld [vmem:[%s2599 + $0x20] sm:$0xff]
                %2610 = vst [vmem:[%s2600 + $0x40] sm:$0xff] %v2609
                %v2611 = vld [vmem:[%s2599 + $0x28] sm:$0xff]
                %2612 = vst [vmem:[%s2600 + $0x50] sm:$0xff] %v2611
                %v2613 = vld [vmem:[%s2599 + $0x30] sm:$0xff]
                %2614 = vst [vmem:[%s2600 + $0x60] sm:$0xff] %v2613
                %v2615 = vld [vmem:[%s2599 + $0x38] sm:$0xff]
                %2616 = vst [vmem:[%s2600 + $0x70] sm:$0xff] %v2615
              $region61: #{embedding_lstm_forward.3} parent=55 // loop_footer
                %s2598 = sadd.s32 1, %s2594
              $region62: #{embedding_lstm_forward.3} parent=55 // loop_footer_branch
                %2593 = sbr.rel target = $region58
              $region63: #{embedding_lstm_forward.3} parent=55 // loop_exit
                _
            $region56: #{embedding_lstm_forward.3} parent=47 // pred_fallthru
              _
          $region48: #{embedding_lstm_forward.3} parent=43 // pred_fallthru
            _
          %2645 = vnop
        $region44: #{embedding_lstm_forward.3} parent=31 // pred_fallthru
          _
      $region32: #{embedding_lstm_forward.3} parent=5 // pred_fallthru
        _
      %p2646 = scmp.le.s32.totalorder 2, %s9
      // Predicated region
      $region79: #{embedding_lstm_forward.3} parent=5 // pred_check
        %p2647 = pneg %p2646
      $region80: #{embedding_lstm_forward.3} parent=5 // pred_check_branch
        %2649 = sbr.rel (%p2647) target = $region82
      $region81: #{embedding_lstm_forward.3} parent=5 // pred_region
        %s2650 = ssub.s32 %s9, 2
        // Predicated region
        $region83: #{embedding_lstm_forward.3} parent=81 // pred_check
          %p2651 = pneg %p111
        $region84: #{embedding_lstm_forward.3} parent=81 // pred_check_branch
          %2653 = sbr.rel (%p2651) target = $region86
        $region85: #{embedding_lstm_forward.3} parent=81 // pred_region
          %s2654 = sand.u32 %s96, 1
          %s2655 = sand.u32 %s96, 1
          %s2656 = smul.addr %s2655, 64
          %s2657 = scalar_lea.vmem [#allocation4], %s2656
        $region86: #{embedding_lstm_forward.3} parent=81 // pred_fallthru
          _
      $region82: #{embedding_lstm_forward.3} parent=5 // pred_fallthru
        _
    $region6: #{embedding_lstm_forward.3} parent=1 // loop_footer
      %s13 = sadd.s32 1, %s9
    $region7: #{embedding_lstm_forward.3} parent=1 // loop_footer_branch
      %8 = sbr.rel target = $region3
    $region8: #{embedding_lstm_forward.3} parent=1 // loop_exit
      _

</llo_original>
